<compile_context>
chip_gen: v5e
topology: v5e:2x2
jax: 0.10.0
libtpu: 0.0.40
codegen_flags: <defaults>
</compile_context>

<pallas_src>
import functools
import math

import jax
import jax.numpy as jnp
from jax.experimental import pallas as pl
from jax.experimental.pallas import tpu as pltpu


_VMEM_LIMIT = 32 * 1024 * 1024  # explicit scoped-VMEM budget, safe on v5e/v6e/v7x


# ----------------------------------------------------------------------------
# Tiling helper
# ----------------------------------------------------------------------------
def _pick_tile(dim, preferred, align):
    """Largest tile <= `preferred` that is a multiple of `align` and divides
    `dim`; falls back to the full dimension (always a legal block)."""
    if dim <= preferred:
        return dim
    t = (preferred // align) * align
    while t >= align:
        if dim % t == 0:
            return t
        t -= align
    return dim


# ----------------------------------------------------------------------------
# Pallas kernels
# ----------------------------------------------------------------------------
def _linear_kernel(*refs, relu, has_residual):
    # y = x @ W + b  [+ residual] [ReLU], tiled over (M, N, K) with K innermost.
    if has_residual:
        x_ref, w_ref, b_ref, r_ref, o_ref, acc_ref = refs
    else:
        x_ref, w_ref, b_ref, o_ref, acc_ref = refs
        r_ref = None

    @pl.when(pl.program_id(2) == 0)
    def _():
        acc_ref[...] = jnp.zeros_like(acc_ref)

    acc_ref[...] += jnp.dot(
        x_ref[...].astype(jnp.bfloat16),
        w_ref[...].astype(jnp.bfloat16),
        preferred_element_type=jnp.float32,
    )

    @pl.when(pl.program_id(2) == pl.num_programs(2) - 1)
    def _():
        y = acc_ref[...] + b_ref[...]
        if relu:
            y = jnp.maximum(y, 0.0)
        if has_residual:
            y = y + r_ref[...]
        o_ref[...] = y


def _layernorm_kernel(x_ref, g_ref, b_ref, o_ref):
    # PyTorch nn.LayerNorm semantics: biased variance, eps=1e-5, f32 math.
    x = x_ref[...]
    mu = jnp.mean(x, axis=-1, keepdims=True)
    var = jnp.mean(jnp.square(x - mu), axis=-1, keepdims=True)
    o_ref[...] = (x - mu) * jax.lax.rsqrt(var + 1e-5) * g_ref[...] + b_ref[...]


def _attention_kernel(q_ref, k_ref, v_ref, kpad_ref, o_ref, *, scale_inv, causal):
    # One batch element, all heads at once.
    #   q: (H, Sq, Dh)   k, v: (H, Sk, Dh)   kpad: (1, 1, Sk) int32 (1 = pad)
    q = q_ref[...].astype(jnp.bfloat16)
    k = k_ref[...].astype(jnp.bfloat16)
    s = jnp.einsum("hqd,hkd->hqk", q, k,
                   preferred_element_type=jnp.float32) * scale_inv
    H, Sq, Sk = s.shape

    kp = jnp.broadcast_to(kpad_ref[0][None, :, :], (H, Sq, Sk))   # (1,1,Sk)->(H,Sq,Sk)
    mask = kp != 0
    if causal:
        row = jax.lax.broadcasted_iota(jnp.int32, (Sq, Sk), 0)
        col = jax.lax.broadcasted_iota(jnp.int32, (Sq, Sk), 1)
        cm = jnp.broadcast_to((col > row)[None, :, :], (H, Sq, Sk))
        mask = jnp.logical_or(mask, cm)

    s = jnp.where(mask, -1.0e10, s)
    m = jnp.max(s, axis=-1, keepdims=True)
    e = jnp.exp(s - m)
    p = e * pl.reciprocal(jnp.sum(e, axis=-1, keepdims=True), approx=True)
    o_ref[...] = jnp.einsum("hqk,hkd->hqd",
                            p.astype(jnp.bfloat16),
                            v_ref[...].astype(jnp.bfloat16),
                            preferred_element_type=jnp.float32)


# ----------------------------------------------------------------------------
# Pallas wrappers
# ----------------------------------------------------------------------------
def pallas_linear(x2d, w, b, *, relu=False, residual=None,
                  tm=256, tn=256, tk=512):
    M, K = x2d.shape
    N = w.shape[1]
    tm = _pick_tile(M, tm, 8)
    tn = _pick_tile(N, tn, 128)
    tk = _pick_tile(K, tk, 128)
    grid = (M // tm, N // tn, K // tk)

    in_specs = [
        pl.BlockSpec((tm, tk), lambda i, j, k: (i, k)),
        pl.BlockSpec((tk, tn), lambda i, j, k: (k, j)),
        pl.BlockSpec((1, tn), lambda i, j, k: (0, j)),
    ]
    args = [x2d, w, b.reshape(1, N)]
    has_residual = residual is not None
    if has_residual:
        in_specs.append(pl.BlockSpec((tm, tn), lambda i, j, k: (i, j)))
        args.append(residual)

    return pl.pallas_call(
        functools.partial(_linear_kernel, relu=relu, has_residual=has_residual),
        grid=grid,
        in_specs=in_specs,
        out_specs=pl.BlockSpec((tm, tn), lambda i, j, k: (i, j)),
        out_shape=jax.ShapeDtypeStruct((M, N), jnp.float32),
        scratch_shapes=[pltpu.VMEM((tm, tn), jnp.float32)],
        compiler_params=pltpu.CompilerParams(
            dimension_semantics=("parallel", "parallel", "arbitrary"),
            vmem_limit_bytes=_VMEM_LIMIT,
        ),
    )(*args)


def pallas_layernorm(x, gamma, beta, tm=256):
    B, S, D = x.shape
    M = B * S
    tm = _pick_tile(M, tm, 8)
    out = pl.pallas_call(
        _layernorm_kernel,
        grid=(M // tm,),
        in_specs=[
            pl.BlockSpec((tm, D), lambda i: (i, 0)),
            pl.BlockSpec((1, D), lambda i: (0, 0)),
            pl.BlockSpec((1, D), lambda i: (0, 0)),
        ],
        out_specs=pl.BlockSpec((tm, D), lambda i: (i, 0)),
        out_shape=jax.ShapeDtypeStruct((M, D), jnp.float32),
        compiler_params=pltpu.CompilerParams(
            dimension_semantics=("parallel",),
            vmem_limit_bytes=_VMEM_LIMIT,
        ),
    )(x.reshape(M, D), gamma.reshape(1, D), beta.reshape(1, D))
    return out.reshape(B, S, D)


def pallas_attention(q, k, v, key_pad, scale_inv, causal):
    # q: (B,H,Sq,Dh)  k,v: (B,H,Sk,Dh)  key_pad: (B,1,Sk) int32 (1 = pad key)
    B, H, Sq, Dh = q.shape
    Sk = k.shape[2]
    qf = q.reshape(B * H, Sq, Dh)
    kf = k.reshape(B * H, Sk, Dh)
    vf = v.reshape(B * H, Sk, Dh)

    out = pl.pallas_call(
        functools.partial(_attention_kernel, scale_inv=scale_inv, causal=causal),
        grid=(B,),
        in_specs=[
            pl.BlockSpec((H, Sq, Dh), lambda b: (b, 0, 0)),
            pl.BlockSpec((H, Sk, Dh), lambda b: (b, 0, 0)),
            pl.BlockSpec((H, Sk, Dh), lambda b: (b, 0, 0)),
            pl.BlockSpec((1, 1, Sk), lambda b: (b, 0, 0)),
        ],
        out_specs=pl.BlockSpec((H, Sq, Dh), lambda b: (b, 0, 0)),
        out_shape=jax.ShapeDtypeStruct((B * H, Sq, Dh), jnp.float32),
        compiler_params=pltpu.CompilerParams(
            dimension_semantics=("parallel",),
            vmem_limit_bytes=_VMEM_LIMIT,
        ),
    )(qf, kf, vf, key_pad)
    return out.reshape(B, H, Sq, Dh)


# ----------------------------------------------------------------------------
# Model pieces (glue around the kernels)
# ----------------------------------------------------------------------------
def mha_block(p, q_in, k_in, v_in, key_pad, n_heads, causal, self_attn, residual):
    """MHA sublayer: fused QKV projection, all-heads attention kernel,
    output projection with the residual add fused into its epilogue."""
    B, Sq, D = q_in.shape
    Sk = k_in.shape[1]
    hd = D // n_heads

    if self_attn:
        qkv = pallas_linear(q_in.reshape(-1, D), p["wqkv"], p["bqkv"])
        qkv = qkv.reshape(B, Sq, 3, n_heads, hd)
        Q, K, V = qkv[:, :, 0], qkv[:, :, 1], qkv[:, :, 2]
    else:
        Q = pallas_linear(q_in.reshape(-1, D), p["wqkv"][:, :D],
                          p["bqkv"][:D]).reshape(B, Sq, n_heads, hd)
        kv = pallas_linear(k_in.reshape(-1, D), p["wqkv"][:, D:], p["bqkv"][D:])
        kv = kv.reshape(B, Sk, 2, n_heads, hd)
        K, V = kv[:, :, 0], kv[:, :, 1]

    # head split (XLA glue, tiny at these sizes)
    Q = Q.transpose(0, 2, 1, 3)
    K = K.transpose(0, 2, 1, 3)
    V = V.transpose(0, 2, 1, 3)

    scale_inv = 1.0 / math.sqrt(float(hd))
    att = pallas_attention(Q, K, V, key_pad, scale_inv, causal)
    ctx = att.transpose(0, 2, 1, 3).reshape(B * Sq, D)

    out = pallas_linear(ctx, p["wo"], p["bo"], residual=residual.reshape(-1, D))
    return out.reshape(B, Sq, D)


def feedforward_block(p, x_norm, residual):
    """FF sublayer: Linear+ReLU, then Linear with residual add fused."""
    B, S, D = x_norm.shape
    h = pallas_linear(x_norm.reshape(-1, D), p["w1"], p["b1"], relu=True)
    o = pallas_linear(h, p["w2"], p["b2"], residual=residual.reshape(-1, D))
    return o.reshape(B, S, D)


def encoder_fwd(p, src, src_key_pad, d_model, n_heads):
    B, S = src.shape
    scale = math.sqrt(float(d_model))
    pos = jnp.arange(S)[None, :]
    x = scale * p["emb"][src] + p["pos_emb_enc"][pos]
    # dropout: identity (inference)
    for lyr in p["enc_layers"]:
        x_norm = pallas_layernorm(x, lyr["ln_g"], lyr["ln_b"])
        x = mha_block(lyr["mha"], x_norm, x_norm, x_norm, src_key_pad, n_heads,
                      causal=False, self_attn=True, residual=x)
        x_norm = pallas_layernorm(x, lyr["ln_g"], lyr["ln_b"])
        # Reference EncoderLayer: x = x_norm + dropout(FF(x_norm))
        x = feedforward_block(lyr["ff"], x_norm, residual=x_norm)
    x = pallas_layernorm(x, p["enc_ln_g"], p["enc_ln_b"])
    return x


def decoder_fwd(p, trg, enc_out, trg_key_pad, src_key_pad, d_model, n_heads):
    B, S = trg.shape
    D = d_model
    scale = math.sqrt(float(d_model))
    pos = jnp.arange(S)[None, :]
    x = scale * p["emb"][trg] + p["pos_emb_dec"][pos]
    for lyr in p["dec_layers"]:
        # self-attention (causal + trg padding), shared MHA weights (reference)
        x_norm = pallas_layernorm(x, lyr["ln_g"], lyr["ln_b"])
        x = mha_block(lyr["mha"], x_norm, x_norm, x_norm, trg_key_pad, n_heads,
                      causal=True, self_attn=True, residual=x)
        # cross-attention (src padding)
        x_norm = pallas_layernorm(x, lyr["ln_g"], lyr["ln_b"])
        x = mha_block(lyr["mha"], x_norm, enc_out, enc_out, src_key_pad, n_heads,
                      causal=False, self_attn=False, residual=x)
        # feed-forward
        x_norm = pallas_layernorm(x, lyr["ln_g"], lyr["ln_b"])
        x = feedforward_block(lyr["ff"], x_norm, residual=x)
    x = pallas_layernorm(x, p["dec_ln_g"], p["dec_ln_b"])
    out = pallas_linear(x.reshape(-1, D), p["fc_out_w"], p["fc_out_b"])
    return out.reshape(B, S, -1)


@functools.partial(jax.jit, static_argnums=(3, 4, 5))
def transformer_fwd(p, src, trg, pad_idx, d_model, n_heads):
    # Only key-position padding (+ causal for the decoder) is needed; the
    # (B, H, Sq, Sk) broadcast masks of the reference are rebuilt in-kernel.
    src_key_pad = (src == pad_idx).astype(jnp.int32)[:, None, :]   # (B,1,Ss)
    trg_key_pad = (trg == pad_idx).astype(jnp.int32)[:, None, :]   # (B,1,St)
    enc_out = encoder_fwd(p, src, src_key_pad, d_model, n_heads)
    out = decoder_fwd(p, trg, enc_out, trg_key_pad, src_key_pad, d_model, n_heads)
    # atten_map_save=False in the reference forward -> empty attention lists.
    return out, [], [], []


# ----------------------------------------------------------------------------
# Deterministic parameter init (xavier_uniform for >1-D weights, zero biases)
# ----------------------------------------------------------------------------
def _xavier(key, fan_in, fan_out):
    a = math.sqrt(6.0 / (fan_in + fan_out))
    return jax.random.uniform(key, (fan_in, fan_out), jnp.float32, -a, a)


def init_params(key, vocab_size, max_len, d_model, n_heads, n_layers, d_ff):
    n_keys = 4 + 2 * n_layers * 6
    keys = iter(jax.random.split(key, n_keys))
    wdt = jnp.bfloat16  # weight storage dtype for the MXU matmuls

    def mha_params():
        wq = _xavier(next(keys), d_model, d_model)
        wk = _xavier(next(keys), d_model, d_model)
        wv = _xavier(next(keys), d_model, d_model)
        wo = _xavier(next(keys), d_model, d_model)
        return dict(
            wqkv=jnp.concatenate([wq, wk, wv], axis=1).astype(wdt),
            bqkv=jnp.zeros((3 * d_model,), jnp.float32),
            wo=wo.astype(wdt),
            bo=jnp.zeros((d_model,), jnp.float32),
        )

    def ff_params():
        return dict(
            w1=_xavier(next(keys), d_model, d_ff).astype(wdt),
            b1=jnp.zeros((d_ff,), jnp.float32),
            w2=_xavier(next(keys), d_ff, d_model).astype(wdt),
            b2=jnp.zeros((d_model,), jnp.float32),
        )

    def layer_params():
        # One LN (and, for the decoder, one MHA) per layer — as in the reference.
        return dict(
            mha=mha_params(),
            ff=ff_params(),
            ln_g=jnp.ones((d_model,), jnp.float32),
            ln_b=jnp.zeros((d_model,), jnp.float32),
        )

    p = dict(
        emb=_xavier(next(keys), vocab_size, d_model),      # shared input embedding
        pos_emb_enc=_xavier(next(keys), max_len, d_model),
        pos_emb_dec=_xavier(next(keys), max_len, d_model),
        enc_layers=[layer_params() for _ in range(n_layers)],
        dec_layers=[layer_params() for _ in range(n_layers)],
        enc_ln_g=jnp.ones((d_model,), jnp.float32),
        enc_ln_b=jnp.zeros((d_model,), jnp.float32),
        dec_ln_g=jnp.ones((d_model,), jnp.float32),
        dec_ln_b=jnp.zeros((d_model,), jnp.float32),
        fc_out_w=_xavier(next(keys), d_model, vocab_size).astype(wdt),
        fc_out_b=jnp.zeros((vocab_size,), jnp.float32),
    )
    return p


# ----------------------------------------------------------------------------
if __name__ == "__main__":
    vocab_size = 64
    max_len = 16
    d_model = 32
    n_heads = 4
    n_layers = 2
    d_ff = 64
    drop_p = 0.1   # TODO(synk): dropout is identity (inference semantics)
    pad_idx = 0

    B, S = 2, 8
    key = jax.random.PRNGKey(0)
    k_p, k_src, k_trg = jax.random.split(key, 3)

    params = init_params(k_p, vocab_size, max_len, d_model, n_heads, n_layers, d_ff)

    src = jax.random.randint(k_src, (B, S), 1, vocab_size, dtype=jnp.int32)
    trg = jax.random.randint(k_trg, (B, S), 1, vocab_size, dtype=jnp.int32)
    # add some padding tokens so the masks are non-trivial
    src = src.at[:, -2:].set(pad_idx)
    trg = trg.at[:, -1:].set(pad_idx)

    out, atten_encs, atten_decs, atten_enc_decs = transformer_fwd(
        params, src, trg, pad_idx, d_model, n_heads
    )
    out = jax.block_until_ready(out)
    assert out.shape == (B, S, vocab_size)
    assert bool(jnp.all(jnp.isfinite(out)))
    print("KERNEL_OK")
</pallas_src>

<mosaic_0001>
module attributes {stable_mosaic.version = 11 : i64} {
  func.func @_layernorm_kernel(%arg0: i32, %arg1: memref<16x32xf32, #tpu.memory_space<vmem>>, %arg2: memref<1x32xf32, #tpu.memory_space<vmem>>, %arg3: memref<1x32xf32, #tpu.memory_space<vmem>>, %arg4: memref<16x32xf32, #tpu.memory_space<vmem>>) attributes {dimension_semantics = [#tpu.dimension_semantics<parallel>], iteration_bounds = array<i64: 1>, scalar_prefetch = 0 : i64, scratch_operands = 0 : i64, tpu.core_type = #tpu.core_type<tc>, window_params = [{transform_indices = @transform_0, window_bounds = array<i64: 16, 32>}, {pipeline_mode = #tpu.pipeline_mode<synchronous>, transform_indices = @transform_1, window_bounds = array<i64: 1, 32>}, {pipeline_mode = #tpu.pipeline_mode<synchronous>, transform_indices = @transform_2, window_bounds = array<i64: 1, 32>}, {transform_indices = @transform_3, window_bounds = array<i64: 16, 32>}]} {
    %c0 = arith.constant 0 : index
    %c0_0 = arith.constant 0 : index
    %0 = vector.load %arg1[%c0, %c0_0] : memref<16x32xf32, #tpu.memory_space<vmem>>, vector<16x32xf32>
    %cst = arith.constant dense<0.000000e+00> : vector<16xf32>
    %1 = vector.multi_reduction <add>, %0, %cst [1] : vector<16x32xf32> to vector<16xf32>
    %2 = vector.shape_cast %1 : vector<16xf32> to vector<16x1xf32>
    %cst_1 = arith.constant 3.200000e+01 : f32
    %3 = vector.broadcast %cst_1 : f32 to vector<16x1xf32>
    %4 = arith.divf %2, %3 : vector<16x1xf32>
    %5 = vector.broadcast %4 : vector<16x1xf32> to vector<16x32xf32>
    %6 = arith.subf %0, %5 : vector<16x32xf32>
    %7 = arith.mulf %6, %6 : vector<16x32xf32>
    %cst_2 = arith.constant dense<0.000000e+00> : vector<16xf32>
    %8 = vector.multi_reduction <add>, %7, %cst_2 [1] : vector<16x32xf32> to vector<16xf32>
    %9 = vector.shape_cast %8 : vector<16xf32> to vector<16x1xf32>
    %cst_3 = arith.constant 3.200000e+01 : f32
    %10 = vector.broadcast %cst_3 : f32 to vector<16x1xf32>
    %11 = arith.divf %9, %10 : vector<16x1xf32>
    %12 = vector.broadcast %4 : vector<16x1xf32> to vector<16x32xf32>
    %13 = arith.subf %0, %12 : vector<16x32xf32>
    %cst_4 = arith.constant 9.99999974E-6 : f32
    %14 = vector.broadcast %cst_4 : f32 to vector<16x1xf32>
    %15 = arith.addf %11, %14 : vector<16x1xf32>
    %16 = math.rsqrt %15 : vector<16x1xf32>
    %17 = vector.broadcast %16 : vector<16x1xf32> to vector<16x32xf32>
    %18 = arith.mulf %13, %17 : vector<16x32xf32>
    %c0_5 = arith.constant 0 : index
    %c0_6 = arith.constant 0 : index
    %19 = vector.load %arg2[%c0_5, %c0_6] : memref<1x32xf32, #tpu.memory_space<vmem>>, vector<1x32xf32>
    %20 = vector.broadcast %19 : vector<1x32xf32> to vector<16x32xf32>
    %21 = arith.mulf %18, %20 : vector<16x32xf32>
    %c0_7 = arith.constant 0 : index
    %c0_8 = arith.constant 0 : index
    %22 = vector.load %arg3[%c0_7, %c0_8] : memref<1x32xf32, #tpu.memory_space<vmem>>, vector<1x32xf32>
    %23 = vector.broadcast %22 : vector<1x32xf32> to vector<16x32xf32>
    %24 = arith.addf %21, %23 : vector<16x32xf32>
    %c0_9 = arith.constant 0 : index
    %c0_10 = arith.constant 0 : index
    %25 = vector.load %arg4[%c0_9, %c0_10] : memref<16x32xf32, #tpu.memory_space<vmem>>, vector<16x32xf32>
    tpu.vector_store %arg4[%c0_9, %c0_10], %24 {strides = array<i32>} : memref<16x32xf32, #tpu.memory_space<vmem>>, vector<16x32xf32>,
    return
  }
  func.func @transform_0(%arg0: i32) -> (i32, i32) {
    %c0_i32 = arith.constant 0 : i32
    %c0_i32_0 = arith.constant 0 : i32
    return %arg0, %c0_i32 : i32, i32
  }
  func.func @transform_1(%arg0: i32) -> (i32, i32) {
    %c0_i32 = arith.constant 0 : i32
    %c0_i32_0 = arith.constant 0 : i32
    %c0_i32_1 = arith.constant 0 : i32
    return %c0_i32, %c0_i32_0 : i32, i32
  }
  func.func @transform_2(%arg0: i32) -> (i32, i32) {
    %c0_i32 = arith.constant 0 : i32
    %c0_i32_0 = arith.constant 0 : i32
    %c0_i32_1 = arith.constant 0 : i32
    return %c0_i32, %c0_i32_0 : i32, i32
  }
  func.func @transform_3(%arg0: i32) -> (i32, i32) {
    %c0_i32 = arith.constant 0 : i32
    %c0_i32_0 = arith.constant 0 : i32
    return %arg0, %c0_i32 : i32, i32
  }
}

module attributes {stable_mosaic.version = 11 : i64} {
  func.func @_linear_kernel(%arg0: i32, %arg1: i32, %arg2: i32, %arg3: memref<16x32xf32, #tpu.memory_space<vmem>>, %arg4: memref<32x96xbf16, #tpu.memory_space<vmem>>, %arg5: memref<1x96xf32, #tpu.memory_space<vmem>>, %arg6: memref<16x96xf32, #tpu.memory_space<vmem>>, %arg7: memref<16x96xf32, #tpu.memory_space<vmem>>) attributes {dimension_semantics = [#tpu.dimension_semantics<parallel>, #tpu.dimension_semantics<parallel>, #tpu.dimension_semantics<arbitrary>], iteration_bounds = array<i64: 1, 1, 1>, scalar_prefetch = 0 : i64, scratch_operands = 1 : i64, tpu.core_type = #tpu.core_type<tc>, window_params = [{transform_indices = @transform_0, window_bounds = array<i64: 16, 32>}, {transform_indices = @transform_1, window_bounds = array<i64: 32, 96>}, {transform_indices = @transform_2, window_bounds = array<i64: 1, 96>}, {transform_indices = @transform_3, window_bounds = array<i64: 16, 96>}]} {
    %c0_i32 = arith.constant 0 : i32
    %0 = arith.cmpi eq, %arg2, %c0_i32 : i32
    %1 = arith.extui %0 : i1 to i32
    %c0_i32_0 = arith.constant 0 : i32
    %2 = arith.cmpi ne, %1, %c0_i32_0 : i32
    scf.if %2 {
      %cst_10 = arith.constant 0.000000e+00 : f32
      %13 = vector.broadcast %cst_10 : f32 to vector<16x96xf32>
      %c0_11 = arith.constant 0 : index
      %c0_12 = arith.constant 0 : index
      %14 = vector.load %arg7[%c0_11, %c0_12] : memref<16x96xf32, #tpu.memory_space<vmem>>, vector<16x96xf32>
      tpu.vector_store %arg7[%c0_11, %c0_12], %13 {strides = array<i32>} : memref<16x96xf32, #tpu.memory_space<vmem>>, vector<16x96xf32>,
    } else {
    }
    %c0 = arith.constant 0 : index
    %c0_1 = arith.constant 0 : index
    %3 = vector.load %arg7[%c0, %c0_1] : memref<16x96xf32, #tpu.memory_space<vmem>>, vector<16x96xf32>
    %c0_2 = arith.constant 0 : index
    %c0_3 = arith.constant 0 : index
    %4 = vector.load %arg3[%c0_2, %c0_3] : memref<16x32xf32, #tpu.memory_space<vmem>>, vector<16x32xf32>
    %5 = arith.truncf %4 : vector<16x32xf32> to vector<16x32xbf16>
    %c0_4 = arith.constant 0 : index
    %c0_5 = arith.constant 0 : index
    %6 = vector.load %arg4[%c0_4, %c0_5] : memref<32x96xbf16, #tpu.memory_space<vmem>>, vector<32x96xbf16>
    %cst = arith.constant dense<0.000000e+00> : vector<16x96xf32>
    %7 = tpu.matmul %5, %6, %cst {dimension_numbers = #tpu.dot_dimension_numbers<[1], [0], [0], [1], [0, 0, 1, 1], [], []>} : vector<16x32xbf16>, vector<32x96xbf16>, vector<16x96xf32> -> vector<16x96xf32>
    %8 = arith.addf %3, %7 : vector<16x96xf32>
    %c0_6 = arith.constant 0 : index
    %c0_7 = arith.constant 0 : index
    %9 = vector.load %arg7[%c0_6, %c0_7] : memref<16x96xf32, #tpu.memory_space<vmem>>, vector<16x96xf32>
    tpu.vector_store %arg7[%c0_6, %c0_7], %8 {strides = array<i32>} : memref<16x96xf32, #tpu.memory_space<vmem>>, vector<16x96xf32>,
    %c0_i32_8 = arith.constant 0 : i32
    %10 = arith.cmpi eq, %arg2, %c0_i32_8 : i32
    %11 = arith.extui %10 : i1 to i32
    %c0_i32_9 = arith.constant 0 : i32
    %12 = arith.cmpi ne, %11, %c0_i32_9 : i32
    scf.if %12 {
      %c0_10 = arith.constant 0 : index
      %c0_11 = arith.constant 0 : index
      %13 = vector.load %arg7[%c0_10, %c0_11] : memref<16x96xf32, #tpu.memory_space<vmem>>, vector<16x96xf32>
      %c0_12 = arith.constant 0 : index
      %c0_13 = arith.constant 0 : index
      %14 = vector.load %arg5[%c0_12, %c0_13] : memref<1x96xf32, #tpu.memory_space<vmem>>, vector<1x96xf32>
      %15 = vector.broadcast %14 : vector<1x96xf32> to vector<16x96xf32>
      %16 = arith.addf %13, %15 : vector<16x96xf32>
      %c0_14 = arith.constant 0 : index
      %c0_15 = arith.constant 0 : index
      %17 = vector.load %arg6[%c0_14, %c0_15] : memref<16x96xf32, #tpu.memory_space<vmem>>, vector<16x96xf32>
      tpu.vector_store %arg6[%c0_14, %c0_15], %16 {strides = array<i32>} : memref<16x96xf32, #tpu.memory_space<vmem>>, vector<16x96xf32>,
    } else {
    }
    return
  }
  func.func @transform_0(%arg0: i32, %arg1: i32, %arg2: i32) -> (i32, i32) {
    %c0_i32 = arith.constant 0 : i32
    return %arg0, %arg2 : i32, i32
  }
  func.func @transform_1(%arg0: i32, %arg1: i32, %arg2: i32) -> (i32, i32) {
    %c0_i32 = arith.constant 0 : i32
    return %arg2, %arg1 : i32, i32
  }
  func.func @transform_2(%arg0: i32, %arg1: i32, %arg2: i32) -> (i32, i32) {
    %c0_i32 = arith.constant 0 : i32
    %c0_i32_0 = arith.constant 0 : i32
    return %c0_i32, %arg1 : i32, i32
  }
  func.func @transform_3(%arg0: i32, %arg1: i32, %arg2: i32) -> (i32, i32) {
    %c0_i32 = arith.constant 0 : i32
    return %arg0, %arg1 : i32, i32
  }
}

module attributes {stable_mosaic.version = 11 : i64} {
  func.func @_attention_kernel(%arg0: i32, %arg1: memref<4x8x8xf32, #tpu.memory_space<vmem>>, %arg2: memref<4x8x8xf32, #tpu.memory_space<vmem>>, %arg3: memref<4x8x8xf32, #tpu.memory_space<vmem>>, %arg4: memref<1x1x8xi32, #tpu.memory_space<vmem>>, %arg5: memref<4x8x8xf32, #tpu.memory_space<vmem>>) attributes {dimension_semantics = [#tpu.dimension_semantics<parallel>], iteration_bounds = array<i64: 2>, scalar_prefetch = 0 : i64, scratch_operands = 0 : i64, tpu.core_type = #tpu.core_type<tc>, window_params = [{transform_indices = @transform_0, window_bounds = array<i64: 4, 8, 8>}, {transform_indices = @transform_1, window_bounds = array<i64: 4, 8, 8>}, {transform_indices = @transform_2, window_bounds = array<i64: 4, 8, 8>}, {transform_indices = @transform_3, window_bounds = array<i64: 1, 1, 8>}, {transform_indices = @transform_4, window_bounds = array<i64: 4, 8, 8>}]} {
    %c0 = arith.constant 0 : index
    %c0_0 = arith.constant 0 : index
    %c0_1 = arith.constant 0 : index
    %0 = vector.load %arg1[%c0, %c0_0, %c0_1] : memref<4x8x8xf32, #tpu.memory_space<vmem>>, vector<4x8x8xf32>
    %1 = arith.truncf %0 : vector<4x8x8xf32> to vector<4x8x8xbf16>
    %c0_2 = arith.constant 0 : index
    %c0_3 = arith.constant 0 : index
    %c0_4 = arith.constant 0 : index
    %2 = vector.load %arg2[%c0_2, %c0_3, %c0_4] : memref<4x8x8xf32, #tpu.memory_space<vmem>>, vector<4x8x8xf32>
    %3 = arith.truncf %2 : vector<4x8x8xf32> to vector<4x8x8xbf16>
    "tpu.trace_start"() <{level = 10 : i32, message = "hqd,hkd->hqk"}> : () -> ()
    %cst = arith.constant dense<0.000000e+00> : vector<4x8x8xf32>
    %4 = tpu.matmul %1, %3, %cst {dimension_numbers = #tpu.dot_dimension_numbers<[2], [2], [1], [1], [0, 0, 0, 1, 1, 1], [0], [0]>} : vector<4x8x8xbf16>, vector<4x8x8xbf16>, vector<4x8x8xf32> -> vector<4x8x8xf32>
    "tpu.trace_stop"() : () -> ()
    %cst_5 = arith.constant 0.353553385 : f32
    %5 = vector.broadcast %cst_5 : f32 to vector<4x8x8xf32>
    %6 = arith.mulf %4, %5 : vector<4x8x8xf32>
    %c0_6 = arith.constant 0 : index
    %c0_7 = arith.constant 0 : index
    %c0_8 = arith.constant 0 : index
    %7 = vector.load %arg4[%c0_6, %c0_7, %c0_8] : memref<1x1x8xi32, #tpu.memory_space<vmem>>, vector<1x1x8xi32>
    %8 = vector.shape_cast %7 : vector<1x1x8xi32> to vector<1x8xi32>
    %9 = vector.shape_cast %8 : vector<1x8xi32> to vector<1x1x8xi32>
    %10 = vector.shape_cast %9 : vector<1x1x8xi32> to vector<1x1x8xi32>
    %11 = vector.broadcast %10 : vector<1x1x8xi32> to vector<4x8x8xi32>
    %c0_i32 = arith.constant 0 : i32
    %12 = vector.broadcast %c0_i32 : i32 to vector<4x8x8xi32>
    %13 = arith.cmpi ne, %11, %12 : vector<4x8x8xi32>
    %14 = tpu.iota {dimensions = array<i32: 0>} : vector<8x8xi32>
    %15 = tpu.iota {dimensions = array<i32: 1>} : vector<8x8xi32>
    %16 = arith.cmpi sgt, %15, %14 : vector<8x8xi32>
    %17 = vector.shape_cast %16 : vector<8x8xi1> to vector<1x8x8xi1>
    %18 = vector.shape_cast %17 : vector<1x8x8xi1> to vector<1x8x8xi1>
    %19 = vector.broadcast %18 : vector<1x8x8xi1> to vector<4x8x8xi1>
    %20 = arith.ori %13, %19 : vector<4x8x8xi1>
    %cst_9 = arith.constant -1.000000e+10 : f32
    %21 = vector.broadcast %cst_9 : f32 to vector<4x8x8xf32>
    %22 = arith.select %20, %21, %6 : vector<4x8x8xi1>, vector<4x8x8xf32>
    %cst_10 = arith.constant dense<0xFF800000> : vector<4x8xf32>
    %23 = vector.multi_reduction <maximumf>, %22, %cst_10 [2] : vector<4x8x8xf32> to vector<4x8xf32>
    %24 = vector.shape_cast %23 : vector<4x8xf32> to vector<4x8x1xf32>
    %25 = vector.broadcast %24 : vector<4x8x1xf32> to vector<4x8x8xf32>
    %26 = arith.subf %22, %25 : vector<4x8x8xf32>
    %27 = math.exp %26 : vector<4x8x8xf32>
    %cst_11 = arith.constant dense<0.000000e+00> : vector<4x8xf32>
    %28 = vector.multi_reduction <add>, %27, %cst_11 [2] : vector<4x8x8xf32> to vector<4x8xf32>
    %29 = vector.shape_cast %28 : vector<4x8xf32> to vector<4x8x1xf32>
    %30 = tpu.reciprocal %29 {approx = true} : vector<4x8x1xf32> -> vector<4x8x1xf32>
    %31 = vector.broadcast %30 : vector<4x8x1xf32> to vector<4x8x8xf32>
    %32 = arith.mulf %27, %31 : vector<4x8x8xf32>
    %33 = arith.truncf %32 : vector<4x8x8xf32> to vector<4x8x8xbf16>
    %c0_12 = arith.constant 0 : index
    %c0_13 = arith.constant 0 : index
    %c0_14 = arith.constant 0 : index
    %34 = vector.load %arg3[%c0_12, %c0_13, %c0_14] : memref<4x8x8xf32, #tpu.memory_space<vmem>>, vector<4x8x8xf32>
    %35 = arith.truncf %34 : vector<4x8x8xf32> to vector<4x8x8xbf16>
    "tpu.trace_start"() <{level = 10 : i32, message = "hqk,hkd->hqd"}> : () -> ()
    %cst_15 = arith.constant dense<0.000000e+00> : vector<4x8x8xf32>
    %36 = tpu.matmul %33, %35, %cst_15 {dimension_numbers = #tpu.dot_dimension_numbers<[2], [1], [1], [2], [0, 0, 0, 1, 1, 2], [0], [0]>} : vector<4x8x8xbf16>, vector<4x8x8xbf16>, vector<4x8x8xf32> -> vector<4x8x8xf32>
    "tpu.trace_stop"() : () -> ()
    %c0_16 = arith.constant 0 : index
    %c0_17 = arith.constant 0 : index
    %c0_18 = arith.constant 0 : index
    %37 = vector.load %arg5[%c0_16, %c0_17, %c0_18] : memref<4x8x8xf32, #tpu.memory_space<vmem>>, vector<4x8x8xf32>
    tpu.vector_store %arg5[%c0_16, %c0_17, %c0_18], %36 {strides = array<i32>} : memref<4x8x8xf32, #tpu.memory_space<vmem>>, vector<4x8x8xf32>,
    return
  }
  func.func @transform_0(%arg0: i32) -> (i32, i32, i32) {
    %c0_i32 = arith.constant 0 : i32
    %c0_i32_0 = arith.constant 0 : i32
    %c0_i32_1 = arith.constant 0 : i32
    return %arg0, %c0_i32, %c0_i32_0 : i32, i32, i32
  }
  func.func @transform_1(%arg0: i32) -> (i32, i32, i32) {
    %c0_i32 = arith.constant 0 : i32
    %c0_i32_0 = arith.constant 0 : i32
    %c0_i32_1 = arith.constant 0 : i32
    return %arg0, %c0_i32, %c0_i32_0 : i32, i32, i32
  }
  func.func @transform_2(%arg0: i32) -> (i32, i32, i32) {
    %c0_i32 = arith.constant 0 : i32
    %c0_i32_0 = arith.constant 0 : i32
    %c0_i32_1 = arith.constant 0 : i32
    return %arg0, %c0_i32, %c0_i32_0 : i32, i32, i32
  }
  func.func @transform_3(%arg0: i32) -> (i32, i32, i32) {
    %c0_i32 = arith.constant 0 : i32
    %c0_i32_0 = arith.constant 0 : i32
    %c0_i32_1 = arith.constant 0 : i32
    return %arg0, %c0_i32, %c0_i32_0 : i32, i32, i32
  }
  func.func @transform_4(%arg0: i32) -> (i32, i32, i32) {
    %c0_i32 = arith.constant 0 : i32
    %c0_i32_0 = arith.constant 0 : i32
    %c0_i32_1 = arith.constant 0 : i32
    return %arg0, %c0_i32, %c0_i32_0 : i32, i32, i32
  }
}

module attributes {stable_mosaic.version = 11 : i64} {
  func.func @_linear_kernel(%arg0: i32, %arg1: i32, %arg2: i32, %arg3: memref<16x32xf32, #tpu.memory_space<vmem>>, %arg4: memref<32x32xbf16, #tpu.memory_space<vmem>>, %arg5: memref<1x32xf32, #tpu.memory_space<vmem>>, %arg6: memref<16x32xf32, #tpu.memory_space<vmem>>, %arg7: memref<16x32xf32, #tpu.memory_space<vmem>>, %arg8: memref<16x32xf32, #tpu.memory_space<vmem>>) attributes {dimension_semantics = [#tpu.dimension_semantics<parallel>, #tpu.dimension_semantics<parallel>, #tpu.dimension_semantics<arbitrary>], iteration_bounds = array<i64: 1, 1, 1>, scalar_prefetch = 0 : i64, scratch_operands = 1 : i64, tpu.core_type = #tpu.core_type<tc>, window_params = [{transform_indices = @transform_0, window_bounds = array<i64: 16, 32>}, {transform_indices = @transform_1, window_bounds = array<i64: 32, 32>}, {transform_indices = @transform_2, window_bounds = array<i64: 1, 32>}, {transform_indices = @transform_3, window_bounds = array<i64: 16, 32>}, {transform_indices = @transform_4, window_bounds = array<i64: 16, 32>}]} {
    %c0_i32 = arith.constant 0 : i32
    %0 = arith.cmpi eq, %arg2, %c0_i32 : i32
    %1 = arith.extui %0 : i1 to i32
    %c0_i32_0 = arith.constant 0 : i32
    %2 = arith.cmpi ne, %1, %c0_i32_0 : i32
    scf.if %2 {
      %cst_10 = arith.constant 0.000000e+00 : f32
      %13 = vector.broadcast %cst_10 : f32 to vector<16x32xf32>
      %c0_11 = arith.constant 0 : index
      %c0_12 = arith.constant 0 : index
      %14 = vector.load %arg8[%c0_11, %c0_12] : memref<16x32xf32, #tpu.memory_space<vmem>>, vector<16x32xf32>
      tpu.vector_store %arg8[%c0_11, %c0_12], %13 {strides = array<i32>} : memref<16x32xf32, #tpu.memory_space<vmem>>, vector<16x32xf32>,
    } else {
    }
    %c0 = arith.constant 0 : index
    %c0_1 = arith.constant 0 : index
    %3 = vector.load %arg8[%c0, %c0_1] : memref<16x32xf32, #tpu.memory_space<vmem>>, vector<16x32xf32>
    %c0_2 = arith.constant 0 : index
    %c0_3 = arith.constant 0 : index
    %4 = vector.load %arg3[%c0_2, %c0_3] : memref<16x32xf32, #tpu.memory_space<vmem>>, vector<16x32xf32>
    %5 = arith.truncf %4 : vector<16x32xf32> to vector<16x32xbf16>
    %c0_4 = arith.constant 0 : index
    %c0_5 = arith.constant 0 : index
    %6 = vector.load %arg4[%c0_4, %c0_5] : memref<32x32xbf16, #tpu.memory_space<vmem>>, vector<32x32xbf16>
    %cst = arith.constant dense<0.000000e+00> : vector<16x32xf32>
    %7 = tpu.matmul %5, %6, %cst {dimension_numbers = #tpu.dot_dimension_numbers<[1], [0], [0], [1], [0, 0, 1, 1], [], []>} : vector<16x32xbf16>, vector<32x32xbf16>, vector<16x32xf32> -> vector<16x32xf32>
    %8 = arith.addf %3, %7 : vector<16x32xf32>
    %c0_6 = arith.constant 0 : index
    %c0_7 = arith.constant 0 : index
    %9 = vector.load %arg8[%c0_6, %c0_7] : memref<16x32xf32, #tpu.memory_space<vmem>>, vector<16x32xf32>
    tpu.vector_store %arg8[%c0_6, %c0_7], %8 {strides = array<i32>} : memref<16x32xf32, #tpu.memory_space<vmem>>, vector<16x32xf32>,
    %c0_i32_8 = arith.constant 0 : i32
    %10 = arith.cmpi eq, %arg2, %c0_i32_8 : i32
    %11 = arith.extui %10 : i1 to i32
    %c0_i32_9 = arith.constant 0 : i32
    %12 = arith.cmpi ne, %11, %c0_i32_9 : i32
    scf.if %12 {
      %c0_10 = arith.constant 0 : index
      %c0_11 = arith.constant 0 : index
      %13 = vector.load %arg8[%c0_10, %c0_11] : memref<16x32xf32, #tpu.memory_space<vmem>>, vector<16x32xf32>
      %c0_12 = arith.constant 0 : index
      %c0_13 = arith.constant 0 : index
      %14 = vector.load %arg5[%c0_12, %c0_13] : memref<1x32xf32, #tpu.memory_space<vmem>>, vector<1x32xf32>
      %15 = vector.broadcast %14 : vector<1x32xf32> to vector<16x32xf32>
      %16 = arith.addf %13, %15 : vector<16x32xf32>
      %c0_14 = arith.constant 0 : index
      %c0_15 = arith.constant 0 : index
      %17 = vector.load %arg6[%c0_14, %c0_15] : memref<16x32xf32, #tpu.memory_space<vmem>>, vector<16x32xf32>
      %18 = arith.addf %16, %17 : vector<16x32xf32>
      %c0_16 = arith.constant 0 : index
      %c0_17 = arith.constant 0 : index
      %19 = vector.load %arg7[%c0_16, %c0_17] : memref<16x32xf32, #tpu.memory_space<vmem>>, vector<16x32xf32>
      tpu.vector_store %arg7[%c0_16, %c0_17], %18 {strides = array<i32>} : memref<16x32xf32, #tpu.memory_space<vmem>>, vector<16x32xf32>,
    } else {
    }
    return
  }
  func.func @transform_0(%arg0: i32, %arg1: i32, %arg2: i32) -> (i32, i32) {
    %c0_i32 = arith.constant 0 : i32
    return %arg0, %arg2 : i32, i32
  }
  func.func @transform_1(%arg0: i32, %arg1: i32, %arg2: i32) -> (i32, i32) {
    %c0_i32 = arith.constant 0 : i32
    return %arg2, %arg1 : i32, i32
  }
  func.func @transform_2(%arg0: i32, %arg1: i32, %arg2: i32) -> (i32, i32) {
    %c0_i32 = arith.constant 0 : i32
    %c0_i32_0 = arith.constant 0 : i32
    return %c0_i32, %arg1 : i32, i32
  }
  func.func @transform_3(%arg0: i32, %arg1: i32, %arg2: i32) -> (i32, i32) {
    %c0_i32 = arith.constant 0 : i32
    return %arg0, %arg1 : i32, i32
  }
  func.func @transform_4(%arg0: i32, %arg1: i32, %arg2: i32) -> (i32, i32) {
    %c0_i32 = arith.constant 0 : i32
    return %arg0, %arg1 : i32, i32
  }
}

module attributes {stable_mosaic.version = 11 : i64} {
  func.func @_linear_kernel(%arg0: i32, %arg1: i32, %arg2: i32, %arg3: memref<16x32xf32, #tpu.memory_space<vmem>>, %arg4: memref<32x32xbf16, #tpu.memory_space<vmem>>, %arg5: memref<1x32xf32, #tpu.memory_space<vmem>>, %arg6: memref<16x32xf32, #tpu.memory_space<vmem>>, %arg7: memref<16x32xf32, #tpu.memory_space<vmem>>) attributes {dimension_semantics = [#tpu.dimension_semantics<parallel>, #tpu.dimension_semantics<parallel>, #tpu.dimension_semantics<arbitrary>], iteration_bounds = array<i64: 1, 1, 1>, scalar_prefetch = 0 : i64, scratch_operands = 1 : i64, tpu.core_type = #tpu.core_type<tc>, window_params = [{transform_indices = @transform_0, window_bounds = array<i64: 16, 32>}, {transform_indices = @transform_1, window_bounds = array<i64: 32, 32>}, {transform_indices = @transform_2, window_bounds = array<i64: 1, 32>}, {transform_indices = @transform_3, window_bounds = array<i64: 16, 32>}]} {
    %c0_i32 = arith.constant 0 : i32
    %0 = arith.cmpi eq, %arg2, %c0_i32 : i32
    %1 = arith.extui %0 : i1 to i32
    %c0_i32_0 = arith.constant 0 : i32
    %2 = arith.cmpi ne, %1, %c0_i32_0 : i32
    scf.if %2 {
      %cst_10 = arith.constant 0.000000e+00 : f32
      %13 = vector.broadcast %cst_10 : f32 to vector<16x32xf32>
      %c0_11 = arith.constant 0 : index
      %c0_12 = arith.constant 0 : index
      %14 = vector.load %arg7[%c0_11, %c0_12] : memref<16x32xf32, #tpu.memory_space<vmem>>, vector<16x32xf32>
      tpu.vector_store %arg7[%c0_11, %c0_12], %13 {strides = array<i32>} : memref<16x32xf32, #tpu.memory_space<vmem>>, vector<16x32xf32>,
    } else {
    }
    %c0 = arith.constant 0 : index
    %c0_1 = arith.constant 0 : index
    %3 = vector.load %arg7[%c0, %c0_1] : memref<16x32xf32, #tpu.memory_space<vmem>>, vector<16x32xf32>
    %c0_2 = arith.constant 0 : index
    %c0_3 = arith.constant 0 : index
    %4 = vector.load %arg3[%c0_2, %c0_3] : memref<16x32xf32, #tpu.memory_space<vmem>>, vector<16x32xf32>
    %5 = arith.truncf %4 : vector<16x32xf32> to vector<16x32xbf16>
    %c0_4 = arith.constant 0 : index
    %c0_5 = arith.constant 0 : index
    %6 = vector.load %arg4[%c0_4, %c0_5] : memref<32x32xbf16, #tpu.memory_space<vmem>>, vector<32x32xbf16>
    %cst = arith.constant dense<0.000000e+00> : vector<16x32xf32>
    %7 = tpu.matmul %5, %6, %cst {dimension_numbers = #tpu.dot_dimension_numbers<[1], [0], [0], [1], [0, 0, 1, 1], [], []>} : vector<16x32xbf16>, vector<32x32xbf16>, vector<16x32xf32> -> vector<16x32xf32>
    %8 = arith.addf %3, %7 : vector<16x32xf32>
    %c0_6 = arith.constant 0 : index
    %c0_7 = arith.constant 0 : index
    %9 = vector.load %arg7[%c0_6, %c0_7] : memref<16x32xf32, #tpu.memory_space<vmem>>, vector<16x32xf32>
    tpu.vector_store %arg7[%c0_6, %c0_7], %8 {strides = array<i32>} : memref<16x32xf32, #tpu.memory_space<vmem>>, vector<16x32xf32>,
    %c0_i32_8 = arith.constant 0 : i32
    %10 = arith.cmpi eq, %arg2, %c0_i32_8 : i32
    %11 = arith.extui %10 : i1 to i32
    %c0_i32_9 = arith.constant 0 : i32
    %12 = arith.cmpi ne, %11, %c0_i32_9 : i32
    scf.if %12 {
      %c0_10 = arith.constant 0 : index
      %c0_11 = arith.constant 0 : index
      %13 = vector.load %arg7[%c0_10, %c0_11] : memref<16x32xf32, #tpu.memory_space<vmem>>, vector<16x32xf32>
      %c0_12 = arith.constant 0 : index
      %c0_13 = arith.constant 0 : index
      %14 = vector.load %arg5[%c0_12, %c0_13] : memref<1x32xf32, #tpu.memory_space<vmem>>, vector<1x32xf32>
      %15 = vector.broadcast %14 : vector<1x32xf32> to vector<16x32xf32>
      %16 = arith.addf %13, %15 : vector<16x32xf32>
      %c0_14 = arith.constant 0 : index
      %c0_15 = arith.constant 0 : index
      %17 = vector.load %arg6[%c0_14, %c0_15] : memref<16x32xf32, #tpu.memory_space<vmem>>, vector<16x32xf32>
      tpu.vector_store %arg6[%c0_14, %c0_15], %16 {strides = array<i32>} : memref<16x32xf32, #tpu.memory_space<vmem>>, vector<16x32xf32>,
    } else {
    }
    return
  }
  func.func @transform_0(%arg0: i32, %arg1: i32, %arg2: i32) -> (i32, i32) {
    %c0_i32 = arith.constant 0 : i32
    return %arg0, %arg2 : i32, i32
  }
  func.func @transform_1(%arg0: i32, %arg1: i32, %arg2: i32) -> (i32, i32) {
    %c0_i32 = arith.constant 0 : i32
    return %arg2, %arg1 : i32, i32
  }
  func.func @transform_2(%arg0: i32, %arg1: i32, %arg2: i32) -> (i32, i32) {
    %c0_i32 = arith.constant 0 : i32
    %c0_i32_0 = arith.constant 0 : i32
    return %c0_i32, %arg1 : i32, i32
  }
  func.func @transform_3(%arg0: i32, %arg1: i32, %arg2: i32) -> (i32, i32) {
    %c0_i32 = arith.constant 0 : i32
    return %arg0, %arg1 : i32, i32
  }
}

module attributes {stable_mosaic.version = 11 : i64} {
  func.func @_linear_kernel(%arg0: i32, %arg1: i32, %arg2: i32, %arg3: memref<16x32xf32, #tpu.memory_space<vmem>>, %arg4: memref<32x64xbf16, #tpu.memory_space<vmem>>, %arg5: memref<1x64xf32, #tpu.memory_space<vmem>>, %arg6: memref<16x64xf32, #tpu.memory_space<vmem>>, %arg7: memref<16x64xf32, #tpu.memory_space<vmem>>) attributes {dimension_semantics = [#tpu.dimension_semantics<parallel>, #tpu.dimension_semantics<parallel>, #tpu.dimension_semantics<arbitrary>], iteration_bounds = array<i64: 1, 1, 1>, scalar_prefetch = 0 : i64, scratch_operands = 1 : i64, tpu.core_type = #tpu.core_type<tc>, window_params = [{transform_indices = @transform_0, window_bounds = array<i64: 16, 32>}, {transform_indices = @transform_1, window_bounds = array<i64: 32, 64>}, {transform_indices = @transform_2, window_bounds = array<i64: 1, 64>}, {transform_indices = @transform_3, window_bounds = array<i64: 16, 64>}]} {
    %c0_i32 = arith.constant 0 : i32
    %0 = arith.cmpi eq, %arg2, %c0_i32 : i32
    %1 = arith.extui %0 : i1 to i32
    %c0_i32_0 = arith.constant 0 : i32
    %2 = arith.cmpi ne, %1, %c0_i32_0 : i32
    scf.if %2 {
      %cst_10 = arith.constant 0.000000e+00 : f32
      %13 = vector.broadcast %cst_10 : f32 to vector<16x64xf32>
      %c0_11 = arith.constant 0 : index
      %c0_12 = arith.constant 0 : index
      %14 = vector.load %arg7[%c0_11, %c0_12] : memref<16x64xf32, #tpu.memory_space<vmem>>, vector<16x64xf32>
      tpu.vector_store %arg7[%c0_11, %c0_12], %13 {strides = array<i32>} : memref<16x64xf32, #tpu.memory_space<vmem>>, vector<16x64xf32>,
    } else {
    }
    %c0 = arith.constant 0 : index
    %c0_1 = arith.constant 0 : index
    %3 = vector.load %arg7[%c0, %c0_1] : memref<16x64xf32, #tpu.memory_space<vmem>>, vector<16x64xf32>
    %c0_2 = arith.constant 0 : index
    %c0_3 = arith.constant 0 : index
    %4 = vector.load %arg3[%c0_2, %c0_3] : memref<16x32xf32, #tpu.memory_space<vmem>>, vector<16x32xf32>
    %5 = arith.truncf %4 : vector<16x32xf32> to vector<16x32xbf16>
    %c0_4 = arith.constant 0 : index
    %c0_5 = arith.constant 0 : index
    %6 = vector.load %arg4[%c0_4, %c0_5] : memref<32x64xbf16, #tpu.memory_space<vmem>>, vector<32x64xbf16>
    %cst = arith.constant dense<0.000000e+00> : vector<16x64xf32>
    %7 = tpu.matmul %5, %6, %cst {dimension_numbers = #tpu.dot_dimension_numbers<[1], [0], [0], [1], [0, 0, 1, 1], [], []>} : vector<16x32xbf16>, vector<32x64xbf16>, vector<16x64xf32> -> vector<16x64xf32>
    %8 = arith.addf %3, %7 : vector<16x64xf32>
    %c0_6 = arith.constant 0 : index
    %c0_7 = arith.constant 0 : index
    %9 = vector.load %arg7[%c0_6, %c0_7] : memref<16x64xf32, #tpu.memory_space<vmem>>, vector<16x64xf32>
    tpu.vector_store %arg7[%c0_6, %c0_7], %8 {strides = array<i32>} : memref<16x64xf32, #tpu.memory_space<vmem>>, vector<16x64xf32>,
    %c0_i32_8 = arith.constant 0 : i32
    %10 = arith.cmpi eq, %arg2, %c0_i32_8 : i32
    %11 = arith.extui %10 : i1 to i32
    %c0_i32_9 = arith.constant 0 : i32
    %12 = arith.cmpi ne, %11, %c0_i32_9 : i32
    scf.if %12 {
      %c0_10 = arith.constant 0 : index
      %c0_11 = arith.constant 0 : index
      %13 = vector.load %arg7[%c0_10, %c0_11] : memref<16x64xf32, #tpu.memory_space<vmem>>, vector<16x64xf32>
      %c0_12 = arith.constant 0 : index
      %c0_13 = arith.constant 0 : index
      %14 = vector.load %arg5[%c0_12, %c0_13] : memref<1x64xf32, #tpu.memory_space<vmem>>, vector<1x64xf32>
      %15 = vector.broadcast %14 : vector<1x64xf32> to vector<16x64xf32>
      %16 = arith.addf %13, %15 : vector<16x64xf32>
      %cst_14 = arith.constant 0.000000e+00 : f32
      %17 = vector.broadcast %cst_14 : f32 to vector<16x64xf32>
      %18 = arith.maximumf %16, %17 : vector<16x64xf32>
      %c0_15 = arith.constant 0 : index
      %c0_16 = arith.constant 0 : index
      %19 = vector.load %arg6[%c0_15, %c0_16] : memref<16x64xf32, #tpu.memory_space<vmem>>, vector<16x64xf32>
      tpu.vector_store %arg6[%c0_15, %c0_16], %18 {strides = array<i32>} : memref<16x64xf32, #tpu.memory_space<vmem>>, vector<16x64xf32>,
    } else {
    }
    return
  }
  func.func @transform_0(%arg0: i32, %arg1: i32, %arg2: i32) -> (i32, i32) {
    %c0_i32 = arith.constant 0 : i32
    return %arg0, %arg2 : i32, i32
  }
  func.func @transform_1(%arg0: i32, %arg1: i32, %arg2: i32) -> (i32, i32) {
    %c0_i32 = arith.constant 0 : i32
    return %arg2, %arg1 : i32, i32
  }
  func.func @transform_2(%arg0: i32, %arg1: i32, %arg2: i32) -> (i32, i32) {
    %c0_i32 = arith.constant 0 : i32
    %c0_i32_0 = arith.constant 0 : i32
    return %c0_i32, %arg1 : i32, i32
  }
  func.func @transform_3(%arg0: i32, %arg1: i32, %arg2: i32) -> (i32, i32) {
    %c0_i32 = arith.constant 0 : i32
    return %arg0, %arg1 : i32, i32
  }
}

module attributes {stable_mosaic.version = 11 : i64} {
  func.func @_attention_kernel(%arg0: i32, %arg1: memref<4x8x8xf32, #tpu.memory_space<vmem>>, %arg2: memref<4x8x8xf32, #tpu.memory_space<vmem>>, %arg3: memref<4x8x8xf32, #tpu.memory_space<vmem>>, %arg4: memref<1x1x8xi32, #tpu.memory_space<vmem>>, %arg5: memref<4x8x8xf32, #tpu.memory_space<vmem>>) attributes {dimension_semantics = [#tpu.dimension_semantics<parallel>], iteration_bounds = array<i64: 2>, scalar_prefetch = 0 : i64, scratch_operands = 0 : i64, tpu.core_type = #tpu.core_type<tc>, window_params = [{transform_indices = @transform_0, window_bounds = array<i64: 4, 8, 8>}, {transform_indices = @transform_1, window_bounds = array<i64: 4, 8, 8>}, {transform_indices = @transform_2, window_bounds = array<i64: 4, 8, 8>}, {transform_indices = @transform_3, window_bounds = array<i64: 1, 1, 8>}, {transform_indices = @transform_4, window_bounds = array<i64: 4, 8, 8>}]} {
    %c0 = arith.constant 0 : index
    %c0_0 = arith.constant 0 : index
    %c0_1 = arith.constant 0 : index
    %0 = vector.load %arg1[%c0, %c0_0, %c0_1] : memref<4x8x8xf32, #tpu.memory_space<vmem>>, vector<4x8x8xf32>
    %1 = arith.truncf %0 : vector<4x8x8xf32> to vector<4x8x8xbf16>
    %c0_2 = arith.constant 0 : index
    %c0_3 = arith.constant 0 : index
    %c0_4 = arith.constant 0 : index
    %2 = vector.load %arg2[%c0_2, %c0_3, %c0_4] : memref<4x8x8xf32, #tpu.memory_space<vmem>>, vector<4x8x8xf32>
    %3 = arith.truncf %2 : vector<4x8x8xf32> to vector<4x8x8xbf16>
    "tpu.trace_start"() <{level = 10 : i32, message = "hqd,hkd->hqk"}> : () -> ()
    %cst = arith.constant dense<0.000000e+00> : vector<4x8x8xf32>
    %4 = tpu.matmul %1, %3, %cst {dimension_numbers = #tpu.dot_dimension_numbers<[2], [2], [1], [1], [0, 0, 0, 1, 1, 1], [0], [0]>} : vector<4x8x8xbf16>, vector<4x8x8xbf16>, vector<4x8x8xf32> -> vector<4x8x8xf32>
    "tpu.trace_stop"() : () -> ()
    %cst_5 = arith.constant 0.353553385 : f32
    %5 = vector.broadcast %cst_5 : f32 to vector<4x8x8xf32>
    %6 = arith.mulf %4, %5 : vector<4x8x8xf32>
    %c0_6 = arith.constant 0 : index
    %c0_7 = arith.constant 0 : index
    %c0_8 = arith.constant 0 : index
    %7 = vector.load %arg4[%c0_6, %c0_7, %c0_8] : memref<1x1x8xi32, #tpu.memory_space<vmem>>, vector<1x1x8xi32>
    %8 = vector.shape_cast %7 : vector<1x1x8xi32> to vector<1x8xi32>
    %9 = vector.shape_cast %8 : vector<1x8xi32> to vector<1x1x8xi32>
    %10 = vector.shape_cast %9 : vector<1x1x8xi32> to vector<1x1x8xi32>
    %11 = vector.broadcast %10 : vector<1x1x8xi32> to vector<4x8x8xi32>
    %c0_i32 = arith.constant 0 : i32
    %12 = vector.broadcast %c0_i32 : i32 to vector<4x8x8xi32>
    %13 = arith.cmpi ne, %11, %12 : vector<4x8x8xi32>
    %cst_9 = arith.constant -1.000000e+10 : f32
    %14 = vector.broadcast %cst_9 : f32 to vector<4x8x8xf32>
    %15 = arith.select %13, %14, %6 : vector<4x8x8xi1>, vector<4x8x8xf32>
    %cst_10 = arith.constant dense<0xFF800000> : vector<4x8xf32>
    %16 = vector.multi_reduction <maximumf>, %15, %cst_10 [2] : vector<4x8x8xf32> to vector<4x8xf32>
    %17 = vector.shape_cast %16 : vector<4x8xf32> to vector<4x8x1xf32>
    %18 = vector.broadcast %17 : vector<4x8x1xf32> to vector<4x8x8xf32>
    %19 = arith.subf %15, %18 : vector<4x8x8xf32>
    %20 = math.exp %19 : vector<4x8x8xf32>
    %cst_11 = arith.constant dense<0.000000e+00> : vector<4x8xf32>
    %21 = vector.multi_reduction <add>, %20, %cst_11 [2] : vector<4x8x8xf32> to vector<4x8xf32>
    %22 = vector.shape_cast %21 : vector<4x8xf32> to vector<4x8x1xf32>
    %23 = tpu.reciprocal %22 {approx = true} : vector<4x8x1xf32> -> vector<4x8x1xf32>
    %24 = vector.broadcast %23 : vector<4x8x1xf32> to vector<4x8x8xf32>
    %25 = arith.mulf %20, %24 : vector<4x8x8xf32>
    %26 = arith.truncf %25 : vector<4x8x8xf32> to vector<4x8x8xbf16>
    %c0_12 = arith.constant 0 : index
    %c0_13 = arith.constant 0 : index
    %c0_14 = arith.constant 0 : index
    %27 = vector.load %arg3[%c0_12, %c0_13, %c0_14] : memref<4x8x8xf32, #tpu.memory_space<vmem>>, vector<4x8x8xf32>
    %28 = arith.truncf %27 : vector<4x8x8xf32> to vector<4x8x8xbf16>
    "tpu.trace_start"() <{level = 10 : i32, message = "hqk,hkd->hqd"}> : () -> ()
    %cst_15 = arith.constant dense<0.000000e+00> : vector<4x8x8xf32>
    %29 = tpu.matmul %26, %28, %cst_15 {dimension_numbers = #tpu.dot_dimension_numbers<[2], [1], [1], [2], [0, 0, 0, 1, 1, 2], [0], [0]>} : vector<4x8x8xbf16>, vector<4x8x8xbf16>, vector<4x8x8xf32> -> vector<4x8x8xf32>
    "tpu.trace_stop"() : () -> ()
    %c0_16 = arith.constant 0 : index
    %c0_17 = arith.constant 0 : index
    %c0_18 = arith.constant 0 : index
    %30 = vector.load %arg5[%c0_16, %c0_17, %c0_18] : memref<4x8x8xf32, #tpu.memory_space<vmem>>, vector<4x8x8xf32>
    tpu.vector_store %arg5[%c0_16, %c0_17, %c0_18], %29 {strides = array<i32>} : memref<4x8x8xf32, #tpu.memory_space<vmem>>, vector<4x8x8xf32>,
    return
  }
  func.func @transform_0(%arg0: i32) -> (i32, i32, i32) {
    %c0_i32 = arith.constant 0 : i32
    %c0_i32_0 = arith.constant 0 : i32
    %c0_i32_1 = arith.constant 0 : i32
    return %arg0, %c0_i32, %c0_i32_0 : i32, i32, i32
  }
  func.func @transform_1(%arg0: i32) -> (i32, i32, i32) {
    %c0_i32 = arith.constant 0 : i32
    %c0_i32_0 = arith.constant 0 : i32
    %c0_i32_1 = arith.constant 0 : i32
    return %arg0, %c0_i32, %c0_i32_0 : i32, i32, i32
  }
  func.func @transform_2(%arg0: i32) -> (i32, i32, i32) {
    %c0_i32 = arith.constant 0 : i32
    %c0_i32_0 = arith.constant 0 : i32
    %c0_i32_1 = arith.constant 0 : i32
    return %arg0, %c0_i32, %c0_i32_0 : i32, i32, i32
  }
  func.func @transform_3(%arg0: i32) -> (i32, i32, i32) {
    %c0_i32 = arith.constant 0 : i32
    %c0_i32_0 = arith.constant 0 : i32
    %c0_i32_1 = arith.constant 0 : i32
    return %arg0, %c0_i32, %c0_i32_0 : i32, i32, i32
  }
  func.func @transform_4(%arg0: i32) -> (i32, i32, i32) {
    %c0_i32 = arith.constant 0 : i32
    %c0_i32_0 = arith.constant 0 : i32
    %c0_i32_1 = arith.constant 0 : i32
    return %arg0, %c0_i32, %c0_i32_0 : i32, i32, i32
  }
}

module attributes {stable_mosaic.version = 11 : i64} {
  func.func @_linear_kernel(%arg0: i32, %arg1: i32, %arg2: i32, %arg3: memref<16x64xf32, #tpu.memory_space<vmem>>, %arg4: memref<64x32xbf16, #tpu.memory_space<vmem>>, %arg5: memref<1x32xf32, #tpu.memory_space<vmem>>, %arg6: memref<16x32xf32, #tpu.memory_space<vmem>>, %arg7: memref<16x32xf32, #tpu.memory_space<vmem>>, %arg8: memref<16x32xf32, #tpu.memory_space<vmem>>) attributes {dimension_semantics = [#tpu.dimension_semantics<parallel>, #tpu.dimension_semantics<parallel>, #tpu.dimension_semantics<arbitrary>], iteration_bounds = array<i64: 1, 1, 1>, scalar_prefetch = 0 : i64, scratch_operands = 1 : i64, tpu.core_type = #tpu.core_type<tc>, window_params = [{transform_indices = @transform_0, window_bounds = array<i64: 16, 64>}, {transform_indices = @transform_1, window_bounds = array<i64: 64, 32>}, {transform_indices = @transform_2, window_bounds = array<i64: 1, 32>}, {transform_indices = @transform_3, window_bounds = array<i64: 16, 32>}, {transform_indices = @transform_4, window_bounds = array<i64: 16, 32>}]} {
    %c0_i32 = arith.constant 0 : i32
    %0 = arith.cmpi eq, %arg2, %c0_i32 : i32
    %1 = arith.extui %0 : i1 to i32
    %c0_i32_0 = arith.constant 0 : i32
    %2 = arith.cmpi ne, %1, %c0_i32_0 : i32
    scf.if %2 {
      %cst_10 = arith.constant 0.000000e+00 : f32
      %13 = vector.broadcast %cst_10 : f32 to vector<16x32xf32>
      %c0_11 = arith.constant 0 : index
      %c0_12 = arith.constant 0 : index
      %14 = vector.load %arg8[%c0_11, %c0_12] : memref<16x32xf32, #tpu.memory_space<vmem>>, vector<16x32xf32>
      tpu.vector_store %arg8[%c0_11, %c0_12], %13 {strides = array<i32>} : memref<16x32xf32, #tpu.memory_space<vmem>>, vector<16x32xf32>,
    } else {
    }
    %c0 = arith.constant 0 : index
    %c0_1 = arith.constant 0 : index
    %3 = vector.load %arg8[%c0, %c0_1] : memref<16x32xf32, #tpu.memory_space<vmem>>, vector<16x32xf32>
    %c0_2 = arith.constant 0 : index
    %c0_3 = arith.constant 0 : index
    %4 = vector.load %arg3[%c0_2, %c0_3] : memref<16x64xf32, #tpu.memory_space<vmem>>, vector<16x64xf32>
    %5 = arith.truncf %4 : vector<16x64xf32> to vector<16x64xbf16>
    %c0_4 = arith.constant 0 : index
    %c0_5 = arith.constant 0 : index
    %6 = vector.load %arg4[%c0_4, %c0_5] : memref<64x32xbf16, #tpu.memory_space<vmem>>, vector<64x32xbf16>
    %cst = arith.constant dense<0.000000e+00> : vector<16x32xf32>
    %7 = tpu.matmul %5, %6, %cst {dimension_numbers = #tpu.dot_dimension_numbers<[1], [0], [0], [1], [0, 0, 1, 1], [], []>} : vector<16x64xbf16>, vector<64x32xbf16>, vector<16x32xf32> -> vector<16x32xf32>
    %8 = arith.addf %3, %7 : vector<16x32xf32>
    %c0_6 = arith.constant 0 : index
    %c0_7 = arith.constant 0 : index
    %9 = vector.load %arg8[%c0_6, %c0_7] : memref<16x32xf32, #tpu.memory_space<vmem>>, vector<16x32xf32>
    tpu.vector_store %arg8[%c0_6, %c0_7], %8 {strides = array<i32>} : memref<16x32xf32, #tpu.memory_space<vmem>>, vector<16x32xf32>,
    %c0_i32_8 = arith.constant 0 : i32
    %10 = arith.cmpi eq, %arg2, %c0_i32_8 : i32
    %11 = arith.extui %10 : i1 to i32
    %c0_i32_9 = arith.constant 0 : i32
    %12 = arith.cmpi ne, %11, %c0_i32_9 : i32
    scf.if %12 {
      %c0_10 = arith.constant 0 : index
      %c0_11 = arith.constant 0 : index
      %13 = vector.load %arg8[%c0_10, %c0_11] : memref<16x32xf32, #tpu.memory_space<vmem>>, vector<16x32xf32>
      %c0_12 = arith.constant 0 : index
      %c0_13 = arith.constant 0 : index
      %14 = vector.load %arg5[%c0_12, %c0_13] : memref<1x32xf32, #tpu.memory_space<vmem>>, vector<1x32xf32>
      %15 = vector.broadcast %14 : vector<1x32xf32> to vector<16x32xf32>
      %16 = arith.addf %13, %15 : vector<16x32xf32>
      %c0_14 = arith.constant 0 : index
      %c0_15 = arith.constant 0 : index
      %17 = vector.load %arg6[%c0_14, %c0_15] : memref<16x32xf32, #tpu.memory_space<vmem>>, vector<16x32xf32>
      %18 = arith.addf %16, %17 : vector<16x32xf32>
      %c0_16 = arith.constant 0 : index
      %c0_17 = arith.constant 0 : index
      %19 = vector.load %arg7[%c0_16, %c0_17] : memref<16x32xf32, #tpu.memory_space<vmem>>, vector<16x32xf32>
      tpu.vector_store %arg7[%c0_16, %c0_17], %18 {strides = array<i32>} : memref<16x32xf32, #tpu.memory_space<vmem>>, vector<16x32xf32>,
    } else {
    }
    return
  }
  func.func @transform_0(%arg0: i32, %arg1: i32, %arg2: i32) -> (i32, i32) {
    %c0_i32 = arith.constant 0 : i32
    return %arg0, %arg2 : i32, i32
  }
  func.func @transform_1(%arg0: i32, %arg1: i32, %arg2: i32) -> (i32, i32) {
    %c0_i32 = arith.constant 0 : i32
    return %arg2, %arg1 : i32, i32
  }
  func.func @transform_2(%arg0: i32, %arg1: i32, %arg2: i32) -> (i32, i32) {
    %c0_i32 = arith.constant 0 : i32
    %c0_i32_0 = arith.constant 0 : i32
    return %c0_i32, %arg1 : i32, i32
  }
  func.func @transform_3(%arg0: i32, %arg1: i32, %arg2: i32) -> (i32, i32) {
    %c0_i32 = arith.constant 0 : i32
    return %arg0, %arg1 : i32, i32
  }
  func.func @transform_4(%arg0: i32, %arg1: i32, %arg2: i32) -> (i32, i32) {
    %c0_i32 = arith.constant 0 : i32
    return %arg0, %arg1 : i32, i32
  }
}

module attributes {stable_mosaic.version = 11 : i64} {
  func.func @_linear_kernel(%arg0: i32, %arg1: i32, %arg2: i32, %arg3: memref<16x32xf32, #tpu.memory_space<vmem>>, %arg4: memref<32x64xbf16, #tpu.memory_space<vmem>>, %arg5: memref<1x64xf32, #tpu.memory_space<vmem>>, %arg6: memref<16x64xf32, #tpu.memory_space<vmem>>, %arg7: memref<16x64xf32, #tpu.memory_space<vmem>>) attributes {dimension_semantics = [#tpu.dimension_semantics<parallel>, #tpu.dimension_semantics<parallel>, #tpu.dimension_semantics<arbitrary>], iteration_bounds = array<i64: 1, 1, 1>, scalar_prefetch = 0 : i64, scratch_operands = 1 : i64, tpu.core_type = #tpu.core_type<tc>, window_params = [{transform_indices = @transform_0, window_bounds = array<i64: 16, 32>}, {transform_indices = @transform_1, window_bounds = array<i64: 32, 64>}, {transform_indices = @transform_2, window_bounds = array<i64: 1, 64>}, {transform_indices = @transform_3, window_bounds = array<i64: 16, 64>}]} {
    %c0_i32 = arith.constant 0 : i32
    %0 = arith.cmpi eq, %arg2, %c0_i32 : i32
    %1 = arith.extui %0 : i1 to i32
    %c0_i32_0 = arith.constant 0 : i32
    %2 = arith.cmpi ne, %1, %c0_i32_0 : i32
    scf.if %2 {
      %cst_10 = arith.constant 0.000000e+00 : f32
      %13 = vector.broadcast %cst_10 : f32 to vector<16x64xf32>
      %c0_11 = arith.constant 0 : index
      %c0_12 = arith.constant 0 : index
      %14 = vector.load %arg7[%c0_11, %c0_12] : memref<16x64xf32, #tpu.memory_space<vmem>>, vector<16x64xf32>
      tpu.vector_store %arg7[%c0_11, %c0_12], %13 {strides = array<i32>} : memref<16x64xf32, #tpu.memory_space<vmem>>, vector<16x64xf32>,
    } else {
    }
    %c0 = arith.constant 0 : index
    %c0_1 = arith.constant 0 : index
    %3 = vector.load %arg7[%c0, %c0_1] : memref<16x64xf32, #tpu.memory_space<vmem>>, vector<16x64xf32>
    %c0_2 = arith.constant 0 : index
    %c0_3 = arith.constant 0 : index
    %4 = vector.load %arg3[%c0_2, %c0_3] : memref<16x32xf32, #tpu.memory_space<vmem>>, vector<16x32xf32>
    %5 = arith.truncf %4 : vector<16x32xf32> to vector<16x32xbf16>
    %c0_4 = arith.constant 0 : index
    %c0_5 = arith.constant 0 : index
    %6 = vector.load %arg4[%c0_4, %c0_5] : memref<32x64xbf16, #tpu.memory_space<vmem>>, vector<32x64xbf16>
    %cst = arith.constant dense<0.000000e+00> : vector<16x64xf32>
    %7 = tpu.matmul %5, %6, %cst {dimension_numbers = #tpu.dot_dimension_numbers<[1], [0], [0], [1], [0, 0, 1, 1], [], []>} : vector<16x32xbf16>, vector<32x64xbf16>, vector<16x64xf32> -> vector<16x64xf32>
    %8 = arith.addf %3, %7 : vector<16x64xf32>
    %c0_6 = arith.constant 0 : index
    %c0_7 = arith.constant 0 : index
    %9 = vector.load %arg7[%c0_6, %c0_7] : memref<16x64xf32, #tpu.memory_space<vmem>>, vector<16x64xf32>
    tpu.vector_store %arg7[%c0_6, %c0_7], %8 {strides = array<i32>} : memref<16x64xf32, #tpu.memory_space<vmem>>, vector<16x64xf32>,
    %c0_i32_8 = arith.constant 0 : i32
    %10 = arith.cmpi eq, %arg2, %c0_i32_8 : i32
    %11 = arith.extui %10 : i1 to i32
    %c0_i32_9 = arith.constant 0 : i32
    %12 = arith.cmpi ne, %11, %c0_i32_9 : i32
    scf.if %12 {
      %c0_10 = arith.constant 0 : index
      %c0_11 = arith.constant 0 : index
      %13 = vector.load %arg7[%c0_10, %c0_11] : memref<16x64xf32, #tpu.memory_space<vmem>>, vector<16x64xf32>
      %c0_12 = arith.constant 0 : index
      %c0_13 = arith.constant 0 : index
      %14 = vector.load %arg5[%c0_12, %c0_13] : memref<1x64xf32, #tpu.memory_space<vmem>>, vector<1x64xf32>
      %15 = vector.broadcast %14 : vector<1x64xf32> to vector<16x64xf32>
      %16 = arith.addf %13, %15 : vector<16x64xf32>
      %c0_14 = arith.constant 0 : index
      %c0_15 = arith.constant 0 : index
      %17 = vector.load %arg6[%c0_14, %c0_15] : memref<16x64xf32, #tpu.memory_space<vmem>>, vector<16x64xf32>
      tpu.vector_store %arg6[%c0_14, %c0_15], %16 {strides = array<i32>} : memref<16x64xf32, #tpu.memory_space<vmem>>, vector<16x64xf32>,
    } else {
    }
    return
  }
  func.func @transform_0(%arg0: i32, %arg1: i32, %arg2: i32) -> (i32, i32) {
    %c0_i32 = arith.constant 0 : i32
    return %arg0, %arg2 : i32, i32
  }
  func.func @transform_1(%arg0: i32, %arg1: i32, %arg2: i32) -> (i32, i32) {
    %c0_i32 = arith.constant 0 : i32
    return %arg2, %arg1 : i32, i32
  }
  func.func @transform_2(%arg0: i32, %arg1: i32, %arg2: i32) -> (i32, i32) {
    %c0_i32 = arith.constant 0 : i32
    %c0_i32_0 = arith.constant 0 : i32
    return %c0_i32, %arg1 : i32, i32
  }
  func.func @transform_3(%arg0: i32, %arg1: i32, %arg2: i32) -> (i32, i32) {
    %c0_i32 = arith.constant 0 : i32
    return %arg0, %arg1 : i32, i32
  }
}

module attributes {stable_mosaic.version = 11 : i64} {
  func.func @_linear_kernel(%arg0: i32, %arg1: i32, %arg2: i32, %arg3: memref<16x32xf32, #tpu.memory_space<vmem>>, %arg4: memref<32x64xbf16, #tpu.memory_space<vmem>>, %arg5: memref<1x64xf32, #tpu.memory_space<vmem>>, %arg6: memref<16x64xf32, #tpu.memory_space<vmem>>, %arg7: memref<16x64xf32, #tpu.memory_space<vmem>>) attributes {dimension_semantics = [#tpu.dimension_semantics<parallel>, #tpu.dimension_semantics<parallel>, #tpu.dimension_semantics<arbitrary>], iteration_bounds = array<i64: 1, 1, 1>, scalar_prefetch = 0 : i64, scratch_operands = 1 : i64, tpu.core_type = #tpu.core_type<tc>, window_params = [{transform_indices = @transform_0, window_bounds = array<i64: 16, 32>}, {transform_indices = @transform_1, window_bounds = array<i64: 32, 64>}, {transform_indices = @transform_2, window_bounds = array<i64: 1, 64>}, {transform_indices = @transform_3, window_bounds = array<i64: 16, 64>}]} {
    %c0_i32 = arith.constant 0 : i32
    %0 = arith.cmpi eq, %arg2, %c0_i32 : i32
    %1 = arith.extui %0 : i1 to i32
    %c0_i32_0 = arith.constant 0 : i32
    %2 = arith.cmpi ne, %1, %c0_i32_0 : i32
    scf.if %2 {
      %cst_10 = arith.constant 0.000000e+00 : f32
      %13 = vector.broadcast %cst_10 : f32 to vector<16x64xf32>
      %c0_11 = arith.constant 0 : index
      %c0_12 = arith.constant 0 : index
      %14 = vector.load %arg7[%c0_11, %c0_12] : memref<16x64xf32, #tpu.memory_space<vmem>>, vector<16x64xf32>
      tpu.vector_store %arg7[%c0_11, %c0_12], %13 {strides = array<i32>} : memref<16x64xf32, #tpu.memory_space<vmem>>, vector<16x64xf32>,
    } else {
    }
    %c0 = arith.constant 0 : index
    %c0_1 = arith.constant 0 : index
    %3 = vector.load %arg7[%c0, %c0_1] : memref<16x64xf32, #tpu.memory_space<vmem>>, vector<16x64xf32>
    %c0_2 = arith.constant 0 : index
    %c0_3 = arith.constant 0 : index
    %4 = vector.load %arg3[%c0_2, %c0_3] : memref<16x32xf32, #tpu.memory_space<vmem>>, vector<16x32xf32>
    %5 = arith.truncf %4 : vector<16x32xf32> to vector<16x32xbf16>
    %c0_4 = arith.constant 0 : index
    %c0_5 = arith.constant 0 : index
    %6 = vector.load %arg4[%c0_4, %c0_5] : memref<32x64xbf16, #tpu.memory_space<vmem>>, vector<32x64xbf16>
    %cst = arith.constant dense<0.000000e+00> : vector<16x64xf32>
    %7 = tpu.matmul %5, %6, %cst {dimension_numbers = #tpu.dot_dimension_numbers<[1], [0], [0], [1], [0, 0, 1, 1], [], []>} : vector<16x32xbf16>, vector<32x64xbf16>, vector<16x64xf32> -> vector<16x64xf32>
    %8 = arith.addf %3, %7 : vector<16x64xf32>
    %c0_6 = arith.constant 0 : index
    %c0_7 = arith.constant 0 : index
    %9 = vector.load %arg7[%c0_6, %c0_7] : memref<16x64xf32, #tpu.memory_space<vmem>>, vector<16x64xf32>
    tpu.vector_store %arg7[%c0_6, %c0_7], %8 {strides = array<i32>} : memref<16x64xf32, #tpu.memory_space<vmem>>, vector<16x64xf32>,
    %c0_i32_8 = arith.constant 0 : i32
    %10 = arith.cmpi eq, %arg2, %c0_i32_8 : i32
    %11 = arith.extui %10 : i1 to i32
    %c0_i32_9 = arith.constant 0 : i32
    %12 = arith.cmpi ne, %11, %c0_i32_9 : i32
    scf.if %12 {
      %c0_10 = arith.constant 0 : index
      %c0_11 = arith.constant 0 : index
      %13 = vector.load %arg7[%c0_10, %c0_11] : memref<16x64xf32, #tpu.memory_space<vmem>>, vector<16x64xf32>
      %c0_12 = arith.constant 0 : index
      %c0_13 = arith.constant 0 : index
      %14 = vector.load %arg5[%c0_12, %c0_13] : memref<1x64xf32, #tpu.memory_space<vmem>>, vector<1x64xf32>
      %15 = vector.broadcast %14 : vector<1x64xf32> to vector<16x64xf32>
      %16 = arith.addf %13, %15 : vector<16x64xf32>
      %c0_14 = arith.constant 0 : index
      %c0_15 = arith.constant 0 : index
      %17 = vector.load %arg6[%c0_14, %c0_15] : memref<16x64xf32, #tpu.memory_space<vmem>>, vector<16x64xf32>
      tpu.vector_store %arg6[%c0_14, %c0_15], %16 {strides = array<i32>} : memref<16x64xf32, #tpu.memory_space<vmem>>, vector<16x64xf32>,
    } else {
    }
    return
  }
  func.func @transform_0(%arg0: i32, %arg1: i32, %arg2: i32) -> (i32, i32) {
    %c0_i32 = arith.constant 0 : i32
    return %arg0, %arg2 : i32, i32
  }
  func.func @transform_1(%arg0: i32, %arg1: i32, %arg2: i32) -> (i32, i32) {
    %c0_i32 = arith.constant 0 : i32
    return %arg2, %arg1 : i32, i32
  }
  func.func @transform_2(%arg0: i32, %arg1: i32, %arg2: i32) -> (i32, i32) {
    %c0_i32 = arith.constant 0 : i32
    %c0_i32_0 = arith.constant 0 : i32
    return %c0_i32, %arg1 : i32, i32
  }
  func.func @transform_3(%arg0: i32, %arg1: i32, %arg2: i32) -> (i32, i32) {
    %c0_i32 = arith.constant 0 : i32
    return %arg0, %arg1 : i32, i32
  }
}

</mosaic_0001>

<llo_original>
// kernel: transformer_fwd.56
$region0: #{transformer_fwd.56}
  #allocation0 [shape = 'u32[]', space=smem, size = 0x4, offset = 0x4, fixed_abs, tag = 'smem constant byte address 0x4 - core index']
  #allocation1 [shape = 'u32[72,128]{1,0:T(1,128)}', space=vmem, size = 0x9000, scoped, tag = 'internal scratch']
  %s0 = inlined_call_operand.vmem [shape: f32[16,32], index: 0, kind: input, shape index: {}]
  %s1 = inlined_call_operand.vmem [shape: f32[1,32], index: 1, kind: input, shape index: {}]
  %s2 = inlined_call_operand.vmem [shape: f32[1,32], index: 2, kind: input, shape index: {}]
  %s3 = inlined_call_operand.vmem [shape: f32[16,32], index: 3, kind: output, shape index: {}]
  %s4 = sld [smem:[#allocation0]]
  $region22: #{transformer_fwd.56} parent=0
    _
  %s6 = ssub.s32 1, %s4
  %s7 = scalar_select 0, %s6, %s4
  // Predicated region
  $region2: #{transformer_fwd.56} parent=0 // pred_check
    _
  $region3: #{transformer_fwd.56} parent=0 // pred_check_branch
    %9 = sbr.rel (0) target = $region5
  $region4: #{transformer_fwd.56} parent=0 // pred_region
    _
  $region5: #{transformer_fwd.56} parent=0 // pred_fallthru
    _
  // Predicated region
  $region6: #{transformer_fwd.56} parent=0 // pred_check
    _
  $region7: #{transformer_fwd.56} parent=0 // pred_check_branch
    %11 = sbr.rel (0) target = $region9
  $region8: #{transformer_fwd.56} parent=0 // pred_region
    _
  $region9: #{transformer_fwd.56} parent=0 // pred_fallthru
    _
  // Predicated region
  $region10: #{transformer_fwd.56} parent=0 // pred_check
    _
  $region11: #{transformer_fwd.56} parent=0 // pred_check_branch
    %13 = sbr.rel (0) target = $region13
  $region12: #{transformer_fwd.56} parent=0 // pred_region
    _
  $region13: #{transformer_fwd.56} parent=0 // pred_fallthru
    _
  %v14 = vld [vmem:[%s0] sm:$0xff]
  %v15 = vld [vmem:[%s0 + $0x8] sm:$0xff]
  %vm16 = vcmask 261120
  %v17 = vsel %vm16, %v14, 0.0
  %18 = vadd.xlane.f32.xlu0 %v17
  %v19 = vpop.xlane.xlu0 %18
  %v20 = vsel %vm16, %v15, 0.0
  %21 = vadd.xlane.f32.xlu0 %v20
  %v22 = vpop.xlane.xlu0 %21
  %v23 = vrcp.pop 32.0
  %v24 = vmul.f32 32.0, %v23
  %v25 = vsub.f32 1.0, %v24
  %v26 = vmul.f32 %v23, %v25
  %v27 = vadd.f32 %v23, %v26
  %vm28 = vweird.f32 %v23
  %v29 = vsel %vm28, %v23, %v27
  %v30 = vmul.f32 %v19, %v29
  %v31 = vmul.f32 %v22, %v29
  %v32 = vsub.f32 %v14, %v30
  %v33 = vsub.f32 %v15, %v31
  %v34 = vmul.f32 %v32, %v32
  %v35 = vmul.f32 %v33, %v33
  %v36 = vsel %vm16, %v34, 0.0
  %37 = vadd.xlane.f32.xlu0 %v36
  %v38 = vpop.xlane.xlu0 %37
  %v39 = vsel %vm16, %v35, 0.0
  %40 = vadd.xlane.f32.xlu0 %v39
  %v41 = vpop.xlane.xlu0 %40
  %v42 = vmul.f32 %v38, %v29
  %v43 = vmul.f32 %v41, %v29
  %v44 = vadd.f32 %v42, 1e-05
  %v45 = vadd.f32 %v43, 1e-05
  %v46 = vrsqrt.pop %v44
  %v47 = vmul.f32 %v46, %v44
  %v48 = vmul.f32 %v47, %v46
  %v49 = vmul.f32 0.5, %v48
  %v50 = vsub.f32 1.5, %v49
  %v51 = vmul.f32 %v46, %v50
  %vm52 = vweird.f32 %v44
  %vm53 = vweird.f32 %v46
  %vm54 = vmor %vm52, %vm53
  %v55 = vsel %vm54, %v46, %v51
  %v56 = vrsqrt.pop %v45
  %v57 = vmul.f32 %v56, %v45
  %v58 = vmul.f32 %v57, %v56
  %v59 = vmul.f32 0.5, %v58
  %v60 = vsub.f32 1.5, %v59
  %v61 = vmul.f32 %v56, %v60
  %vm62 = vweird.f32 %v45
  %vm63 = vweird.f32 %v56
  %vm64 = vmor %vm62, %vm63
  %v65 = vsel %vm64, %v56, %v61
  %v66 = vmul.f32 %v32, %v55
  %v67 = vmul.f32 %v33, %v65
  %v68 = vld [vmem:[%s1] sm:$0x1]
  %v70 = vperm.slane %v68, 0
  %v72 = vmul.f32 %v66, %v70
  %v73 = vmul.f32 %v67, %v70
  %v74 = vld [vmem:[%s2] sm:$0x1]
  %v76 = vperm.slane %v74, 0
  %v78 = vadd.f32 %v72, %v76
  %v79 = vadd.f32 %v73, %v76
  %80 = vst.msk [vmem:[%s3] sm:$0xff] %vm16, %v78
  %81 = vst.msk [vmem:[%s3 + $0x8] sm:$0xff] %vm16, %v79
  // Predicated region
  $region14: #{transformer_fwd.56} parent=0 // pred_check
    _
  $region15: #{transformer_fwd.56} parent=0 // pred_check_branch
    %83 = sbr.rel (0) target = $region17
  $region16: #{transformer_fwd.56} parent=0 // pred_region
    _
  $region17: #{transformer_fwd.56} parent=0 // pred_fallthru
    _
  // Predicated region
  $region18: #{transformer_fwd.56} parent=0 // pred_check
    _
  $region19: #{transformer_fwd.56} parent=0 // pred_check_branch
    %85 = sbr.rel (0) target = $region21
  $region20: #{transformer_fwd.56} parent=0 // pred_region
    _
  $region21: #{transformer_fwd.56} parent=0 // pred_fallthru
    _

// kernel: transformer_fwd.57
$region0: #{transformer_fwd.57}
  #allocation0 [shape = 'u32[]', space=smem, size = 0x4, offset = 0x4, fixed_abs, tag = 'smem constant byte address 0x4 - core index']
  #allocation1 [shape = 'u32[72,128]{1,0:T(1,128)}', space=vmem, size = 0x9000, scoped, tag = 'internal scratch']
  #allocation2 [shape = 'f32[16,96]{1,0:T(8,128)}', space=vmem, size = 0x2000, scoped, tag = 'scratch operand']
  %s0 = inlined_call_operand.vmem [shape: f32[16,32], index: 0, kind: input, shape index: {}]
  %s1 = inlined_call_operand.vmem [shape: bf16[32,96], index: 1, kind: input, shape index: {}]
  %s2 = inlined_call_operand.vmem [shape: f32[1,96], index: 2, kind: input, shape index: {}]
  %s3 = inlined_call_operand.vmem [shape: f32[16,96], index: 3, kind: output, shape index: {}]
  %s4 = sld [smem:[#allocation0]]
  $region30: #{transformer_fwd.57} parent=0
    _
  %s6 = ssub.s32 1, %s4
  %s7 = scalar_select 0, %s6, %s4
  // Predicated region
  $region2: #{transformer_fwd.57} parent=0 // pred_check
    _
  $region3: #{transformer_fwd.57} parent=0 // pred_check_branch
    %9 = sbr.rel (0) target = $region5
  $region4: #{transformer_fwd.57} parent=0 // pred_region
    _
  $region5: #{transformer_fwd.57} parent=0 // pred_fallthru
    _
  // Predicated region
  $region6: #{transformer_fwd.57} parent=0 // pred_check
    _
  $region7: #{transformer_fwd.57} parent=0 // pred_check_branch
    %11 = sbr.rel (0) target = $region9
  $region8: #{transformer_fwd.57} parent=0 // pred_region
    _
  $region9: #{transformer_fwd.57} parent=0 // pred_fallthru
    _
  // Predicated region
  $region10: #{transformer_fwd.57} parent=0 // pred_check
    _
  $region11: #{transformer_fwd.57} parent=0 // pred_check_branch
    %13 = sbr.rel (0) target = $region13
  $region12: #{transformer_fwd.57} parent=0 // pred_region
    _
  $region13: #{transformer_fwd.57} parent=0 // pred_fallthru
    _
  %p15 = scmp.eq.s32.totalorder 0, 0
  // Predicated region
  $region14: #{transformer_fwd.57} parent=0 // pred_check
    %p16 = pneg %p15
  $region15: #{transformer_fwd.57} parent=0 // pred_check_branch
    %18 = sbr.rel (%p16) target = $region17
  $region16: #{transformer_fwd.57} parent=0 // pred_region
    %vm19 = vcmask 785408
    %20 = vst.msk [vmem:[#allocation2] sm:$0xff] %vm19, 0.0
    %21 = vst.msk [vmem:[#allocation2 + $0x8] sm:$0xff] %vm19, 0.0
  $region17: #{transformer_fwd.57} parent=0 // pred_fallthru
    _
  %v22 = vld [vmem:[#allocation2] sm:$0xff]
  %v23 = vld [vmem:[#allocation2 + $0x8] sm:$0xff]
  %v24 = vld [vmem:[%s0] sm:$0xff]
  %v25 = vld [vmem:[%s0 + $0x8] sm:$0xff]
  %v26 = vpack.c.bf16 %v25, %v24
  %v27 = vld [vmem:[%s1] sm:$0xf]
  %v28 = vld [vmem:[%s1 + $0x4] sm:$0xf]
  %v29 = vld [vmem:[%s1 + $0x8] sm:$0xf]
  %v30 = vld [vmem:[%s1 + $0xc] sm:$0xf]
  %v35 = vunpack.c.l.b16 %v27
  %v36 = vunpack.c.l.b16 %v28
  %v37 = vunpack.c.l.b16 %v29
  %v38 = vunpack.c.l.b16 %v30
  %v39 = vpack.c.b16 %v36, %v35
  %v40 = vpack.c.b16 %v38, %v37
  %vm43 = vcmask 261120
  %v45 = vsel %vm43, %v26, 0
  %47 = vmatpush.bf16.msra.mxu0 0
  %48 = vmatpush.bf16.msra.mxu0 0
  %49 = vmatpush.bf16.msra.mxu0 0
  %50 = vmatpush.bf16.msra.mxu0 0
  %51 = vmatpush.bf16.msra.mxu0 0
  %52 = vmatpush.bf16.msra.mxu0 0
  %53 = vmatpush.bf16.msra.mxu0 %v40
  %54 = vmatpush.bf16.msra.mxu0 %v39
  %55 = vmatmul.bf16.gmra.mxu0 %v45
  %v56 = vpop.f32.mrf.mxu0
  %v57 = vadd.f32 0.0, %v56
  %v58 = vpop.f32.mrf.mxu0
  %v59 = vadd.f32 0.0, %v58
  %60 = vdwg.mxu0
  %v61 = vadd.f32 %v22, %v57
  %v62 = vadd.f32 %v23, %v59
  %vm63 = vcmask 785408
  %64 = vst.msk [vmem:[#allocation2] sm:$0xff] %vm63, %v61
  %65 = vst.msk [vmem:[#allocation2 + $0x8] sm:$0xff] %vm63, %v62
  // Predicated region
  $region18: #{transformer_fwd.57} parent=0 // pred_check
    %p66 = pneg %p15
  $region19: #{transformer_fwd.57} parent=0 // pred_check_branch
    %68 = sbr.rel (%p66) target = $region21
  $region20: #{transformer_fwd.57} parent=0 // pred_region
    %v69 = vld [vmem:[#allocation2] sm:$0xff]
    %v70 = vld [vmem:[#allocation2 + $0x8] sm:$0xff]
    %v71 = vld [vmem:[%s2] sm:$0x1]
    %v73 = vperm.slane %v71, 0
    %v75 = vadd.f32 %v69, %v73
    %v76 = vadd.f32 %v70, %v73
    %77 = vst.msk [vmem:[%s3] sm:$0xff] %vm63, %v75
    %78 = vst.msk [vmem:[%s3 + $0x8] sm:$0xff] %vm63, %v76
  $region21: #{transformer_fwd.57} parent=0 // pred_fallthru
    _
  // Predicated region
  $region22: #{transformer_fwd.57} parent=0 // pred_check
    _
  $region23: #{transformer_fwd.57} parent=0 // pred_check_branch
    %80 = sbr.rel (0) target = $region25
  $region24: #{transformer_fwd.57} parent=0 // pred_region
    _
  $region25: #{transformer_fwd.57} parent=0 // pred_fallthru
    _
  // Predicated region
  $region26: #{transformer_fwd.57} parent=0 // pred_check
    _
  $region27: #{transformer_fwd.57} parent=0 // pred_check_branch
    %82 = sbr.rel (0) target = $region29
  $region28: #{transformer_fwd.57} parent=0 // pred_region
    _
  $region29: #{transformer_fwd.57} parent=0 // pred_fallthru
    _

// kernel: transformer_fwd.58
$region0: #{transformer_fwd.58}
  #allocation0 [shape = 'u32[]', space=smem, size = 0x4, offset = 0x4, fixed_abs, tag = 'smem constant byte address 0x4 - core index']
  #allocation1 [shape = 'u32[72,128]{1,0:T(1,128)}', space=vmem, size = 0x9000, scoped, tag = 'internal scratch']
  %s0 = inlined_call_operand.vmem [shape: f32[8,8,8], index: 0, kind: input, shape index: {}]
  %s1 = inlined_call_operand.vmem [shape: f32[8,8,8], index: 1, kind: input, shape index: {}]
  %s2 = inlined_call_operand.vmem [shape: f32[8,8,8], index: 2, kind: input, shape index: {}]
  %s3 = inlined_call_operand.vmem [shape: s32[2,1,8], index: 3, kind: input, shape index: {}]
  %s4 = inlined_call_operand.vmem [shape: f32[8,8,8], index: 4, kind: output, shape index: {}]
  %s5 = sld [smem:[#allocation0]]
  $region49: #{transformer_fwd.58} parent=0
    _
  %s7 = ssub.s32 1, %s5
  %s8 = scalar_select 0, %s7, %s5
  loop: start=0, step=1, limit=4
  $region2: #{transformer_fwd.58} parent=0 // loop_pre_header
    _
  $region3: #{transformer_fwd.58} parent=0 // loop_header
    %s10 = sphi 0, %s14
    %p11 = scmp.ge.s32.totalorder %s10, 4
    %s20 = sphi 0, %s22
    %s23 = sphi 0, %s20
    %s24 = sphi 0, %s23
    %s40 = sphi 0, %s24
    %s46 = sphi 0, %s48
    %s49 = sphi 0, %s46
    %s50 = sphi 0, %s49
    %s66 = sphi 0, %s50
    %s72 = sphi 0, %s74
    %s75 = sphi 0, %s72
    %s76 = sphi 0, %s75
    %s92 = sphi 0, %s76
    %s98 = sphi 0, %s100
    %s101 = sphi 0, %s98
    %s102 = sphi 0, %s101
    %s118 = sphi 0, %s102
    %s124 = sphi 0, %s126
    %s127 = sphi 0, %s124
    %s128 = sphi 0, %s127
    %s144 = sphi 0, %s128
  $region4: #{transformer_fwd.58} parent=0 // loop_header_branch
    %13 = sbr.rel (%p11) target = $region8
  $region5: #{transformer_fwd.58} parent=0 // loop_body
    %s15 = ssub.s32 %s10, 1
    %s16 = ssub.s32 %s10, 2
    %s17 = sadd.s32 %s10, 1
    %s18 = ssub.s32 %s10, %s17
    %p19 = scmp.eq.s32.totalorder %s18, 0
    %s21 = sadd.s32 %s20, 1
    %s22 = scalar_select %p19, %s20, %s21
    %p25 = pneg %p19
    %p26 = scmp.eq.s32.totalorder %s10, 1
    %p27 = por %p25, %p26
    %p28 = scmp.ne.s32.totalorder %s20, %s23
    %p29 = scmp.eq.s32.totalorder %s10, 0
    %p30 = por %p28, %p29
    %p31 = scmp.ne.s32.totalorder %s20, %s23
    %p32 = scmp.eq.s32.totalorder %s15, 1
    %p33 = por %p31, %p32
    %p34 = scmp.ne.s32.totalorder %s23, %s24
    %p35 = scmp.eq.s32.totalorder %s15, 0
    %p36 = por %p34, %p35
    %p37 = scmp.ne.s32.totalorder %s23, %s24
    %p38 = scmp.eq.s32.totalorder %s16, 1
    %p39 = por %p37, %p38
    %p41 = scmp.ne.s32.totalorder %s24, %s40
    %p42 = scmp.eq.s32.totalorder %s16, 0
    %p43 = por %p41, %p42
    %s44 = ssub.s32 %s10, %s17
    %p45 = scmp.eq.s32.totalorder %s44, 0
    %s47 = sadd.s32 %s46, 1
    %s48 = scalar_select %p45, %s46, %s47
    %p51 = pneg %p45
    %p52 = scmp.eq.s32.totalorder %s10, 1
    %p53 = por %p51, %p52
    %p54 = scmp.ne.s32.totalorder %s46, %s49
    %p55 = scmp.eq.s32.totalorder %s10, 0
    %p56 = por %p54, %p55
    %p57 = scmp.ne.s32.totalorder %s46, %s49
    %p58 = scmp.eq.s32.totalorder %s15, 1
    %p59 = por %p57, %p58
    %p60 = scmp.ne.s32.totalorder %s49, %s50
    %p61 = scmp.eq.s32.totalorder %s15, 0
    %p62 = por %p60, %p61
    %p63 = scmp.ne.s32.totalorder %s49, %s50
    %p64 = scmp.eq.s32.totalorder %s16, 1
    %p65 = por %p63, %p64
    %p67 = scmp.ne.s32.totalorder %s50, %s66
    %p68 = scmp.eq.s32.totalorder %s16, 0
    %p69 = por %p67, %p68
    %s70 = ssub.s32 %s10, %s17
    %p71 = scmp.eq.s32.totalorder %s70, 0
    %s73 = sadd.s32 %s72, 1
    %s74 = scalar_select %p71, %s72, %s73
    %p77 = pneg %p71
    %p78 = scmp.eq.s32.totalorder %s10, 1
    %p79 = por %p77, %p78
    %p80 = scmp.ne.s32.totalorder %s72, %s75
    %p81 = scmp.eq.s32.totalorder %s10, 0
    %p82 = por %p80, %p81
    %p83 = scmp.ne.s32.totalorder %s72, %s75
    %p84 = scmp.eq.s32.totalorder %s15, 1
    %p85 = por %p83, %p84
    %p86 = scmp.ne.s32.totalorder %s75, %s76
    %p87 = scmp.eq.s32.totalorder %s15, 0
    %p88 = por %p86, %p87
    %p89 = scmp.ne.s32.totalorder %s75, %s76
    %p90 = scmp.eq.s32.totalorder %s16, 1
    %p91 = por %p89, %p90
    %p93 = scmp.ne.s32.totalorder %s76, %s92
    %p94 = scmp.eq.s32.totalorder %s16, 0
    %p95 = por %p93, %p94
    %s96 = ssub.s32 %s10, %s17
    %p97 = scmp.eq.s32.totalorder %s96, 0
    %s99 = sadd.s32 %s98, 1
    %s100 = scalar_select %p97, %s98, %s99
    %p103 = pneg %p97
    %p104 = scmp.eq.s32.totalorder %s10, 1
    %p105 = por %p103, %p104
    %p106 = scmp.ne.s32.totalorder %s98, %s101
    %p107 = scmp.eq.s32.totalorder %s10, 0
    %p108 = por %p106, %p107
    %p109 = scmp.ne.s32.totalorder %s98, %s101
    %p110 = scmp.eq.s32.totalorder %s15, 1
    %p111 = por %p109, %p110
    %p112 = scmp.ne.s32.totalorder %s101, %s102
    %p113 = scmp.eq.s32.totalorder %s15, 0
    %p114 = por %p112, %p113
    %p115 = scmp.ne.s32.totalorder %s101, %s102
    %p116 = scmp.eq.s32.totalorder %s16, 1
    %p117 = por %p115, %p116
    %p119 = scmp.ne.s32.totalorder %s102, %s118
    %p120 = scmp.eq.s32.totalorder %s16, 0
    %p121 = por %p119, %p120
    %s122 = ssub.s32 %s10, %s17
    %p123 = scmp.eq.s32.totalorder %s122, 0
    %s125 = sadd.s32 %s124, 1
    %s126 = scalar_select %p123, %s124, %s125
    %p129 = pneg %p123
    %p130 = scmp.eq.s32.totalorder %s10, 1
    %p131 = por %p129, %p130
    %p132 = scmp.ne.s32.totalorder %s124, %s127
    %p133 = scmp.eq.s32.totalorder %s10, 0
    %p134 = por %p132, %p133
    %p135 = scmp.ne.s32.totalorder %s124, %s127
    %p136 = scmp.eq.s32.totalorder %s15, 1
    %p137 = por %p135, %p136
    %p138 = scmp.ne.s32.totalorder %s127, %s128
    %p139 = scmp.eq.s32.totalorder %s15, 0
    %p140 = por %p138, %p139
    %p141 = scmp.ne.s32.totalorder %s127, %s128
    %p142 = scmp.eq.s32.totalorder %s16, 1
    %p143 = por %p141, %p142
    %p145 = scmp.ne.s32.totalorder %s128, %s144
    %p146 = scmp.eq.s32.totalorder %s16, 0
    %p147 = por %p145, %p146
    %p148 = scmp.le.s32.totalorder 1, %s10
    %p149 = scmp.lt.s32.totalorder %s10, 3
    %p150 = pnand %p148, %p149
    %p151 = pneg %p150
    // Predicated region
    $region9: #{transformer_fwd.58} parent=5 // pred_check
      _
    $region10: #{transformer_fwd.58} parent=5 // pred_check_branch
      %153 = sbr.rel (%p150) target = $region12
    $region11: #{transformer_fwd.58} parent=5 // pred_region
      %s154 = ssub.s32 %s10, 1
    $region12: #{transformer_fwd.58} parent=5 // pred_fallthru
      _
    %p155 = scmp.lt.s32.totalorder %s10, 2
    // Predicated region
    $region13: #{transformer_fwd.58} parent=5 // pred_check
      %p156 = pneg %p155
    $region14: #{transformer_fwd.58} parent=5 // pred_check_branch
      %158 = sbr.rel (%p156) target = $region16
    $region15: #{transformer_fwd.58} parent=5 // pred_region
      // Predicated region
      $region17: #{transformer_fwd.58} parent=15 // pred_check
        %p159 = pneg %p30
      $region18: #{transformer_fwd.58} parent=15 // pred_check_branch
        %161 = sbr.rel (%p159) target = $region20
      $region19: #{transformer_fwd.58} parent=15 // pred_region
        %s162 = smul.u32 4, %s10
        %p163 = scmp.lt.s32.totalorder %s162, 7
        %s164 = scalar_select %p163, %s162, 7
        %s165 = smul.addr %s164, 8
        %s166 = scalar_lea.vmem %s0, %s165
        %s167 = smul.u32 4, %s10
      $region20: #{transformer_fwd.58} parent=15 // pred_fallthru
        _
      // Predicated region
      $region21: #{transformer_fwd.58} parent=15 // pred_check
        %p168 = pneg %p56
      $region22: #{transformer_fwd.58} parent=15 // pred_check_branch
        %170 = sbr.rel (%p168) target = $region24
      $region23: #{transformer_fwd.58} parent=15 // pred_region
        %s171 = smul.u32 4, %s10
        %p172 = scmp.lt.s32.totalorder %s171, 7
        %s173 = scalar_select %p172, %s171, 7
        %s174 = smul.addr %s173, 8
        %s175 = scalar_lea.vmem %s1, %s174
        %s176 = smul.u32 4, %s10
      $region24: #{transformer_fwd.58} parent=15 // pred_fallthru
        _
      // Predicated region
      $region25: #{transformer_fwd.58} parent=15 // pred_check
        %p177 = pneg %p82
      $region26: #{transformer_fwd.58} parent=15 // pred_check_branch
        %179 = sbr.rel (%p177) target = $region28
      $region27: #{transformer_fwd.58} parent=15 // pred_region
        %s180 = smul.u32 4, %s10
        %p181 = scmp.lt.s32.totalorder %s180, 7
        %s182 = scalar_select %p181, %s180, 7
        %s183 = smul.addr %s182, 8
        %s184 = scalar_lea.vmem %s2, %s183
        %s185 = smul.u32 4, %s10
      $region28: #{transformer_fwd.58} parent=15 // pred_fallthru
        _
      // Predicated region
      $region29: #{transformer_fwd.58} parent=15 // pred_check
        %p186 = pneg %p108
      $region30: #{transformer_fwd.58} parent=15 // pred_check_branch
        %188 = sbr.rel (%p186) target = $region32
      $region31: #{transformer_fwd.58} parent=15 // pred_region
        %p189 = scmp.lt.s32.totalorder %s10, 1
        %s190 = scalar_select %p189, %s10, 1
        %s191 = scalar_lea.vmem %s3, %s190
      $region32: #{transformer_fwd.58} parent=15 // pred_fallthru
        _
    $region16: #{transformer_fwd.58} parent=5 // pred_fallthru
      _
    %p192 = scmp.le.s32.totalorder 1, %s10
    %p193 = scmp.lt.s32.totalorder %s10, 3
    %p194 = pnand %p192, %p193
    %p195 = pneg %p194
    // Predicated region
    $region33: #{transformer_fwd.58} parent=5 // pred_check
      _
    $region34: #{transformer_fwd.58} parent=5 // pred_check_branch
      %197 = sbr.rel (%p194) target = $region36
    $region35: #{transformer_fwd.58} parent=5 // pred_region
      %s198 = ssub.s32 %s10, 1
      %s199 = smul.u32 4, %s15
      %p200 = scmp.lt.s32.totalorder %s199, 7
      %s201 = scalar_select %p200, %s199, 7
      %s202 = smul.addr %s201, 8
      %s203 = scalar_lea.vmem %s0, %s202
      %p204 = pneg %p36
      %p205 = pneg %p33
      %s206 = smul.u32 4, %s15
      %p207 = scmp.lt.s32.totalorder %s206, 7
      %s208 = scalar_select %p207, %s206, 7
      %s209 = smul.addr %s208, 8
      %s210 = scalar_lea.vmem %s1, %s209
      %p211 = pneg %p62
      %p212 = pneg %p59
      %s213 = smul.u32 4, %s15
      %p214 = scmp.lt.s32.totalorder %s213, 7
      %s215 = scalar_select %p214, %s213, 7
      %s216 = smul.addr %s215, 8
      %s217 = scalar_lea.vmem %s2, %s216
      %p218 = pneg %p88
      %p219 = pneg %p85
      %p220 = scmp.lt.s32.totalorder %s15, 1
      %s221 = scalar_select %p220, %s15, 1
      %s222 = scalar_lea.vmem %s3, %s221
      %p223 = pneg %p114
      %p224 = pneg %p111
      %p225 = pneg %p140
      %p226 = pneg %p137
      %s227 = smul.u32 4, %s15
      %p228 = scmp.lt.s32.totalorder %s227, 7
      %s229 = scalar_select %p228, %s227, 7
      %s230 = smul.addr %s229, 8
      %s231 = scalar_lea.vmem %s4, %s230
      %s232 = smul.u32 4, %s15
      %p233 = scmp.lt.s32.totalorder %s232, 7
      %s234 = scalar_select %p233, %s232, 7
      %s235 = smul.addr %s234, 8
      %s236 = scalar_lea.vmem %s0, %s235
      %s237 = smul.u32 4, %s15
      %s238 = smul.u32 4, %s15
      %p239 = scmp.lt.s32.totalorder %s238, 7
      %s240 = scalar_select %p239, %s238, 7
      %s241 = smul.addr %s240, 8
      %s242 = scalar_lea.vmem %s1, %s241
      %s243 = smul.u32 4, %s15
      %s244 = smul.u32 4, %s15
      %p245 = scmp.lt.s32.totalorder %s244, 7
      %s246 = scalar_select %p245, %s244, 7
      %s247 = smul.addr %s246, 8
      %s248 = scalar_lea.vmem %s2, %s247
      %s249 = smul.u32 4, %s15
      %p250 = scmp.lt.s32.totalorder %s15, 1
      %s251 = scalar_select %p250, %s15, 1
      %s252 = scalar_lea.vmem %s3, %s251
      %s253 = smul.u32 4, %s15
      %p254 = scmp.lt.s32.totalorder %s253, 7
      %s255 = scalar_select %p254, %s253, 7
      %s256 = smul.addr %s255, 8
      %s257 = scalar_lea.vmem %s4, %s256
      %s258 = smul.u32 4, %s15
      %v260 = vld [vmem:[%s236] sm:$0xff]
      %v261 = vld [vmem:[%s236 + $0x8] sm:$0xff]
      %v262 = vld [vmem:[%s236 + $0x10] sm:$0xff]
      %v263 = vld [vmem:[%s236 + $0x18] sm:$0xff]
      %v264 = vpack.c.bf16 %v260, %v260
      %v265 = vpack.c.bf16 %v261, %v261
      %v266 = vpack.c.bf16 %v262, %v262
      %v267 = vpack.c.bf16 %v263, %v263
      %v268 = vld [vmem:[%s242] sm:$0xff]
      %v269 = vld [vmem:[%s242 + $0x8] sm:$0xff]
      %v270 = vld [vmem:[%s242 + $0x10] sm:$0xff]
      %v271 = vld [vmem:[%s242 + $0x18] sm:$0xff]
      %v272 = vpack.c.bf16 %v268, %v268
      %v273 = vpack.c.bf16 %v269, %v269
      %v274 = vpack.c.bf16 %v270, %v270
      %v275 = vpack.c.bf16 %v271, %v271
      %vm276 = vcmask 64512
      %v278 = vsel %vm276, %v264, 0
      %v281 = vsel %vm276, %v272, 0
      %283 = vmatpush.bf16.xpose.msra.mxu0 0
      %284 = vmatpush.bf16.xpose.msra.mxu0 0
      %285 = vmatpush.bf16.xpose.msra.mxu0 0
      %286 = vmatpush.bf16.xpose.msra.mxu0 0
      %287 = vmatpush.bf16.xpose.msra.mxu0 0
      %288 = vmatpush.bf16.xpose.msra.mxu0 0
      %289 = vmatpush.bf16.xpose.msra.mxu0 0
      %290 = vmatpush.bf16.xpose.msra.mxu0 %v281
      %291 = vmatmul.bf16.gmra.mxu0 %v278
      %v292 = vpop.f32.mrf.mxu0
      %v293 = vadd.f32 0.0, %v292
      %v294 = vpop.f32.mrf.mxu0
      %295 = vdwg.mxu0
      %v297 = vsel %vm276, %v265, 0
      %v300 = vsel %vm276, %v273, 0
      %302 = vmatpush.bf16.xpose.msra.mxu0 0
      %303 = vmatpush.bf16.xpose.msra.mxu0 0
      %304 = vmatpush.bf16.xpose.msra.mxu0 0
      %305 = vmatpush.bf16.xpose.msra.mxu0 0
      %306 = vmatpush.bf16.xpose.msra.mxu0 0
      %307 = vmatpush.bf16.xpose.msra.mxu0 0
      %308 = vmatpush.bf16.xpose.msra.mxu0 0
      %309 = vmatpush.bf16.xpose.msra.mxu0 %v300
      %310 = vmatmul.bf16.gmra.mxu0 %v297
      %v311 = vpop.f32.mrf.mxu0
      %v312 = vadd.f32 0.0, %v311
      %v313 = vpop.f32.mrf.mxu0
      %314 = vdwg.mxu0
      %v316 = vsel %vm276, %v266, 0
      %v319 = vsel %vm276, %v274, 0
      %321 = vmatpush.bf16.xpose.msra.mxu0 0
      %322 = vmatpush.bf16.xpose.msra.mxu0 0
      %323 = vmatpush.bf16.xpose.msra.mxu0 0
      %324 = vmatpush.bf16.xpose.msra.mxu0 0
      %325 = vmatpush.bf16.xpose.msra.mxu0 0
      %326 = vmatpush.bf16.xpose.msra.mxu0 0
      %327 = vmatpush.bf16.xpose.msra.mxu0 0
      %328 = vmatpush.bf16.xpose.msra.mxu0 %v319
      %329 = vmatmul.bf16.gmra.mxu0 %v316
      %v330 = vpop.f32.mrf.mxu0
      %v331 = vadd.f32 0.0, %v330
      %v332 = vpop.f32.mrf.mxu0
      %333 = vdwg.mxu0
      %v335 = vsel %vm276, %v267, 0
      %v338 = vsel %vm276, %v275, 0
      %340 = vmatpush.bf16.xpose.msra.mxu0 0
      %341 = vmatpush.bf16.xpose.msra.mxu0 0
      %342 = vmatpush.bf16.xpose.msra.mxu0 0
      %343 = vmatpush.bf16.xpose.msra.mxu0 0
      %344 = vmatpush.bf16.xpose.msra.mxu0 0
      %345 = vmatpush.bf16.xpose.msra.mxu0 0
      %346 = vmatpush.bf16.xpose.msra.mxu0 0
      %347 = vmatpush.bf16.xpose.msra.mxu0 %v338
      %348 = vmatmul.bf16.gmra.mxu0 %v335
      %v349 = vpop.f32.mrf.mxu0
      %v350 = vadd.f32 0.0, %v349
      %v351 = vpop.f32.mrf.mxu0
      %352 = vdwg.mxu0
      %v353 = vmul.f32 %v293, 0.35355338
      %v354 = vmul.f32 %v312, 0.35355338
      %v355 = vmul.f32 %v331, 0.35355338
      %v356 = vmul.f32 %v350, 0.35355338
      %v357 = vld [vmem:[%s252] sm:$0x1]
      %v358 = vperm.slane %v357, 0
      %vm359 = vcmp.ne.s32.totalorder %v358, 0
      %v360 = vlaneseq
      %v361 = vshrl.u32 %v360, 7
      %v362 = vlaneseq
      %v363 = vand.u32 %v362, 127
      %vm364 = vcmp.gt.s32.totalorder %v363, %v361
      %v365 = vsel %vm364, 1, 0
      %vm366 = vcmp.eq.s32.totalorder %v365, 1
      %vm367 = vmor %vm359, %vm366
      %v368 = vsel %vm367, -1e+10, %v353
      %v369 = vsel %vm367, -1e+10, %v354
      %v370 = vsel %vm367, -1e+10, %v355
      %v371 = vsel %vm367, -1e+10, %v356
      %v372 = vsel %vm276, %v368, -inf
      %373 = vmax.xlane.f32.xlu0 %v372
      %v374 = vpop.xlane.xlu0 %373
      %v375 = vsel %vm276, %v369, -inf
      %376 = vmax.xlane.f32.xlu0 %v375
      %v377 = vpop.xlane.xlu0 %376
      %v378 = vsel %vm276, %v370, -inf
      %379 = vmax.xlane.f32.xlu0 %v378
      %v380 = vpop.xlane.xlu0 %379
      %v381 = vsel %vm276, %v371, -inf
      %382 = vmax.xlane.f32.xlu0 %v381
      %v383 = vpop.xlane.xlu0 %382
      %v384 = vsub.f32 %v368, %v374
      %v385 = vsub.f32 %v369, %v377
      %v386 = vsub.f32 %v370, %v380
      %v387 = vsub.f32 %v371, %v383
      %v388 = vmul.f32 %v384, 1.442695
      %v389 = vpow.pop %v388
      %v390 = vmul.f32 %v385, 1.442695
      %v391 = vpow.pop %v390
      %v392 = vmul.f32 %v386, 1.442695
      %v393 = vpow.pop %v392
      %v394 = vmul.f32 %v387, 1.442695
      %v395 = vpow.pop %v394
      %v396 = vsel %vm276, %v389, 0.0
      %397 = vadd.xlane.f32.xlu0 %v396
      %v398 = vpop.xlane.xlu0 %397
      %v399 = vsel %vm276, %v391, 0.0
      %400 = vadd.xlane.f32.xlu0 %v399
      %v401 = vpop.xlane.xlu0 %400
      %v402 = vsel %vm276, %v393, 0.0
      %403 = vadd.xlane.f32.xlu0 %v402
      %v404 = vpop.xlane.xlu0 %403
      %v405 = vsel %vm276, %v395, 0.0
      %406 = vadd.xlane.f32.xlu0 %v405
      %v407 = vpop.xlane.xlu0 %406
      %v408 = vrcp.pop %v398
      %v409 = vrcp.pop %v401
      %v410 = vrcp.pop %v404
      %v411 = vrcp.pop %v407
      %v412 = vmul.f32 %v389, %v408
      %v413 = vmul.f32 %v391, %v409
      %v414 = vmul.f32 %v393, %v410
      %v415 = vmul.f32 %v395, %v411
      %v416 = vpack.c.bf16 %v412, %v412
      %v417 = vpack.c.bf16 %v413, %v413
      %v418 = vpack.c.bf16 %v414, %v414
      %v419 = vpack.c.bf16 %v415, %v415
      %v420 = vld [vmem:[%s248] sm:$0xff]
      %v421 = vld [vmem:[%s248 + $0x8] sm:$0xff]
      %v422 = vld [vmem:[%s248 + $0x10] sm:$0xff]
      %v423 = vld [vmem:[%s248 + $0x18] sm:$0xff]
      %v424 = vpack.c.bf16 %v420, %v420
      %v425 = vpack.c.bf16 %v421, %v421
      %v426 = vpack.c.bf16 %v422, %v422
      %v427 = vpack.c.bf16 %v423, %v423
      %v429 = vsel %vm276, %v416, 0
      %vm431 = vcmask 1043456
      %v433 = vsel %vm431, %v424, 0
      %435 = vmatpush.bf16.msra.mxu0 0
      %436 = vmatpush.bf16.msra.mxu0 0
      %437 = vmatpush.bf16.msra.mxu0 0
      %438 = vmatpush.bf16.msra.mxu0 0
      %439 = vmatpush.bf16.msra.mxu0 0
      %440 = vmatpush.bf16.msra.mxu0 0
      %441 = vmatpush.bf16.msra.mxu0 0
      %442 = vmatpush.bf16.msra.mxu0 %v433
      %443 = vmatmul.bf16.gmra.mxu0 %v429
      %v444 = vpop.f32.mrf.mxu0
      %v445 = vadd.f32 0.0, %v444
      %v446 = vpop.f32.mrf.mxu0
      %447 = vdwg.mxu0
      %v449 = vsel %vm276, %v417, 0
      %v452 = vsel %vm431, %v425, 0
      %454 = vmatpush.bf16.msra.mxu0 0
      %455 = vmatpush.bf16.msra.mxu0 0
      %456 = vmatpush.bf16.msra.mxu0 0
      %457 = vmatpush.bf16.msra.mxu0 0
      %458 = vmatpush.bf16.msra.mxu0 0
      %459 = vmatpush.bf16.msra.mxu0 0
      %460 = vmatpush.bf16.msra.mxu0 0
      %461 = vmatpush.bf16.msra.mxu0 %v452
      %462 = vmatmul.bf16.gmra.mxu0 %v449
      %v463 = vpop.f32.mrf.mxu0
      %v464 = vadd.f32 0.0, %v463
      %v465 = vpop.f32.mrf.mxu0
      %466 = vdwg.mxu0
      %v468 = vsel %vm276, %v418, 0
      %v471 = vsel %vm431, %v426, 0
      %473 = vmatpush.bf16.msra.mxu0 0
      %474 = vmatpush.bf16.msra.mxu0 0
      %475 = vmatpush.bf16.msra.mxu0 0
      %476 = vmatpush.bf16.msra.mxu0 0
      %477 = vmatpush.bf16.msra.mxu0 0
      %478 = vmatpush.bf16.msra.mxu0 0
      %479 = vmatpush.bf16.msra.mxu0 0
      %480 = vmatpush.bf16.msra.mxu0 %v471
      %481 = vmatmul.bf16.gmra.mxu0 %v468
      %v482 = vpop.f32.mrf.mxu0
      %v483 = vadd.f32 0.0, %v482
      %v484 = vpop.f32.mrf.mxu0
      %485 = vdwg.mxu0
      %v487 = vsel %vm276, %v419, 0
      %v490 = vsel %vm431, %v427, 0
      %492 = vmatpush.bf16.msra.mxu0 0
      %493 = vmatpush.bf16.msra.mxu0 0
      %494 = vmatpush.bf16.msra.mxu0 0
      %495 = vmatpush.bf16.msra.mxu0 0
      %496 = vmatpush.bf16.msra.mxu0 0
      %497 = vmatpush.bf16.msra.mxu0 0
      %498 = vmatpush.bf16.msra.mxu0 0
      %499 = vmatpush.bf16.msra.mxu0 %v490
      %500 = vmatmul.bf16.gmra.mxu0 %v487
      %v501 = vpop.f32.mrf.mxu0
      %v502 = vadd.f32 0.0, %v501
      %v503 = vpop.f32.mrf.mxu0
      %504 = vdwg.mxu0
      %505 = vst.msk [vmem:[%s257] sm:$0xff] %vm276, %v445
      %506 = vst.msk [vmem:[%s257 + $0x8] sm:$0xff] %vm276, %v464
      %507 = vst.msk [vmem:[%s257 + $0x10] sm:$0xff] %vm276, %v483
      %508 = vst.msk [vmem:[%s257 + $0x18] sm:$0xff] %vm276, %v502
      %s509 = smul.u32 4, %s15
      %p510 = scmp.lt.s32.totalorder %s509, 7
      %s511 = scalar_select %p510, %s509, 7
      %s512 = smul.addr %s511, 8
      %s513 = scalar_lea.vmem %s4, %s512
      // Predicated region
      $region37: #{transformer_fwd.58} parent=35 // pred_check
        %p514 = pneg %p137
      $region38: #{transformer_fwd.58} parent=35 // pred_check_branch
        %516 = sbr.rel (%p514) target = $region40
      $region39: #{transformer_fwd.58} parent=35 // pred_region
        %s517 = smul.u32 4, %s15
      $region40: #{transformer_fwd.58} parent=35 // pred_fallthru
        _
    $region36: #{transformer_fwd.58} parent=5 // pred_fallthru
      _
    %p518 = scmp.le.s32.totalorder 2, %s10
    // Predicated region
    $region41: #{transformer_fwd.58} parent=5 // pred_check
      %p519 = pneg %p518
    $region42: #{transformer_fwd.58} parent=5 // pred_check_branch
      %521 = sbr.rel (%p519) target = $region44
    $region43: #{transformer_fwd.58} parent=5 // pred_region
      %s522 = ssub.s32 %s10, 2
      // Predicated region
      $region45: #{transformer_fwd.58} parent=43 // pred_check
        %p523 = pneg %p143
      $region46: #{transformer_fwd.58} parent=43 // pred_check_branch
        %525 = sbr.rel (%p523) target = $region48
      $region47: #{transformer_fwd.58} parent=43 // pred_region
        %s526 = smul.u32 4, %s16
        %p527 = scmp.lt.s32.totalorder %s526, 7
        %s528 = scalar_select %p527, %s526, 7
        %s529 = smul.addr %s528, 8
        %s530 = scalar_lea.vmem %s4, %s529
      $region48: #{transformer_fwd.58} parent=43 // pred_fallthru
        _
    $region44: #{transformer_fwd.58} parent=5 // pred_fallthru
      _
  $region6: #{transformer_fwd.58} parent=0 // loop_footer
    %s14 = sadd.s32 1, %s10
  $region7: #{transformer_fwd.58} parent=0 // loop_footer_branch
    %9 = sbr.rel target = $region3
  $region8: #{transformer_fwd.58} parent=0 // loop_exit
    _

// kernel: transformer_fwd.59
$region0: #{transformer_fwd.59}
  #allocation0 [shape = 'u32[]', space=smem, size = 0x4, offset = 0x4, fixed_abs, tag = 'smem constant byte address 0x4 - core index']
  #allocation1 [shape = 'u32[72,128]{1,0:T(1,128)}', space=vmem, size = 0x9000, scoped, tag = 'internal scratch']
  #allocation2 [shape = 'f32[16,32]{1,0:T(8,128)}', space=vmem, size = 0x2000, scoped, tag = 'scratch operand']
  %s0 = inlined_call_operand.vmem [shape: f32[16,32], index: 0, kind: input, shape index: {}]
  %s1 = inlined_call_operand.vmem [shape: bf16[32,32], index: 1, kind: input, shape index: {}]
  %s2 = inlined_call_operand.vmem [shape: f32[1,32], index: 2, kind: input, shape index: {}]
  %s3 = inlined_call_operand.vmem [shape: f32[16,32], index: 3, kind: input, shape index: {}]
  %s4 = inlined_call_operand.vmem [shape: f32[16,32], index: 4, kind: output, shape index: {}]
  %s5 = sld [smem:[#allocation0]]
  $region34: #{transformer_fwd.59} parent=0
    _
  %s7 = ssub.s32 1, %s5
  %s8 = scalar_select 0, %s7, %s5
  // Predicated region
  $region2: #{transformer_fwd.59} parent=0 // pred_check
    _
  $region3: #{transformer_fwd.59} parent=0 // pred_check_branch
    %10 = sbr.rel (0) target = $region5
  $region4: #{transformer_fwd.59} parent=0 // pred_region
    _
  $region5: #{transformer_fwd.59} parent=0 // pred_fallthru
    _
  // Predicated region
  $region6: #{transformer_fwd.59} parent=0 // pred_check
    _
  $region7: #{transformer_fwd.59} parent=0 // pred_check_branch
    %12 = sbr.rel (0) target = $region9
  $region8: #{transformer_fwd.59} parent=0 // pred_region
    _
  $region9: #{transformer_fwd.59} parent=0 // pred_fallthru
    _
  // Predicated region
  $region10: #{transformer_fwd.59} parent=0 // pred_check
    _
  $region11: #{transformer_fwd.59} parent=0 // pred_check_branch
    %14 = sbr.rel (0) target = $region13
  $region12: #{transformer_fwd.59} parent=0 // pred_region
    _
  $region13: #{transformer_fwd.59} parent=0 // pred_fallthru
    _
  // Predicated region
  $region14: #{transformer_fwd.59} parent=0 // pred_check
    _
  $region15: #{transformer_fwd.59} parent=0 // pred_check_branch
    %16 = sbr.rel (0) target = $region17
  $region16: #{transformer_fwd.59} parent=0 // pred_region
    _
  $region17: #{transformer_fwd.59} parent=0 // pred_fallthru
    _
  %p18 = scmp.eq.s32.totalorder 0, 0
  // Predicated region
  $region18: #{transformer_fwd.59} parent=0 // pred_check
    %p19 = pneg %p18
  $region19: #{transformer_fwd.59} parent=0 // pred_check_branch
    %21 = sbr.rel (%p19) target = $region21
  $region20: #{transformer_fwd.59} parent=0 // pred_region
    %vm22 = vcmask 261120
    %23 = vst.msk [vmem:[#allocation2] sm:$0xff] %vm22, 0.0
    %24 = vst.msk [vmem:[#allocation2 + $0x8] sm:$0xff] %vm22, 0.0
  $region21: #{transformer_fwd.59} parent=0 // pred_fallthru
    _
  %v25 = vld [vmem:[#allocation2] sm:$0xff]
  %v26 = vld [vmem:[#allocation2 + $0x8] sm:$0xff]
  %v27 = vld [vmem:[%s0] sm:$0xff]
  %v28 = vld [vmem:[%s0 + $0x8] sm:$0xff]
  %v29 = vpack.c.bf16 %v28, %v27
  %v30 = vld [vmem:[%s1] sm:$0xf]
  %v31 = vld [vmem:[%s1 + $0x4] sm:$0xf]
  %v32 = vld [vmem:[%s1 + $0x8] sm:$0xf]
  %v33 = vld [vmem:[%s1 + $0xc] sm:$0xf]
  %v38 = vunpack.c.l.b16 %v30
  %v39 = vunpack.c.l.b16 %v31
  %v40 = vunpack.c.l.b16 %v32
  %v41 = vunpack.c.l.b16 %v33
  %v42 = vpack.c.b16 %v39, %v38
  %v43 = vpack.c.b16 %v41, %v40
  %vm46 = vcmask 261120
  %v48 = vsel %vm46, %v29, 0
  %50 = vmatpush.bf16.msra.mxu0 0
  %51 = vmatpush.bf16.msra.mxu0 0
  %52 = vmatpush.bf16.msra.mxu0 0
  %53 = vmatpush.bf16.msra.mxu0 0
  %54 = vmatpush.bf16.msra.mxu0 0
  %55 = vmatpush.bf16.msra.mxu0 0
  %56 = vmatpush.bf16.msra.mxu0 %v43
  %57 = vmatpush.bf16.msra.mxu0 %v42
  %58 = vmatmul.bf16.gmra.mxu0 %v48
  %v59 = vpop.f32.mrf.mxu0
  %v60 = vadd.f32 0.0, %v59
  %v61 = vpop.f32.mrf.mxu0
  %v62 = vadd.f32 0.0, %v61
  %63 = vdwg.mxu0
  %v64 = vadd.f32 %v25, %v60
  %v65 = vadd.f32 %v26, %v62
  %66 = vst.msk [vmem:[#allocation2] sm:$0xff] %vm46, %v64
  %67 = vst.msk [vmem:[#allocation2 + $0x8] sm:$0xff] %vm46, %v65
  // Predicated region
  $region22: #{transformer_fwd.59} parent=0 // pred_check
    %p68 = pneg %p18
  $region23: #{transformer_fwd.59} parent=0 // pred_check_branch
    %70 = sbr.rel (%p68) target = $region25
  $region24: #{transformer_fwd.59} parent=0 // pred_region
    %v71 = vld [vmem:[#allocation2] sm:$0xff]
    %v72 = vld [vmem:[#allocation2 + $0x8] sm:$0xff]
    %v73 = vld [vmem:[%s2] sm:$0x1]
    %v75 = vperm.slane %v73, 0
    %v77 = vadd.f32 %v71, %v75
    %v78 = vadd.f32 %v72, %v75
    %v79 = vld [vmem:[%s3] sm:$0xff]
    %v80 = vld [vmem:[%s3 + $0x8] sm:$0xff]
    %v81 = vadd.f32 %v77, %v79
    %v82 = vadd.f32 %v78, %v80
    %83 = vst.msk [vmem:[%s4] sm:$0xff] %vm46, %v81
    %84 = vst.msk [vmem:[%s4 + $0x8] sm:$0xff] %vm46, %v82
  $region25: #{transformer_fwd.59} parent=0 // pred_fallthru
    _
  // Predicated region
  $region26: #{transformer_fwd.59} parent=0 // pred_check
    _
  $region27: #{transformer_fwd.59} parent=0 // pred_check_branch
    %86 = sbr.rel (0) target = $region29
  $region28: #{transformer_fwd.59} parent=0 // pred_region
    _
  $region29: #{transformer_fwd.59} parent=0 // pred_fallthru
    _
  // Predicated region
  $region30: #{transformer_fwd.59} parent=0 // pred_check
    _
  $region31: #{transformer_fwd.59} parent=0 // pred_check_branch
    %88 = sbr.rel (0) target = $region33
  $region32: #{transformer_fwd.59} parent=0 // pred_region
    _
  $region33: #{transformer_fwd.59} parent=0 // pred_fallthru
    _

// kernel: transformer_fwd.61
$region0: #{transformer_fwd.61}
  #allocation0 [shape = 'u32[]', space=smem, size = 0x4, offset = 0x4, fixed_abs, tag = 'smem constant byte address 0x4 - core index']
  #allocation1 [shape = 'u32[72,128]{1,0:T(1,128)}', space=vmem, size = 0x9000, scoped, tag = 'internal scratch']
  #allocation2 [shape = 'f32[16,32]{1,0:T(8,128)}', space=vmem, size = 0x2000, scoped, tag = 'scratch operand']
  %s0 = inlined_call_operand.vmem [shape: f32[16,32], index: 0, kind: input, shape index: {}]
  %s1 = inlined_call_operand.vmem [shape: bf16[32,32], index: 1, kind: input, shape index: {}]
  %s2 = inlined_call_operand.vmem [shape: f32[1,32], index: 2, kind: input, shape index: {}]
  %s3 = inlined_call_operand.vmem [shape: f32[16,32], index: 3, kind: output, shape index: {}]
  %s4 = sld [smem:[#allocation0]]
  $region30: #{transformer_fwd.61} parent=0
    _
  %s6 = ssub.s32 1, %s4
  %s7 = scalar_select 0, %s6, %s4
  // Predicated region
  $region2: #{transformer_fwd.61} parent=0 // pred_check
    _
  $region3: #{transformer_fwd.61} parent=0 // pred_check_branch
    %9 = sbr.rel (0) target = $region5
  $region4: #{transformer_fwd.61} parent=0 // pred_region
    _
  $region5: #{transformer_fwd.61} parent=0 // pred_fallthru
    _
  // Predicated region
  $region6: #{transformer_fwd.61} parent=0 // pred_check
    _
  $region7: #{transformer_fwd.61} parent=0 // pred_check_branch
    %11 = sbr.rel (0) target = $region9
  $region8: #{transformer_fwd.61} parent=0 // pred_region
    _
  $region9: #{transformer_fwd.61} parent=0 // pred_fallthru
    _
  // Predicated region
  $region10: #{transformer_fwd.61} parent=0 // pred_check
    _
  $region11: #{transformer_fwd.61} parent=0 // pred_check_branch
    %13 = sbr.rel (0) target = $region13
  $region12: #{transformer_fwd.61} parent=0 // pred_region
    _
  $region13: #{transformer_fwd.61} parent=0 // pred_fallthru
    _
  %p15 = scmp.eq.s32.totalorder 0, 0
  // Predicated region
  $region14: #{transformer_fwd.61} parent=0 // pred_check
    %p16 = pneg %p15
  $region15: #{transformer_fwd.61} parent=0 // pred_check_branch
    %18 = sbr.rel (%p16) target = $region17
  $region16: #{transformer_fwd.61} parent=0 // pred_region
    %vm19 = vcmask 261120
    %20 = vst.msk [vmem:[#allocation2] sm:$0xff] %vm19, 0.0
    %21 = vst.msk [vmem:[#allocation2 + $0x8] sm:$0xff] %vm19, 0.0
  $region17: #{transformer_fwd.61} parent=0 // pred_fallthru
    _
  %v22 = vld [vmem:[#allocation2] sm:$0xff]
  %v23 = vld [vmem:[#allocation2 + $0x8] sm:$0xff]
  %v24 = vld [vmem:[%s0] sm:$0xff]
  %v25 = vld [vmem:[%s0 + $0x8] sm:$0xff]
  %v26 = vpack.c.bf16 %v25, %v24
  %v27 = vld [vmem:[%s1] sm:$0xf]
  %v28 = vld [vmem:[%s1 + $0x4] sm:$0xf]
  %v29 = vld [vmem:[%s1 + $0x8] sm:$0xf]
  %v30 = vld [vmem:[%s1 + $0xc] sm:$0xf]
  %v35 = vunpack.c.l.b16 %v27
  %v36 = vunpack.c.l.b16 %v28
  %v37 = vunpack.c.l.b16 %v29
  %v38 = vunpack.c.l.b16 %v30
  %v39 = vpack.c.b16 %v36, %v35
  %v40 = vpack.c.b16 %v38, %v37
  %vm43 = vcmask 261120
  %v45 = vsel %vm43, %v26, 0
  %47 = vmatpush.bf16.msra.mxu0 0
  %48 = vmatpush.bf16.msra.mxu0 0
  %49 = vmatpush.bf16.msra.mxu0 0
  %50 = vmatpush.bf16.msra.mxu0 0
  %51 = vmatpush.bf16.msra.mxu0 0
  %52 = vmatpush.bf16.msra.mxu0 0
  %53 = vmatpush.bf16.msra.mxu0 %v40
  %54 = vmatpush.bf16.msra.mxu0 %v39
  %55 = vmatmul.bf16.gmra.mxu0 %v45
  %v56 = vpop.f32.mrf.mxu0
  %v57 = vadd.f32 0.0, %v56
  %v58 = vpop.f32.mrf.mxu0
  %v59 = vadd.f32 0.0, %v58
  %60 = vdwg.mxu0
  %v61 = vadd.f32 %v22, %v57
  %v62 = vadd.f32 %v23, %v59
  %63 = vst.msk [vmem:[#allocation2] sm:$0xff] %vm43, %v61
  %64 = vst.msk [vmem:[#allocation2 + $0x8] sm:$0xff] %vm43, %v62
  // Predicated region
  $region18: #{transformer_fwd.61} parent=0 // pred_check
    %p65 = pneg %p15
  $region19: #{transformer_fwd.61} parent=0 // pred_check_branch
    %67 = sbr.rel (%p65) target = $region21
  $region20: #{transformer_fwd.61} parent=0 // pred_region
    %v68 = vld [vmem:[#allocation2] sm:$0xff]
    %v69 = vld [vmem:[#allocation2 + $0x8] sm:$0xff]
    %v70 = vld [vmem:[%s2] sm:$0x1]
    %v72 = vperm.slane %v70, 0
    %v74 = vadd.f32 %v68, %v72
    %v75 = vadd.f32 %v69, %v72
    %76 = vst.msk [vmem:[%s3] sm:$0xff] %vm43, %v74
    %77 = vst.msk [vmem:[%s3 + $0x8] sm:$0xff] %vm43, %v75
  $region21: #{transformer_fwd.61} parent=0 // pred_fallthru
    _
  // Predicated region
  $region22: #{transformer_fwd.61} parent=0 // pred_check
    _
  $region23: #{transformer_fwd.61} parent=0 // pred_check_branch
    %79 = sbr.rel (0) target = $region25
  $region24: #{transformer_fwd.61} parent=0 // pred_region
    _
  $region25: #{transformer_fwd.61} parent=0 // pred_fallthru
    _
  // Predicated region
  $region26: #{transformer_fwd.61} parent=0 // pred_check
    _
  $region27: #{transformer_fwd.61} parent=0 // pred_check_branch
    %81 = sbr.rel (0) target = $region29
  $region28: #{transformer_fwd.61} parent=0 // pred_region
    _
  $region29: #{transformer_fwd.61} parent=0 // pred_fallthru
    _

// kernel: transformer_fwd.46
$region0: #{transformer_fwd.46}
  #allocation0 [shape = 'u32[]', space=smem, size = 0x4, offset = 0x4, fixed_abs, tag = 'smem constant byte address 0x4 - core index']
  #allocation1 [shape = 'u32[72,128]{1,0:T(1,128)}', space=vmem, size = 0x9000, scoped, tag = 'internal scratch']
  #allocation2 [shape = 'f32[16,64]{1,0:T(8,128)}', space=vmem, size = 0x2000, scoped, tag = 'scratch operand']
  %s0 = inlined_call_operand.vmem [shape: f32[16,32], index: 0, kind: input, shape index: {}]
  %s1 = inlined_call_operand.vmem [shape: bf16[32,64], index: 1, kind: input, shape index: {}]
  %s2 = inlined_call_operand.vmem [shape: f32[1,64], index: 2, kind: input, shape index: {}]
  %s3 = inlined_call_operand.vmem [shape: f32[16,64], index: 3, kind: output, shape index: {}]
  %s4 = sld [smem:[#allocation0]]
  $region30: #{transformer_fwd.46} parent=0
    _
  %s6 = ssub.s32 1, %s4
  %s7 = scalar_select 0, %s6, %s4
  // Predicated region
  $region2: #{transformer_fwd.46} parent=0 // pred_check
    _
  $region3: #{transformer_fwd.46} parent=0 // pred_check_branch
    %9 = sbr.rel (0) target = $region5
  $region4: #{transformer_fwd.46} parent=0 // pred_region
    _
  $region5: #{transformer_fwd.46} parent=0 // pred_fallthru
    _
  // Predicated region
  $region6: #{transformer_fwd.46} parent=0 // pred_check
    _
  $region7: #{transformer_fwd.46} parent=0 // pred_check_branch
    %11 = sbr.rel (0) target = $region9
  $region8: #{transformer_fwd.46} parent=0 // pred_region
    _
  $region9: #{transformer_fwd.46} parent=0 // pred_fallthru
    _
  // Predicated region
  $region10: #{transformer_fwd.46} parent=0 // pred_check
    _
  $region11: #{transformer_fwd.46} parent=0 // pred_check_branch
    %13 = sbr.rel (0) target = $region13
  $region12: #{transformer_fwd.46} parent=0 // pred_region
    _
  $region13: #{transformer_fwd.46} parent=0 // pred_fallthru
    _
  %p15 = scmp.eq.s32.totalorder 0, 0
  // Predicated region
  $region14: #{transformer_fwd.46} parent=0 // pred_check
    %p16 = pneg %p15
  $region15: #{transformer_fwd.46} parent=0 // pred_check_branch
    %18 = sbr.rel (%p16) target = $region17
  $region16: #{transformer_fwd.46} parent=0 // pred_region
    %vm19 = vcmask 523264
    %20 = vst.msk [vmem:[#allocation2] sm:$0xff] %vm19, 0.0
    %21 = vst.msk [vmem:[#allocation2 + $0x8] sm:$0xff] %vm19, 0.0
  $region17: #{transformer_fwd.46} parent=0 // pred_fallthru
    _
  %v22 = vld [vmem:[#allocation2] sm:$0xff]
  %v23 = vld [vmem:[#allocation2 + $0x8] sm:$0xff]
  %v24 = vld [vmem:[%s0] sm:$0xff]
  %v25 = vld [vmem:[%s0 + $0x8] sm:$0xff]
  %v26 = vpack.c.bf16 %v25, %v24
  %v27 = vld [vmem:[%s1] sm:$0xf]
  %v28 = vld [vmem:[%s1 + $0x4] sm:$0xf]
  %v29 = vld [vmem:[%s1 + $0x8] sm:$0xf]
  %v30 = vld [vmem:[%s1 + $0xc] sm:$0xf]
  %v35 = vunpack.c.l.b16 %v27
  %v36 = vunpack.c.l.b16 %v28
  %v37 = vunpack.c.l.b16 %v29
  %v38 = vunpack.c.l.b16 %v30
  %v39 = vpack.c.b16 %v36, %v35
  %v40 = vpack.c.b16 %v38, %v37
  %vm43 = vcmask 261120
  %v45 = vsel %vm43, %v26, 0
  %47 = vmatpush.bf16.msra.mxu0 0
  %48 = vmatpush.bf16.msra.mxu0 0
  %49 = vmatpush.bf16.msra.mxu0 0
  %50 = vmatpush.bf16.msra.mxu0 0
  %51 = vmatpush.bf16.msra.mxu0 0
  %52 = vmatpush.bf16.msra.mxu0 0
  %53 = vmatpush.bf16.msra.mxu0 %v40
  %54 = vmatpush.bf16.msra.mxu0 %v39
  %55 = vmatmul.bf16.gmra.mxu0 %v45
  %v56 = vpop.f32.mrf.mxu0
  %v57 = vadd.f32 0.0, %v56
  %v58 = vpop.f32.mrf.mxu0
  %v59 = vadd.f32 0.0, %v58
  %60 = vdwg.mxu0
  %v61 = vadd.f32 %v22, %v57
  %v62 = vadd.f32 %v23, %v59
  %vm63 = vcmask 523264
  %64 = vst.msk [vmem:[#allocation2] sm:$0xff] %vm63, %v61
  %65 = vst.msk [vmem:[#allocation2 + $0x8] sm:$0xff] %vm63, %v62
  // Predicated region
  $region18: #{transformer_fwd.46} parent=0 // pred_check
    %p66 = pneg %p15
  $region19: #{transformer_fwd.46} parent=0 // pred_check_branch
    %68 = sbr.rel (%p66) target = $region21
  $region20: #{transformer_fwd.46} parent=0 // pred_region
    %v69 = vld [vmem:[#allocation2] sm:$0xff]
    %v70 = vld [vmem:[#allocation2 + $0x8] sm:$0xff]
    %v71 = vld [vmem:[%s2] sm:$0x1]
    %v73 = vperm.slane %v71, 0
    %v75 = vadd.f32 %v69, %v73
    %v76 = vadd.f32 %v70, %v73
    %v77 = vmax.f32 %v75, 0.0
    %v78 = vmax.f32 %v76, 0.0
    %79 = vst.msk [vmem:[%s3] sm:$0xff] %vm63, %v77
    %80 = vst.msk [vmem:[%s3 + $0x8] sm:$0xff] %vm63, %v78
  $region21: #{transformer_fwd.46} parent=0 // pred_fallthru
    _
  // Predicated region
  $region22: #{transformer_fwd.46} parent=0 // pred_check
    _
  $region23: #{transformer_fwd.46} parent=0 // pred_check_branch
    %82 = sbr.rel (0) target = $region25
  $region24: #{transformer_fwd.46} parent=0 // pred_region
    _
  $region25: #{transformer_fwd.46} parent=0 // pred_fallthru
    _
  // Predicated region
  $region26: #{transformer_fwd.46} parent=0 // pred_check
    _
  $region27: #{transformer_fwd.46} parent=0 // pred_check_branch
    %84 = sbr.rel (0) target = $region29
  $region28: #{transformer_fwd.46} parent=0 // pred_region
    _
  $region29: #{transformer_fwd.46} parent=0 // pred_fallthru
    _

// kernel: transformer_fwd.43
$region0: #{transformer_fwd.43}
  #allocation0 [shape = 'u32[]', space=smem, size = 0x4, offset = 0x4, fixed_abs, tag = 'smem constant byte address 0x4 - core index']
  #allocation1 [shape = 'u32[72,128]{1,0:T(1,128)}', space=vmem, size = 0x9000, scoped, tag = 'internal scratch']
  %s0 = inlined_call_operand.vmem [shape: f32[8,8,8], index: 0, kind: input, shape index: {}]
  %s1 = inlined_call_operand.vmem [shape: f32[8,8,8], index: 1, kind: input, shape index: {}]
  %s2 = inlined_call_operand.vmem [shape: f32[8,8,8], index: 2, kind: input, shape index: {}]
  %s3 = inlined_call_operand.vmem [shape: s32[2,1,8], index: 3, kind: input, shape index: {}]
  %s4 = inlined_call_operand.vmem [shape: f32[8,8,8], index: 4, kind: output, shape index: {}]
  %s5 = sld [smem:[#allocation0]]
  $region49: #{transformer_fwd.43} parent=0
    _
  %s7 = ssub.s32 1, %s5
  %s8 = scalar_select 0, %s7, %s5
  loop: start=0, step=1, limit=4
  $region2: #{transformer_fwd.43} parent=0 // loop_pre_header
    _
  $region3: #{transformer_fwd.43} parent=0 // loop_header
    %s10 = sphi 0, %s14
    %p11 = scmp.ge.s32.totalorder %s10, 4
    %s20 = sphi 0, %s22
    %s23 = sphi 0, %s20
    %s24 = sphi 0, %s23
    %s40 = sphi 0, %s24
    %s46 = sphi 0, %s48
    %s49 = sphi 0, %s46
    %s50 = sphi 0, %s49
    %s66 = sphi 0, %s50
    %s72 = sphi 0, %s74
    %s75 = sphi 0, %s72
    %s76 = sphi 0, %s75
    %s92 = sphi 0, %s76
    %s98 = sphi 0, %s100
    %s101 = sphi 0, %s98
    %s102 = sphi 0, %s101
    %s118 = sphi 0, %s102
    %s124 = sphi 0, %s126
    %s127 = sphi 0, %s124
    %s128 = sphi 0, %s127
    %s144 = sphi 0, %s128
  $region4: #{transformer_fwd.43} parent=0 // loop_header_branch
    %13 = sbr.rel (%p11) target = $region8
  $region5: #{transformer_fwd.43} parent=0 // loop_body
    %s15 = ssub.s32 %s10, 1
    %s16 = ssub.s32 %s10, 2
    %s17 = sadd.s32 %s10, 1
    %s18 = ssub.s32 %s10, %s17
    %p19 = scmp.eq.s32.totalorder %s18, 0
    %s21 = sadd.s32 %s20, 1
    %s22 = scalar_select %p19, %s20, %s21
    %p25 = pneg %p19
    %p26 = scmp.eq.s32.totalorder %s10, 1
    %p27 = por %p25, %p26
    %p28 = scmp.ne.s32.totalorder %s20, %s23
    %p29 = scmp.eq.s32.totalorder %s10, 0
    %p30 = por %p28, %p29
    %p31 = scmp.ne.s32.totalorder %s20, %s23
    %p32 = scmp.eq.s32.totalorder %s15, 1
    %p33 = por %p31, %p32
    %p34 = scmp.ne.s32.totalorder %s23, %s24
    %p35 = scmp.eq.s32.totalorder %s15, 0
    %p36 = por %p34, %p35
    %p37 = scmp.ne.s32.totalorder %s23, %s24
    %p38 = scmp.eq.s32.totalorder %s16, 1
    %p39 = por %p37, %p38
    %p41 = scmp.ne.s32.totalorder %s24, %s40
    %p42 = scmp.eq.s32.totalorder %s16, 0
    %p43 = por %p41, %p42
    %s44 = ssub.s32 %s10, %s17
    %p45 = scmp.eq.s32.totalorder %s44, 0
    %s47 = sadd.s32 %s46, 1
    %s48 = scalar_select %p45, %s46, %s47
    %p51 = pneg %p45
    %p52 = scmp.eq.s32.totalorder %s10, 1
    %p53 = por %p51, %p52
    %p54 = scmp.ne.s32.totalorder %s46, %s49
    %p55 = scmp.eq.s32.totalorder %s10, 0
    %p56 = por %p54, %p55
    %p57 = scmp.ne.s32.totalorder %s46, %s49
    %p58 = scmp.eq.s32.totalorder %s15, 1
    %p59 = por %p57, %p58
    %p60 = scmp.ne.s32.totalorder %s49, %s50
    %p61 = scmp.eq.s32.totalorder %s15, 0
    %p62 = por %p60, %p61
    %p63 = scmp.ne.s32.totalorder %s49, %s50
    %p64 = scmp.eq.s32.totalorder %s16, 1
    %p65 = por %p63, %p64
    %p67 = scmp.ne.s32.totalorder %s50, %s66
    %p68 = scmp.eq.s32.totalorder %s16, 0
    %p69 = por %p67, %p68
    %s70 = ssub.s32 %s10, %s17
    %p71 = scmp.eq.s32.totalorder %s70, 0
    %s73 = sadd.s32 %s72, 1
    %s74 = scalar_select %p71, %s72, %s73
    %p77 = pneg %p71
    %p78 = scmp.eq.s32.totalorder %s10, 1
    %p79 = por %p77, %p78
    %p80 = scmp.ne.s32.totalorder %s72, %s75
    %p81 = scmp.eq.s32.totalorder %s10, 0
    %p82 = por %p80, %p81
    %p83 = scmp.ne.s32.totalorder %s72, %s75
    %p84 = scmp.eq.s32.totalorder %s15, 1
    %p85 = por %p83, %p84
    %p86 = scmp.ne.s32.totalorder %s75, %s76
    %p87 = scmp.eq.s32.totalorder %s15, 0
    %p88 = por %p86, %p87
    %p89 = scmp.ne.s32.totalorder %s75, %s76
    %p90 = scmp.eq.s32.totalorder %s16, 1
    %p91 = por %p89, %p90
    %p93 = scmp.ne.s32.totalorder %s76, %s92
    %p94 = scmp.eq.s32.totalorder %s16, 0
    %p95 = por %p93, %p94
    %s96 = ssub.s32 %s10, %s17
    %p97 = scmp.eq.s32.totalorder %s96, 0
    %s99 = sadd.s32 %s98, 1
    %s100 = scalar_select %p97, %s98, %s99
    %p103 = pneg %p97
    %p104 = scmp.eq.s32.totalorder %s10, 1
    %p105 = por %p103, %p104
    %p106 = scmp.ne.s32.totalorder %s98, %s101
    %p107 = scmp.eq.s32.totalorder %s10, 0
    %p108 = por %p106, %p107
    %p109 = scmp.ne.s32.totalorder %s98, %s101
    %p110 = scmp.eq.s32.totalorder %s15, 1
    %p111 = por %p109, %p110
    %p112 = scmp.ne.s32.totalorder %s101, %s102
    %p113 = scmp.eq.s32.totalorder %s15, 0
    %p114 = por %p112, %p113
    %p115 = scmp.ne.s32.totalorder %s101, %s102
    %p116 = scmp.eq.s32.totalorder %s16, 1
    %p117 = por %p115, %p116
    %p119 = scmp.ne.s32.totalorder %s102, %s118
    %p120 = scmp.eq.s32.totalorder %s16, 0
    %p121 = por %p119, %p120
    %s122 = ssub.s32 %s10, %s17
    %p123 = scmp.eq.s32.totalorder %s122, 0
    %s125 = sadd.s32 %s124, 1
    %s126 = scalar_select %p123, %s124, %s125
    %p129 = pneg %p123
    %p130 = scmp.eq.s32.totalorder %s10, 1
    %p131 = por %p129, %p130
    %p132 = scmp.ne.s32.totalorder %s124, %s127
    %p133 = scmp.eq.s32.totalorder %s10, 0
    %p134 = por %p132, %p133
    %p135 = scmp.ne.s32.totalorder %s124, %s127
    %p136 = scmp.eq.s32.totalorder %s15, 1
    %p137 = por %p135, %p136
    %p138 = scmp.ne.s32.totalorder %s127, %s128
    %p139 = scmp.eq.s32.totalorder %s15, 0
    %p140 = por %p138, %p139
    %p141 = scmp.ne.s32.totalorder %s127, %s128
    %p142 = scmp.eq.s32.totalorder %s16, 1
    %p143 = por %p141, %p142
    %p145 = scmp.ne.s32.totalorder %s128, %s144
    %p146 = scmp.eq.s32.totalorder %s16, 0
    %p147 = por %p145, %p146
    %p148 = scmp.le.s32.totalorder 1, %s10
    %p149 = scmp.lt.s32.totalorder %s10, 3
    %p150 = pnand %p148, %p149
    %p151 = pneg %p150
    // Predicated region
    $region9: #{transformer_fwd.43} parent=5 // pred_check
      _
    $region10: #{transformer_fwd.43} parent=5 // pred_check_branch
      %153 = sbr.rel (%p150) target = $region12
    $region11: #{transformer_fwd.43} parent=5 // pred_region
      %s154 = ssub.s32 %s10, 1
    $region12: #{transformer_fwd.43} parent=5 // pred_fallthru
      _
    %p155 = scmp.lt.s32.totalorder %s10, 2
    // Predicated region
    $region13: #{transformer_fwd.43} parent=5 // pred_check
      %p156 = pneg %p155
    $region14: #{transformer_fwd.43} parent=5 // pred_check_branch
      %158 = sbr.rel (%p156) target = $region16
    $region15: #{transformer_fwd.43} parent=5 // pred_region
      // Predicated region
      $region17: #{transformer_fwd.43} parent=15 // pred_check
        %p159 = pneg %p30
      $region18: #{transformer_fwd.43} parent=15 // pred_check_branch
        %161 = sbr.rel (%p159) target = $region20
      $region19: #{transformer_fwd.43} parent=15 // pred_region
        %s162 = smul.u32 4, %s10
        %p163 = scmp.lt.s32.totalorder %s162, 7
        %s164 = scalar_select %p163, %s162, 7
        %s165 = smul.addr %s164, 8
        %s166 = scalar_lea.vmem %s0, %s165
        %s167 = smul.u32 4, %s10
      $region20: #{transformer_fwd.43} parent=15 // pred_fallthru
        _
      // Predicated region
      $region21: #{transformer_fwd.43} parent=15 // pred_check
        %p168 = pneg %p56
      $region22: #{transformer_fwd.43} parent=15 // pred_check_branch
        %170 = sbr.rel (%p168) target = $region24
      $region23: #{transformer_fwd.43} parent=15 // pred_region
        %s171 = smul.u32 4, %s10
        %p172 = scmp.lt.s32.totalorder %s171, 7
        %s173 = scalar_select %p172, %s171, 7
        %s174 = smul.addr %s173, 8
        %s175 = scalar_lea.vmem %s1, %s174
        %s176 = smul.u32 4, %s10
      $region24: #{transformer_fwd.43} parent=15 // pred_fallthru
        _
      // Predicated region
      $region25: #{transformer_fwd.43} parent=15 // pred_check
        %p177 = pneg %p82
      $region26: #{transformer_fwd.43} parent=15 // pred_check_branch
        %179 = sbr.rel (%p177) target = $region28
      $region27: #{transformer_fwd.43} parent=15 // pred_region
        %s180 = smul.u32 4, %s10
        %p181 = scmp.lt.s32.totalorder %s180, 7
        %s182 = scalar_select %p181, %s180, 7
        %s183 = smul.addr %s182, 8
        %s184 = scalar_lea.vmem %s2, %s183
        %s185 = smul.u32 4, %s10
      $region28: #{transformer_fwd.43} parent=15 // pred_fallthru
        _
      // Predicated region
      $region29: #{transformer_fwd.43} parent=15 // pred_check
        %p186 = pneg %p108
      $region30: #{transformer_fwd.43} parent=15 // pred_check_branch
        %188 = sbr.rel (%p186) target = $region32
      $region31: #{transformer_fwd.43} parent=15 // pred_region
        %p189 = scmp.lt.s32.totalorder %s10, 1
        %s190 = scalar_select %p189, %s10, 1
        %s191 = scalar_lea.vmem %s3, %s190
      $region32: #{transformer_fwd.43} parent=15 // pred_fallthru
        _
    $region16: #{transformer_fwd.43} parent=5 // pred_fallthru
      _
    %p192 = scmp.le.s32.totalorder 1, %s10
    %p193 = scmp.lt.s32.totalorder %s10, 3
    %p194 = pnand %p192, %p193
    %p195 = pneg %p194
    // Predicated region
    $region33: #{transformer_fwd.43} parent=5 // pred_check
      _
    $region34: #{transformer_fwd.43} parent=5 // pred_check_branch
      %197 = sbr.rel (%p194) target = $region36
    $region35: #{transformer_fwd.43} parent=5 // pred_region
      %s198 = ssub.s32 %s10, 1
      %s199 = smul.u32 4, %s15
      %p200 = scmp.lt.s32.totalorder %s199, 7
      %s201 = scalar_select %p200, %s199, 7
      %s202 = smul.addr %s201, 8
      %s203 = scalar_lea.vmem %s0, %s202
      %p204 = pneg %p36
      %p205 = pneg %p33
      %s206 = smul.u32 4, %s15
      %p207 = scmp.lt.s32.totalorder %s206, 7
      %s208 = scalar_select %p207, %s206, 7
      %s209 = smul.addr %s208, 8
      %s210 = scalar_lea.vmem %s1, %s209
      %p211 = pneg %p62
      %p212 = pneg %p59
      %s213 = smul.u32 4, %s15
      %p214 = scmp.lt.s32.totalorder %s213, 7
      %s215 = scalar_select %p214, %s213, 7
      %s216 = smul.addr %s215, 8
      %s217 = scalar_lea.vmem %s2, %s216
      %p218 = pneg %p88
      %p219 = pneg %p85
      %p220 = scmp.lt.s32.totalorder %s15, 1
      %s221 = scalar_select %p220, %s15, 1
      %s222 = scalar_lea.vmem %s3, %s221
      %p223 = pneg %p114
      %p224 = pneg %p111
      %p225 = pneg %p140
      %p226 = pneg %p137
      %s227 = smul.u32 4, %s15
      %p228 = scmp.lt.s32.totalorder %s227, 7
      %s229 = scalar_select %p228, %s227, 7
      %s230 = smul.addr %s229, 8
      %s231 = scalar_lea.vmem %s4, %s230
      %s232 = smul.u32 4, %s15
      %p233 = scmp.lt.s32.totalorder %s232, 7
      %s234 = scalar_select %p233, %s232, 7
      %s235 = smul.addr %s234, 8
      %s236 = scalar_lea.vmem %s0, %s235
      %s237 = smul.u32 4, %s15
      %s238 = smul.u32 4, %s15
      %p239 = scmp.lt.s32.totalorder %s238, 7
      %s240 = scalar_select %p239, %s238, 7
      %s241 = smul.addr %s240, 8
      %s242 = scalar_lea.vmem %s1, %s241
      %s243 = smul.u32 4, %s15
      %s244 = smul.u32 4, %s15
      %p245 = scmp.lt.s32.totalorder %s244, 7
      %s246 = scalar_select %p245, %s244, 7
      %s247 = smul.addr %s246, 8
      %s248 = scalar_lea.vmem %s2, %s247
      %s249 = smul.u32 4, %s15
      %p250 = scmp.lt.s32.totalorder %s15, 1
      %s251 = scalar_select %p250, %s15, 1
      %s252 = scalar_lea.vmem %s3, %s251
      %s253 = smul.u32 4, %s15
      %p254 = scmp.lt.s32.totalorder %s253, 7
      %s255 = scalar_select %p254, %s253, 7
      %s256 = smul.addr %s255, 8
      %s257 = scalar_lea.vmem %s4, %s256
      %s258 = smul.u32 4, %s15
      %v260 = vld [vmem:[%s236] sm:$0xff]
      %v261 = vld [vmem:[%s236 + $0x8] sm:$0xff]
      %v262 = vld [vmem:[%s236 + $0x10] sm:$0xff]
      %v263 = vld [vmem:[%s236 + $0x18] sm:$0xff]
      %v264 = vpack.c.bf16 %v260, %v260
      %v265 = vpack.c.bf16 %v261, %v261
      %v266 = vpack.c.bf16 %v262, %v262
      %v267 = vpack.c.bf16 %v263, %v263
      %v268 = vld [vmem:[%s242] sm:$0xff]
      %v269 = vld [vmem:[%s242 + $0x8] sm:$0xff]
      %v270 = vld [vmem:[%s242 + $0x10] sm:$0xff]
      %v271 = vld [vmem:[%s242 + $0x18] sm:$0xff]
      %v272 = vpack.c.bf16 %v268, %v268
      %v273 = vpack.c.bf16 %v269, %v269
      %v274 = vpack.c.bf16 %v270, %v270
      %v275 = vpack.c.bf16 %v271, %v271
      %vm276 = vcmask 64512
      %v278 = vsel %vm276, %v264, 0
      %v281 = vsel %vm276, %v272, 0
      %283 = vmatpush.bf16.xpose.msra.mxu0 0
      %284 = vmatpush.bf16.xpose.msra.mxu0 0
      %285 = vmatpush.bf16.xpose.msra.mxu0 0
      %286 = vmatpush.bf16.xpose.msra.mxu0 0
      %287 = vmatpush.bf16.xpose.msra.mxu0 0
      %288 = vmatpush.bf16.xpose.msra.mxu0 0
      %289 = vmatpush.bf16.xpose.msra.mxu0 0
      %290 = vmatpush.bf16.xpose.msra.mxu0 %v281
      %291 = vmatmul.bf16.gmra.mxu0 %v278
      %v292 = vpop.f32.mrf.mxu0
      %v293 = vadd.f32 0.0, %v292
      %v294 = vpop.f32.mrf.mxu0
      %295 = vdwg.mxu0
      %v297 = vsel %vm276, %v265, 0
      %v300 = vsel %vm276, %v273, 0
      %302 = vmatpush.bf16.xpose.msra.mxu0 0
      %303 = vmatpush.bf16.xpose.msra.mxu0 0
      %304 = vmatpush.bf16.xpose.msra.mxu0 0
      %305 = vmatpush.bf16.xpose.msra.mxu0 0
      %306 = vmatpush.bf16.xpose.msra.mxu0 0
      %307 = vmatpush.bf16.xpose.msra.mxu0 0
      %308 = vmatpush.bf16.xpose.msra.mxu0 0
      %309 = vmatpush.bf16.xpose.msra.mxu0 %v300
      %310 = vmatmul.bf16.gmra.mxu0 %v297
      %v311 = vpop.f32.mrf.mxu0
      %v312 = vadd.f32 0.0, %v311
      %v313 = vpop.f32.mrf.mxu0
      %314 = vdwg.mxu0
      %v316 = vsel %vm276, %v266, 0
      %v319 = vsel %vm276, %v274, 0
      %321 = vmatpush.bf16.xpose.msra.mxu0 0
      %322 = vmatpush.bf16.xpose.msra.mxu0 0
      %323 = vmatpush.bf16.xpose.msra.mxu0 0
      %324 = vmatpush.bf16.xpose.msra.mxu0 0
      %325 = vmatpush.bf16.xpose.msra.mxu0 0
      %326 = vmatpush.bf16.xpose.msra.mxu0 0
      %327 = vmatpush.bf16.xpose.msra.mxu0 0
      %328 = vmatpush.bf16.xpose.msra.mxu0 %v319
      %329 = vmatmul.bf16.gmra.mxu0 %v316
      %v330 = vpop.f32.mrf.mxu0
      %v331 = vadd.f32 0.0, %v330
      %v332 = vpop.f32.mrf.mxu0
      %333 = vdwg.mxu0
      %v335 = vsel %vm276, %v267, 0
      %v338 = vsel %vm276, %v275, 0
      %340 = vmatpush.bf16.xpose.msra.mxu0 0
      %341 = vmatpush.bf16.xpose.msra.mxu0 0
      %342 = vmatpush.bf16.xpose.msra.mxu0 0
      %343 = vmatpush.bf16.xpose.msra.mxu0 0
      %344 = vmatpush.bf16.xpose.msra.mxu0 0
      %345 = vmatpush.bf16.xpose.msra.mxu0 0
      %346 = vmatpush.bf16.xpose.msra.mxu0 0
      %347 = vmatpush.bf16.xpose.msra.mxu0 %v338
      %348 = vmatmul.bf16.gmra.mxu0 %v335
      %v349 = vpop.f32.mrf.mxu0
      %v350 = vadd.f32 0.0, %v349
      %v351 = vpop.f32.mrf.mxu0
      %352 = vdwg.mxu0
      %v353 = vmul.f32 %v293, 0.35355338
      %v354 = vmul.f32 %v312, 0.35355338
      %v355 = vmul.f32 %v331, 0.35355338
      %v356 = vmul.f32 %v350, 0.35355338
      %v357 = vld [vmem:[%s252] sm:$0x1]
      %v358 = vperm.slane %v357, 0
      %vm359 = vcmp.ne.s32.totalorder %v358, 0
      %v360 = vsel %vm359, -1e+10, %v353
      %v361 = vsel %vm359, -1e+10, %v354
      %v362 = vsel %vm359, -1e+10, %v355
      %v363 = vsel %vm359, -1e+10, %v356
      %v364 = vsel %vm276, %v360, -inf
      %365 = vmax.xlane.f32.xlu0 %v364
      %v366 = vpop.xlane.xlu0 %365
      %v367 = vsel %vm276, %v361, -inf
      %368 = vmax.xlane.f32.xlu0 %v367
      %v369 = vpop.xlane.xlu0 %368
      %v370 = vsel %vm276, %v362, -inf
      %371 = vmax.xlane.f32.xlu0 %v370
      %v372 = vpop.xlane.xlu0 %371
      %v373 = vsel %vm276, %v363, -inf
      %374 = vmax.xlane.f32.xlu0 %v373
      %v375 = vpop.xlane.xlu0 %374
      %v376 = vsub.f32 %v360, %v366
      %v377 = vsub.f32 %v361, %v369
      %v378 = vsub.f32 %v362, %v372
      %v379 = vsub.f32 %v363, %v375
      %v380 = vmul.f32 %v376, 1.442695
      %v381 = vpow.pop %v380
      %v382 = vmul.f32 %v377, 1.442695
      %v383 = vpow.pop %v382
      %v384 = vmul.f32 %v378, 1.442695
      %v385 = vpow.pop %v384
      %v386 = vmul.f32 %v379, 1.442695
      %v387 = vpow.pop %v386
      %v388 = vsel %vm276, %v381, 0.0
      %389 = vadd.xlane.f32.xlu0 %v388
      %v390 = vpop.xlane.xlu0 %389
      %v391 = vsel %vm276, %v383, 0.0
      %392 = vadd.xlane.f32.xlu0 %v391
      %v393 = vpop.xlane.xlu0 %392
      %v394 = vsel %vm276, %v385, 0.0
      %395 = vadd.xlane.f32.xlu0 %v394
      %v396 = vpop.xlane.xlu0 %395
      %v397 = vsel %vm276, %v387, 0.0
      %398 = vadd.xlane.f32.xlu0 %v397
      %v399 = vpop.xlane.xlu0 %398
      %v400 = vrcp.pop %v390
      %v401 = vrcp.pop %v393
      %v402 = vrcp.pop %v396
      %v403 = vrcp.pop %v399
      %v404 = vmul.f32 %v381, %v400
      %v405 = vmul.f32 %v383, %v401
      %v406 = vmul.f32 %v385, %v402
      %v407 = vmul.f32 %v387, %v403
      %v408 = vpack.c.bf16 %v404, %v404
      %v409 = vpack.c.bf16 %v405, %v405
      %v410 = vpack.c.bf16 %v406, %v406
      %v411 = vpack.c.bf16 %v407, %v407
      %v412 = vld [vmem:[%s248] sm:$0xff]
      %v413 = vld [vmem:[%s248 + $0x8] sm:$0xff]
      %v414 = vld [vmem:[%s248 + $0x10] sm:$0xff]
      %v415 = vld [vmem:[%s248 + $0x18] sm:$0xff]
      %v416 = vpack.c.bf16 %v412, %v412
      %v417 = vpack.c.bf16 %v413, %v413
      %v418 = vpack.c.bf16 %v414, %v414
      %v419 = vpack.c.bf16 %v415, %v415
      %v421 = vsel %vm276, %v408, 0
      %vm423 = vcmask 1043456
      %v425 = vsel %vm423, %v416, 0
      %427 = vmatpush.bf16.msra.mxu0 0
      %428 = vmatpush.bf16.msra.mxu0 0
      %429 = vmatpush.bf16.msra.mxu0 0
      %430 = vmatpush.bf16.msra.mxu0 0
      %431 = vmatpush.bf16.msra.mxu0 0
      %432 = vmatpush.bf16.msra.mxu0 0
      %433 = vmatpush.bf16.msra.mxu0 0
      %434 = vmatpush.bf16.msra.mxu0 %v425
      %435 = vmatmul.bf16.gmra.mxu0 %v421
      %v436 = vpop.f32.mrf.mxu0
      %v437 = vadd.f32 0.0, %v436
      %v438 = vpop.f32.mrf.mxu0
      %439 = vdwg.mxu0
      %v441 = vsel %vm276, %v409, 0
      %v444 = vsel %vm423, %v417, 0
      %446 = vmatpush.bf16.msra.mxu0 0
      %447 = vmatpush.bf16.msra.mxu0 0
      %448 = vmatpush.bf16.msra.mxu0 0
      %449 = vmatpush.bf16.msra.mxu0 0
      %450 = vmatpush.bf16.msra.mxu0 0
      %451 = vmatpush.bf16.msra.mxu0 0
      %452 = vmatpush.bf16.msra.mxu0 0
      %453 = vmatpush.bf16.msra.mxu0 %v444
      %454 = vmatmul.bf16.gmra.mxu0 %v441
      %v455 = vpop.f32.mrf.mxu0
      %v456 = vadd.f32 0.0, %v455
      %v457 = vpop.f32.mrf.mxu0
      %458 = vdwg.mxu0
      %v460 = vsel %vm276, %v410, 0
      %v463 = vsel %vm423, %v418, 0
      %465 = vmatpush.bf16.msra.mxu0 0
      %466 = vmatpush.bf16.msra.mxu0 0
      %467 = vmatpush.bf16.msra.mxu0 0
      %468 = vmatpush.bf16.msra.mxu0 0
      %469 = vmatpush.bf16.msra.mxu0 0
      %470 = vmatpush.bf16.msra.mxu0 0
      %471 = vmatpush.bf16.msra.mxu0 0
      %472 = vmatpush.bf16.msra.mxu0 %v463
      %473 = vmatmul.bf16.gmra.mxu0 %v460
      %v474 = vpop.f32.mrf.mxu0
      %v475 = vadd.f32 0.0, %v474
      %v476 = vpop.f32.mrf.mxu0
      %477 = vdwg.mxu0
      %v479 = vsel %vm276, %v411, 0
      %v482 = vsel %vm423, %v419, 0
      %484 = vmatpush.bf16.msra.mxu0 0
      %485 = vmatpush.bf16.msra.mxu0 0
      %486 = vmatpush.bf16.msra.mxu0 0
      %487 = vmatpush.bf16.msra.mxu0 0
      %488 = vmatpush.bf16.msra.mxu0 0
      %489 = vmatpush.bf16.msra.mxu0 0
      %490 = vmatpush.bf16.msra.mxu0 0
      %491 = vmatpush.bf16.msra.mxu0 %v482
      %492 = vmatmul.bf16.gmra.mxu0 %v479
      %v493 = vpop.f32.mrf.mxu0
      %v494 = vadd.f32 0.0, %v493
      %v495 = vpop.f32.mrf.mxu0
      %496 = vdwg.mxu0
      %497 = vst.msk [vmem:[%s257] sm:$0xff] %vm276, %v437
      %498 = vst.msk [vmem:[%s257 + $0x8] sm:$0xff] %vm276, %v456
      %499 = vst.msk [vmem:[%s257 + $0x10] sm:$0xff] %vm276, %v475
      %500 = vst.msk [vmem:[%s257 + $0x18] sm:$0xff] %vm276, %v494
      %s501 = smul.u32 4, %s15
      %p502 = scmp.lt.s32.totalorder %s501, 7
      %s503 = scalar_select %p502, %s501, 7
      %s504 = smul.addr %s503, 8
      %s505 = scalar_lea.vmem %s4, %s504
      // Predicated region
      $region37: #{transformer_fwd.43} parent=35 // pred_check
        %p506 = pneg %p137
      $region38: #{transformer_fwd.43} parent=35 // pred_check_branch
        %508 = sbr.rel (%p506) target = $region40
      $region39: #{transformer_fwd.43} parent=35 // pred_region
        %s509 = smul.u32 4, %s15
      $region40: #{transformer_fwd.43} parent=35 // pred_fallthru
        _
    $region36: #{transformer_fwd.43} parent=5 // pred_fallthru
      _
    %p510 = scmp.le.s32.totalorder 2, %s10
    // Predicated region
    $region41: #{transformer_fwd.43} parent=5 // pred_check
      %p511 = pneg %p510
    $region42: #{transformer_fwd.43} parent=5 // pred_check_branch
      %513 = sbr.rel (%p511) target = $region44
    $region43: #{transformer_fwd.43} parent=5 // pred_region
      %s514 = ssub.s32 %s10, 2
      // Predicated region
      $region45: #{transformer_fwd.43} parent=43 // pred_check
        %p515 = pneg %p143
      $region46: #{transformer_fwd.43} parent=43 // pred_check_branch
        %517 = sbr.rel (%p515) target = $region48
      $region47: #{transformer_fwd.43} parent=43 // pred_region
        %s518 = smul.u32 4, %s16
        %p519 = scmp.lt.s32.totalorder %s518, 7
        %s520 = scalar_select %p519, %s518, 7
        %s521 = smul.addr %s520, 8
        %s522 = scalar_lea.vmem %s4, %s521
      $region48: #{transformer_fwd.43} parent=43 // pred_fallthru
        _
    $region44: #{transformer_fwd.43} parent=5 // pred_fallthru
      _
  $region6: #{transformer_fwd.43} parent=0 // loop_footer
    %s14 = sadd.s32 1, %s10
  $region7: #{transformer_fwd.43} parent=0 // loop_footer_branch
    %9 = sbr.rel target = $region3
  $region8: #{transformer_fwd.43} parent=0 // loop_exit
    _

// kernel: transformer_fwd.47
$region0: #{transformer_fwd.47}
  #allocation0 [shape = 'u32[]', space=smem, size = 0x4, offset = 0x4, fixed_abs, tag = 'smem constant byte address 0x4 - core index']
  #allocation1 [shape = 'u32[72,128]{1,0:T(1,128)}', space=vmem, size = 0x9000, scoped, tag = 'internal scratch']
  #allocation2 [shape = 'f32[16,32]{1,0:T(8,128)}', space=vmem, size = 0x2000, scoped, tag = 'scratch operand']
  %s0 = inlined_call_operand.vmem [shape: f32[16,64], index: 0, kind: input, shape index: {}]
  %s1 = inlined_call_operand.vmem [shape: bf16[64,32], index: 1, kind: input, shape index: {}]
  %s2 = inlined_call_operand.vmem [shape: f32[1,32], index: 2, kind: input, shape index: {}]
  %s3 = inlined_call_operand.vmem [shape: f32[16,32], index: 3, kind: input, shape index: {}]
  %s4 = inlined_call_operand.vmem [shape: f32[16,32], index: 4, kind: output, shape index: {}]
  %s5 = sld [smem:[#allocation0]]
  $region34: #{transformer_fwd.47} parent=0
    _
  %s7 = ssub.s32 1, %s5
  %s8 = scalar_select 0, %s7, %s5
  // Predicated region
  $region2: #{transformer_fwd.47} parent=0 // pred_check
    _
  $region3: #{transformer_fwd.47} parent=0 // pred_check_branch
    %10 = sbr.rel (0) target = $region5
  $region4: #{transformer_fwd.47} parent=0 // pred_region
    _
  $region5: #{transformer_fwd.47} parent=0 // pred_fallthru
    _
  // Predicated region
  $region6: #{transformer_fwd.47} parent=0 // pred_check
    _
  $region7: #{transformer_fwd.47} parent=0 // pred_check_branch
    %12 = sbr.rel (0) target = $region9
  $region8: #{transformer_fwd.47} parent=0 // pred_region
    _
  $region9: #{transformer_fwd.47} parent=0 // pred_fallthru
    _
  // Predicated region
  $region10: #{transformer_fwd.47} parent=0 // pred_check
    _
  $region11: #{transformer_fwd.47} parent=0 // pred_check_branch
    %14 = sbr.rel (0) target = $region13
  $region12: #{transformer_fwd.47} parent=0 // pred_region
    _
  $region13: #{transformer_fwd.47} parent=0 // pred_fallthru
    _
  // Predicated region
  $region14: #{transformer_fwd.47} parent=0 // pred_check
    _
  $region15: #{transformer_fwd.47} parent=0 // pred_check_branch
    %16 = sbr.rel (0) target = $region17
  $region16: #{transformer_fwd.47} parent=0 // pred_region
    _
  $region17: #{transformer_fwd.47} parent=0 // pred_fallthru
    _
  %p18 = scmp.eq.s32.totalorder 0, 0
  // Predicated region
  $region18: #{transformer_fwd.47} parent=0 // pred_check
    %p19 = pneg %p18
  $region19: #{transformer_fwd.47} parent=0 // pred_check_branch
    %21 = sbr.rel (%p19) target = $region21
  $region20: #{transformer_fwd.47} parent=0 // pred_region
    %vm22 = vcmask 261120
    %23 = vst.msk [vmem:[#allocation2] sm:$0xff] %vm22, 0.0
    %24 = vst.msk [vmem:[#allocation2 + $0x8] sm:$0xff] %vm22, 0.0
  $region21: #{transformer_fwd.47} parent=0 // pred_fallthru
    _
  %v25 = vld [vmem:[#allocation2] sm:$0xff]
  %v26 = vld [vmem:[#allocation2 + $0x8] sm:$0xff]
  %v27 = vld [vmem:[%s0] sm:$0xff]
  %v28 = vld [vmem:[%s0 + $0x8] sm:$0xff]
  %v29 = vpack.c.bf16 %v28, %v27
  %v30 = vld [vmem:[%s1] sm:$0xf]
  %v31 = vld [vmem:[%s1 + $0x4] sm:$0xf]
  %v32 = vld [vmem:[%s1 + $0x8] sm:$0xf]
  %v33 = vld [vmem:[%s1 + $0xc] sm:$0xf]
  %v34 = vld [vmem:[%s1 + $0x10] sm:$0xf]
  %v35 = vld [vmem:[%s1 + $0x14] sm:$0xf]
  %v36 = vld [vmem:[%s1 + $0x18] sm:$0xf]
  %v37 = vld [vmem:[%s1 + $0x1c] sm:$0xf]
  %v46 = vunpack.c.l.b16 %v30
  %v47 = vunpack.c.l.b16 %v31
  %v48 = vunpack.c.l.b16 %v32
  %v49 = vunpack.c.l.b16 %v33
  %v50 = vunpack.c.l.b16 %v34
  %v51 = vunpack.c.l.b16 %v35
  %v52 = vunpack.c.l.b16 %v36
  %v53 = vunpack.c.l.b16 %v37
  %v54 = vpack.c.b16 %v47, %v46
  %v55 = vpack.c.b16 %v49, %v48
  %v56 = vpack.c.b16 %v51, %v50
  %v57 = vpack.c.b16 %v53, %v52
  %vm62 = vcmask 523264
  %v64 = vsel %vm62, %v29, 0
  %66 = vmatpush.bf16.msra.mxu0 0
  %67 = vmatpush.bf16.msra.mxu0 0
  %68 = vmatpush.bf16.msra.mxu0 0
  %69 = vmatpush.bf16.msra.mxu0 0
  %70 = vmatpush.bf16.msra.mxu0 %v57
  %71 = vmatpush.bf16.msra.mxu0 %v56
  %72 = vmatpush.bf16.msra.mxu0 %v55
  %73 = vmatpush.bf16.msra.mxu0 %v54
  %74 = vmatmul.bf16.gmra.mxu0 %v64
  %v75 = vpop.f32.mrf.mxu0
  %v76 = vadd.f32 0.0, %v75
  %v77 = vpop.f32.mrf.mxu0
  %v78 = vadd.f32 0.0, %v77
  %79 = vdwg.mxu0
  %v80 = vadd.f32 %v25, %v76
  %v81 = vadd.f32 %v26, %v78
  %vm82 = vcmask 261120
  %83 = vst.msk [vmem:[#allocation2] sm:$0xff] %vm82, %v80
  %84 = vst.msk [vmem:[#allocation2 + $0x8] sm:$0xff] %vm82, %v81
  // Predicated region
  $region22: #{transformer_fwd.47} parent=0 // pred_check
    %p85 = pneg %p18
  $region23: #{transformer_fwd.47} parent=0 // pred_check_branch
    %87 = sbr.rel (%p85) target = $region25
  $region24: #{transformer_fwd.47} parent=0 // pred_region
    %v88 = vld [vmem:[#allocation2] sm:$0xff]
    %v89 = vld [vmem:[#allocation2 + $0x8] sm:$0xff]
    %v90 = vld [vmem:[%s2] sm:$0x1]
    %v92 = vperm.slane %v90, 0
    %v94 = vadd.f32 %v88, %v92
    %v95 = vadd.f32 %v89, %v92
    %v96 = vld [vmem:[%s3] sm:$0xff]
    %v97 = vld [vmem:[%s3 + $0x8] sm:$0xff]
    %v98 = vadd.f32 %v94, %v96
    %v99 = vadd.f32 %v95, %v97
    %100 = vst.msk [vmem:[%s4] sm:$0xff] %vm82, %v98
    %101 = vst.msk [vmem:[%s4 + $0x8] sm:$0xff] %vm82, %v99
  $region25: #{transformer_fwd.47} parent=0 // pred_fallthru
    _
  // Predicated region
  $region26: #{transformer_fwd.47} parent=0 // pred_check
    _
  $region27: #{transformer_fwd.47} parent=0 // pred_check_branch
    %103 = sbr.rel (0) target = $region29
  $region28: #{transformer_fwd.47} parent=0 // pred_region
    _
  $region29: #{transformer_fwd.47} parent=0 // pred_fallthru
    _
  // Predicated region
  $region30: #{transformer_fwd.47} parent=0 // pred_check
    _
  $region31: #{transformer_fwd.47} parent=0 // pred_check_branch
    %105 = sbr.rel (0) target = $region33
  $region32: #{transformer_fwd.47} parent=0 // pred_region
    _
  $region33: #{transformer_fwd.47} parent=0 // pred_fallthru
    _

// kernel: transformer_fwd.62
$region0: #{transformer_fwd.62}
  #allocation0 [shape = 'u32[]', space=smem, size = 0x4, offset = 0x4, fixed_abs, tag = 'smem constant byte address 0x4 - core index']
  #allocation1 [shape = 'u32[72,128]{1,0:T(1,128)}', space=vmem, size = 0x9000, scoped, tag = 'internal scratch']
  #allocation2 [shape = 'f32[16,64]{1,0:T(8,128)}', space=vmem, size = 0x2000, scoped, tag = 'scratch operand']
  %s0 = inlined_call_operand.vmem [shape: f32[16,32], index: 0, kind: input, shape index: {}]
  %s1 = inlined_call_operand.vmem [shape: bf16[32,64], index: 1, kind: input, shape index: {}]
  %s2 = inlined_call_operand.vmem [shape: f32[1,64], index: 2, kind: input, shape index: {}]
  %s3 = inlined_call_operand.vmem [shape: f32[16,64], index: 3, kind: output, shape index: {}]
  %s4 = sld [smem:[#allocation0]]
  $region30: #{transformer_fwd.62} parent=0
    _
  %s6 = ssub.s32 1, %s4
  %s7 = scalar_select 0, %s6, %s4
  // Predicated region
  $region2: #{transformer_fwd.62} parent=0 // pred_check
    _
  $region3: #{transformer_fwd.62} parent=0 // pred_check_branch
    %9 = sbr.rel (0) target = $region5
  $region4: #{transformer_fwd.62} parent=0 // pred_region
    _
  $region5: #{transformer_fwd.62} parent=0 // pred_fallthru
    _
  // Predicated region
  $region6: #{transformer_fwd.62} parent=0 // pred_check
    _
  $region7: #{transformer_fwd.62} parent=0 // pred_check_branch
    %11 = sbr.rel (0) target = $region9
  $region8: #{transformer_fwd.62} parent=0 // pred_region
    _
  $region9: #{transformer_fwd.62} parent=0 // pred_fallthru
    _
  // Predicated region
  $region10: #{transformer_fwd.62} parent=0 // pred_check
    _
  $region11: #{transformer_fwd.62} parent=0 // pred_check_branch
    %13 = sbr.rel (0) target = $region13
  $region12: #{transformer_fwd.62} parent=0 // pred_region
    _
  $region13: #{transformer_fwd.62} parent=0 // pred_fallthru
    _
  %p15 = scmp.eq.s32.totalorder 0, 0
  // Predicated region
  $region14: #{transformer_fwd.62} parent=0 // pred_check
    %p16 = pneg %p15
  $region15: #{transformer_fwd.62} parent=0 // pred_check_branch
    %18 = sbr.rel (%p16) target = $region17
  $region16: #{transformer_fwd.62} parent=0 // pred_region
    %vm19 = vcmask 523264
    %20 = vst.msk [vmem:[#allocation2] sm:$0xff] %vm19, 0.0
    %21 = vst.msk [vmem:[#allocation2 + $0x8] sm:$0xff] %vm19, 0.0
  $region17: #{transformer_fwd.62} parent=0 // pred_fallthru
    _
  %v22 = vld [vmem:[#allocation2] sm:$0xff]
  %v23 = vld [vmem:[#allocation2 + $0x8] sm:$0xff]
  %v24 = vld [vmem:[%s0] sm:$0xff]
  %v25 = vld [vmem:[%s0 + $0x8] sm:$0xff]
  %v26 = vpack.c.bf16 %v25, %v24
  %v27 = vld [vmem:[%s1] sm:$0xf]
  %v28 = vld [vmem:[%s1 + $0x4] sm:$0xf]
  %v29 = vld [vmem:[%s1 + $0x8] sm:$0xf]
  %v30 = vld [vmem:[%s1 + $0xc] sm:$0xf]
  %v35 = vunpack.c.l.b16 %v27
  %v36 = vunpack.c.l.b16 %v28
  %v37 = vunpack.c.l.b16 %v29
  %v38 = vunpack.c.l.b16 %v30
  %v39 = vpack.c.b16 %v36, %v35
  %v40 = vpack.c.b16 %v38, %v37
  %vm43 = vcmask 261120
  %v45 = vsel %vm43, %v26, 0
  %47 = vmatpush.bf16.msra.mxu0 0
  %48 = vmatpush.bf16.msra.mxu0 0
  %49 = vmatpush.bf16.msra.mxu0 0
  %50 = vmatpush.bf16.msra.mxu0 0
  %51 = vmatpush.bf16.msra.mxu0 0
  %52 = vmatpush.bf16.msra.mxu0 0
  %53 = vmatpush.bf16.msra.mxu0 %v40
  %54 = vmatpush.bf16.msra.mxu0 %v39
  %55 = vmatmul.bf16.gmra.mxu0 %v45
  %v56 = vpop.f32.mrf.mxu0
  %v57 = vadd.f32 0.0, %v56
  %v58 = vpop.f32.mrf.mxu0
  %v59 = vadd.f32 0.0, %v58
  %60 = vdwg.mxu0
  %v61 = vadd.f32 %v22, %v57
  %v62 = vadd.f32 %v23, %v59
  %vm63 = vcmask 523264
  %64 = vst.msk [vmem:[#allocation2] sm:$0xff] %vm63, %v61
  %65 = vst.msk [vmem:[#allocation2 + $0x8] sm:$0xff] %vm63, %v62
  // Predicated region
  $region18: #{transformer_fwd.62} parent=0 // pred_check
    %p66 = pneg %p15
  $region19: #{transformer_fwd.62} parent=0 // pred_check_branch
    %68 = sbr.rel (%p66) target = $region21
  $region20: #{transformer_fwd.62} parent=0 // pred_region
    %v69 = vld [vmem:[#allocation2] sm:$0xff]
    %v70 = vld [vmem:[#allocation2 + $0x8] sm:$0xff]
    %v71 = vld [vmem:[%s2] sm:$0x1]
    %v73 = vperm.slane %v71, 0
    %v75 = vadd.f32 %v69, %v73
    %v76 = vadd.f32 %v70, %v73
    %77 = vst.msk [vmem:[%s3] sm:$0xff] %vm63, %v75
    %78 = vst.msk [vmem:[%s3 + $0x8] sm:$0xff] %vm63, %v76
  $region21: #{transformer_fwd.62} parent=0 // pred_fallthru
    _
  // Predicated region
  $region22: #{transformer_fwd.62} parent=0 // pred_check
    _
  $region23: #{transformer_fwd.62} parent=0 // pred_check_branch
    %80 = sbr.rel (0) target = $region25
  $region24: #{transformer_fwd.62} parent=0 // pred_region
    _
  $region25: #{transformer_fwd.62} parent=0 // pred_fallthru
    _
  // Predicated region
  $region26: #{transformer_fwd.62} parent=0 // pred_check
    _
  $region27: #{transformer_fwd.62} parent=0 // pred_check_branch
    %82 = sbr.rel (0) target = $region29
  $region28: #{transformer_fwd.62} parent=0 // pred_region
    _
  $region29: #{transformer_fwd.62} parent=0 // pred_fallthru
    _

// kernel: transformer_fwd.81
$region0: #{transformer_fwd.81}
  #allocation0 [shape = 'u32[]', space=smem, size = 0x4, offset = 0x4, fixed_abs, tag = 'smem constant byte address 0x4 - core index']
  #allocation1 [shape = 'u32[72,128]{1,0:T(1,128)}', space=vmem, size = 0x9000, scoped, tag = 'internal scratch']
  #allocation2 [shape = 'f32[16,64]{1,0:T(8,128)}', space=vmem, size = 0x2000, scoped, tag = 'scratch operand']
  %s0 = inlined_call_operand.vmem [shape: f32[16,32], index: 0, kind: input, shape index: {}]
  %s1 = inlined_call_operand.vmem [shape: bf16[32,64], index: 1, kind: input, shape index: {}]
  %s2 = inlined_call_operand.vmem [shape: f32[1,64], index: 2, kind: input, shape index: {}]
  %s3 = inlined_call_operand.hbm [shape: f32[16,64], index: 3, kind: output, shape index: {}]
  %s4 = sld [smem:[#allocation0]]
  $region30: #{transformer_fwd.81} parent=0
    _
  %s6 = ssub.s32 1, %s4
  %s7 = scalar_select 0, %s6, %s4
  $region1: #{transformer_fwd.81} parent=0
    #allocation3 [shape = 'u8[8192]{0}', space=vmem, size = 0x2000, scoped, tag = 'output window, operand 0, single buffered']
    #allocation4 [shape = 's32[1]{0}', space=sflag, size = 0x4, scoped, tag = 'scoped memory for transformer_fwd.81']
    %8 = vsyncpa [#allocation4], 0
    // Predicated region
    $region2: #{transformer_fwd.81} parent=1 // pred_check
      _
    $region3: #{transformer_fwd.81} parent=1 // pred_check_branch
      %10 = sbr.rel (0) target = $region5
    $region4: #{transformer_fwd.81} parent=1 // pred_region
      _
    $region5: #{transformer_fwd.81} parent=1 // pred_fallthru
      _
    // Predicated region
    $region6: #{transformer_fwd.81} parent=1 // pred_check
      _
    $region7: #{transformer_fwd.81} parent=1 // pred_check_branch
      %12 = sbr.rel (0) target = $region9
    $region8: #{transformer_fwd.81} parent=1 // pred_region
      _
    $region9: #{transformer_fwd.81} parent=1 // pred_fallthru
      _
    // Predicated region
    $region10: #{transformer_fwd.81} parent=1 // pred_check
      _
    $region11: #{transformer_fwd.81} parent=1 // pred_check_branch
      %14 = sbr.rel (0) target = $region13
    $region12: #{transformer_fwd.81} parent=1 // pred_region
      _
    $region13: #{transformer_fwd.81} parent=1 // pred_fallthru
      _
    %p16 = scmp.eq.s32.totalorder 0, 0
    // Predicated region
    $region14: #{transformer_fwd.81} parent=1 // pred_check
      %p17 = pneg %p16
    $region15: #{transformer_fwd.81} parent=1 // pred_check_branch
      %19 = sbr.rel (%p17) target = $region17
    $region16: #{transformer_fwd.81} parent=1 // pred_region
      %vm20 = vcmask 523264
      %21 = vst.msk [vmem:[#allocation2] sm:$0xff] %vm20, 0.0
      %22 = vst.msk [vmem:[#allocation2 + $0x8] sm:$0xff] %vm20, 0.0
    $region17: #{transformer_fwd.81} parent=1 // pred_fallthru
      _
    %v23 = vld [vmem:[#allocation2] sm:$0xff]
    %v24 = vld [vmem:[#allocation2 + $0x8] sm:$0xff]
    %v25 = vld [vmem:[%s0] sm:$0xff]
    %v26 = vld [vmem:[%s0 + $0x8] sm:$0xff]
    %v27 = vpack.c.bf16 %v26, %v25
    %v28 = vld [vmem:[%s1] sm:$0xf]
    %v29 = vld [vmem:[%s1 + $0x4] sm:$0xf]
    %v30 = vld [vmem:[%s1 + $0x8] sm:$0xf]
    %v31 = vld [vmem:[%s1 + $0xc] sm:$0xf]
    %v36 = vunpack.c.l.b16 %v28
    %v37 = vunpack.c.l.b16 %v29
    %v38 = vunpack.c.l.b16 %v30
    %v39 = vunpack.c.l.b16 %v31
    %v40 = vpack.c.b16 %v37, %v36
    %v41 = vpack.c.b16 %v39, %v38
    %vm44 = vcmask 261120
    %v46 = vsel %vm44, %v27, 0
    %48 = vmatpush.bf16.msra.mxu0 0
    %49 = vmatpush.bf16.msra.mxu0 0
    %50 = vmatpush.bf16.msra.mxu0 0
    %51 = vmatpush.bf16.msra.mxu0 0
    %52 = vmatpush.bf16.msra.mxu0 0
    %53 = vmatpush.bf16.msra.mxu0 0
    %54 = vmatpush.bf16.msra.mxu0 %v41
    %55 = vmatpush.bf16.msra.mxu0 %v40
    %56 = vmatmul.bf16.gmra.mxu0 %v46
    %v57 = vpop.f32.mrf.mxu0
    %v58 = vadd.f32 0.0, %v57
    %v59 = vpop.f32.mrf.mxu0
    %v60 = vadd.f32 0.0, %v59
    %61 = vdwg.mxu0
    %v62 = vadd.f32 %v23, %v58
    %v63 = vadd.f32 %v24, %v60
    %vm64 = vcmask 523264
    %65 = vst.msk [vmem:[#allocation2] sm:$0xff] %vm64, %v62
    %66 = vst.msk [vmem:[#allocation2 + $0x8] sm:$0xff] %vm64, %v63
    // Predicated region
    $region18: #{transformer_fwd.81} parent=1 // pred_check
      %p67 = pneg %p16
    $region19: #{transformer_fwd.81} parent=1 // pred_check_branch
      %69 = sbr.rel (%p67) target = $region21
    $region20: #{transformer_fwd.81} parent=1 // pred_region
      %v70 = vld [vmem:[#allocation2] sm:$0xff]
      %v71 = vld [vmem:[#allocation2 + $0x8] sm:$0xff]
      %v72 = vld [vmem:[%s2] sm:$0x1]
      %v74 = vperm.slane %v72, 0
      %v76 = vadd.f32 %v70, %v74
      %v77 = vadd.f32 %v71, %v74
      %78 = vst.msk [vmem:[#allocation3] sm:$0xff] %vm64, %v76
      %79 = vst.msk [vmem:[#allocation3 + $0x8] sm:$0xff] %vm64, %v77
    $region21: #{transformer_fwd.81} parent=1 // pred_fallthru
      _
    // Predicated region
    $region22: #{transformer_fwd.81} parent=1 // pred_check
      _
    $region23: #{transformer_fwd.81} parent=1 // pred_check_branch
      %81 = sbr.rel (0) target = $region25
    $region24: #{transformer_fwd.81} parent=1 // pred_region
      %83 = vsyncadd [#allocation4], 0
      %s84 = sshll.u32 [#allocation3], 4
      %s85 = int_to_ptr.vmem [resolvable:$true] %s84
      %s86 = sshll.u32 %s3, 4
      %s87 = int_to_ptr.hbm [resolvable:$true] %s86
      %92 = dma.vmem_to_hbm [thread:$0]  %s85, 256, %s87, [#allocation4], 128, 128, 8
    $region25: #{transformer_fwd.81} parent=1 // pred_fallthru
      _
    // Predicated region
    $region26: #{transformer_fwd.81} parent=1 // pred_check
      _
    $region27: #{transformer_fwd.81} parent=1 // pred_check_branch
      %94 = sbr.rel (0) target = $region29
    $region28: #{transformer_fwd.81} parent=1 // pred_region
      %96 = dma.done [#allocation4], 256
    $region29: #{transformer_fwd.81} parent=1 // pred_fallthru
      _
    %97 = vsyncpa [#allocation4], 1

</llo_original>
